<compile_context>
chip_gen: v7x
topology: tpu7x:2x2x1
jax: 0.10.0
libtpu: 0.0.40
codegen_flags: <defaults>
</compile_context>

<pallas_src>
import functools

import jax
import jax.numpy as jnp
from jax.experimental import pallas as pl
from jax.experimental.pallas import tpu as pltpu

LN_EPS = 1e-5     # PyTorch nn.LayerNorm default
NEG_INF = -1.0e9  # matches masked_fill(mask == 0, -1e9)
FFN_CHUNK = 512   # lane-aligned chunk of the 4*D FFN hidden dimension


def _layernorm(x, gamma, beta):
    mean = jnp.mean(x, axis=-1, keepdims=True)
    var = jnp.mean((x - mean) ** 2, axis=-1, keepdims=True)
    return (x - mean) * jax.lax.rsqrt(var + LN_EPS) * gamma + beta


# --------------------------------------------------------------------------
# Shared attention core.
#   q_in:       (Tq, D)  f32 residual / query source
#   Q, K, V:    (Tq, D), (Tk, D), (Tk, D)  already projected, compute dtype
#   mask:       (Tq, Tk) int8 (1 = attend, 0 = masked)
#   wo_q, wo_a: (D, D) halves of the (2D, D) output projection (compute dtype)
#   ctx_ref:    (Tq, D) VMEM scratch (compute dtype) holding the concatenated
#               per-head contexts -> output projection runs as one full-D
#               contraction instead of H shallow dh-deep matmuls.
# --------------------------------------------------------------------------
def _mha_core(q_in, Q, K, V, mask, wo_q, wo_a, bo, gamma, beta, ctx_ref,
              num_heads, cdt):
    D = q_in.shape[-1]
    dh = D // num_heads
    scale = dh ** -0.5

    # additive mask bias, hoisted out of the head loop (int8 -> f32 once)
    m_f = mask.astype(jnp.float32)
    mask_bias = jnp.where(m_f == 0.0, jnp.float32(NEG_INF), jnp.float32(0.0))

    # res = q_in @ Wo[:D] + bo   (the "query" half of the concat projection)
    res = jnp.dot(q_in.astype(cdt), wo_q,
                  preferred_element_type=jnp.float32) + bo

    # Heads statically unrolled; each head's (Tq,Tk) scores are fully consumed
    # (written to ctx_ref) before the next head starts, so live ranges stay
    # bounded.
    # TODO(synk): for dh % 128 != 0 the per-head lane slices below relayout; a
    # head-major projection layout would remove them.
    for h in range(num_heads):
        lo = h * dh
        qh = Q[:, lo:lo + dh]
        kh = K[:, lo:lo + dh]
        vh = V[:, lo:lo + dh]

        # Q.K^T without an explicit transpose: contract the last dims (MXU
        # consumes K untransposed).
        s = jax.lax.dot_general(qh, kh, (((1,), (1,)), ((), ())),
                                preferred_element_type=jnp.float32)
        s = s * scale + mask_bias
        s = s - jnp.max(s, axis=-1, keepdims=True)
        p = jnp.exp(s)
        p = p * pl.reciprocal(jnp.sum(p, axis=-1, keepdims=True), approx=True)

        ctx = jnp.dot(p.astype(cdt), vh, preferred_element_type=jnp.float32)
        ctx_ref[:, lo:lo + dh] = ctx.astype(ctx_ref.dtype)

    # Single full-depth (Tq,D)@(D,D) output projection for all heads.
    res = res + jnp.dot(ctx_ref[...], wo_a, preferred_element_type=jnp.float32)
    res = res + q_in
    return _layernorm(res, gamma, beta)


# --------------------------------------------------------------------------
# Fused transformer-block kernel: one batch element per grid step.
# --------------------------------------------------------------------------
def transformer_block_kernel(
        y_ref, x_ref, sm_ref, em_ref,
        # self-attention params
        s_wqkv, s_bqkv, s_woq, s_woa, s_bo, s_g, s_b,
        # encoder-decoder attention params
        c_wq, c_bq, c_wkv, c_bkv, c_woq, c_woa, c_bo, c_g, c_b,
        # FFN params
        f_w1, f_b1, f_w2, f_b2, f_g, f_b,
        out_ref,
        ctx_ref,                       # VMEM scratch (Ty, D), compute dtype
        *, num_heads, compute_dtype):
    cdt = compute_dtype
    D = y_ref.shape[-1]

    y = y_ref[0]          # (Ty, D) f32
    x = x_ref[0]          # (Tx, D) f32

    # ---- self attention: fused QKV projection (D -> 3D) ----
    qkv = (jnp.dot(y.astype(cdt), s_wqkv[...],
                   preferred_element_type=jnp.float32) + s_bqkv[...]).astype(cdt)
    y = _mha_core(y, qkv[:, :D], qkv[:, D:2 * D], qkv[:, 2 * D:], sm_ref[0],
                  s_woq[...], s_woa[...], s_bo[...], s_g[...], s_b[...],
                  ctx_ref, num_heads, cdt)

    # ---- encoder-decoder attention: Q from y, fused KV projection (D -> 2D) ----
    Qc = (jnp.dot(y.astype(cdt), c_wq[...],
                  preferred_element_type=jnp.float32) + c_bq[...]).astype(cdt)
    kv = (jnp.dot(x.astype(cdt), c_wkv[...],
                  preferred_element_type=jnp.float32) + c_bkv[...]).astype(cdt)
    y = _mha_core(y, Qc, kv[:, :D], kv[:, D:], em_ref[0],
                  c_woq[...], c_woa[...], c_bo[...], c_g[...], c_b[...],
                  ctx_ref, num_heads, cdt)

    # ---- position-wise FFN (Conv1d kernel=1 == dense over last dim) ----
    # Hidden dim processed in lane-aligned chunks: bounds the (Ty, 4D)
    # intermediate and the per-chunk weight working set.
    H4 = f_w1.shape[-1]
    y_c = y.astype(cdt)
    acc = None
    for c0 in range(0, H4, FFN_CHUNK):
        c1 = min(c0 + FFN_CHUNK, H4)
        hid = jnp.dot(y_c, f_w1[:, c0:c1],
                      preferred_element_type=jnp.float32) + f_b1[:, c0:c1]
        hid = jnp.where(hid >= 0, hid, 0.2 * hid)          # LeakyReLU(0.2)
        part = jnp.dot(hid.astype(cdt), f_w2[c0:c1, :],
                       preferred_element_type=jnp.float32)
        acc = part if acc is None else acc + part
    z = acc + f_b2[...] + y
    out_ref[0] = _layernorm(z, f_g[...], f_b[...])


# --------------------------------------------------------------------------
# Host-side weight packing (fused QKV / KV, split Wo; matmul weights cast to
# the compute dtype; biases / LN params stay f32).
# --------------------------------------------------------------------------
def _pack_self(p, cdt):
    wq, bq, wk, bk, wv, bv, wo, bo, g, b = p
    D = wq.shape[0]
    w_qkv = jnp.concatenate([wq, wk, wv], axis=1).astype(cdt)   # (D, 3D)
    b_qkv = jnp.concatenate([bq, bk, bv], axis=1)               # (1, 3D)
    return (w_qkv, b_qkv, wo[:D].astype(cdt), wo[D:].astype(cdt), bo, g, b)


def _pack_cross(p, cdt):
    wq, bq, wk, bk, wv, bv, wo, bo, g, b = p
    D = wq.shape[0]
    w_kv = jnp.concatenate([wk, wv], axis=1).astype(cdt)        # (D, 2D)
    b_kv = jnp.concatenate([bk, bv], axis=1)                    # (1, 2D)
    return (wq.astype(cdt), bq, w_kv, b_kv,
            wo[:D].astype(cdt), wo[D:].astype(cdt), bo, g, b)


def _pack_ffn(p, cdt):
    w1, b1, w2, b2, g, b = p
    return (w1.astype(cdt), b1, w2.astype(cdt), b2, g, b)


def _w_spec(shape):
    # Grid-invariant weight block: constant index_map -> fetched once across
    # the whole batch grid.  Single-buffered: double-buffering something that
    # is never re-DMA'd only doubles its VMEM footprint.
    idx = lambda i: (0,) * len(shape)
    try:
        return pl.BlockSpec(shape, idx, pipeline_mode=pl.Buffered(1))
    except Exception:                       # older jax: no pipeline_mode
        return pl.BlockSpec(shape, idx)


def _vmem_limit_bytes():
    # Explicit scoped-VMEM limit instead of the small defaults:
    # ~100 MiB on 128-MiB parts (v5e/v6e), capacity minus headroom on v7x.
    try:
        cap = int(pltpu.get_tpu_info().vmem_capacity_bytes)
    except Exception:
        cap = 64 * 1024 * 1024              # conservative (v7x-sized) fallback
    return min(100 * 1024 * 1024, cap - 4 * 1024 * 1024)


def transformer_block_ed(x, y, slf_mask, enc_mask, slf_p, enc_p, ffn_p,
                         num_heads, compute_dtype=jnp.float32):
    B, Ty, D = y.shape
    Tx = x.shape[1]

    s = _pack_self(slf_p, compute_dtype)
    c = _pack_cross(enc_p, compute_dtype)
    f = _pack_ffn(ffn_p, compute_dtype)
    weights = s + c + f

    # masks as int8: 4x less HBM traffic / VMEM than f32, same semantics
    sm_i8 = (slf_mask != 0).astype(jnp.int8)
    em_i8 = (enc_mask != 0).astype(jnp.int8)

    in_specs = [
        pl.BlockSpec((1, Ty, D), lambda i: (i, 0, 0)),      # y (decoder input)
        pl.BlockSpec((1, Tx, D), lambda i: (i, 0, 0)),      # x (encoder output)
        pl.BlockSpec((1, Ty, Ty), lambda i: (i, 0, 0)),     # self-attn mask
        pl.BlockSpec((1, Ty, Tx), lambda i: (i, 0, 0)),     # cross-attn mask
    ] + [_w_spec(w.shape) for w in weights]

    return pl.pallas_call(
        functools.partial(transformer_block_kernel,
                          num_heads=num_heads, compute_dtype=compute_dtype),
        out_shape=jax.ShapeDtypeStruct((B, Ty, D), jnp.float32),
        grid=(B,),
        in_specs=in_specs,
        out_specs=pl.BlockSpec((1, Ty, D), lambda i: (i, 0, 0)),
        scratch_shapes=[pltpu.VMEM((Ty, D), compute_dtype)],  # per-head ctx buf
        compiler_params=pltpu.CompilerParams(
            dimension_semantics=("parallel",),
            vmem_limit_bytes=_vmem_limit_bytes()),
    )(y, x, sm_i8, em_i8, *weights)


# --------------------------------------------------------------------------
# Pure-JAX reference (mirrors the PyTorch forward) for a sanity check
# --------------------------------------------------------------------------
def _mha_ref(q, kv, mask, params, h):
    wq, bq, wk, bk, wv, bv, wo, bo, g, beta = params
    B, Tq, D = q.shape
    Tk = kv.shape[1]
    dh = D // h
    Q = (q @ wq + bq).reshape(B, Tq, h, dh).transpose(0, 2, 1, 3)
    K = (kv @ wk + bk).reshape(B, Tk, h, dh).transpose(0, 2, 1, 3)
    V = (kv @ wv + bv).reshape(B, Tk, h, dh).transpose(0, 2, 1, 3)
    scores = jnp.einsum("bhqd,bhkd->bhqk", Q, K) / jnp.sqrt(jnp.float32(dh))
    scores = jnp.where(mask[:, None, :, :] == 0, NEG_INF, scores)
    p = jax.nn.softmax(scores, axis=-1)
    out = jnp.einsum("bhqk,bhkd->bhqd", p, V).transpose(0, 2, 1, 3).reshape(B, Tq, D)
    res = jnp.concatenate([q, out], axis=-1) @ wo + bo + q
    return _layernorm(res, g, beta)


def _ffn_ref(x, params):
    w1, b1, w2, b2, g, beta = params
    hid = x @ w1 + b1
    hid = jnp.where(hid >= 0, hid, 0.2 * hid)
    y = hid @ w2 + b2 + x
    return _layernorm(y, g, beta)


def _block_ref(x, y, slf_mask, enc_mask, slf_p, enc_p, ffn_p, h):
    y = _mha_ref(y, y, slf_mask, slf_p, h)
    y = _mha_ref(y, x, enc_mask, enc_p, h)
    return _ffn_ref(y, ffn_p)


# --------------------------------------------------------------------------
# Deterministic parameter init (synthetic; shapes match the nn.Module)
# --------------------------------------------------------------------------
def init_mha_params(key, D, scale=0.1):
    ks = jax.random.split(key, 8)
    wq = jax.random.normal(ks[0], (D, D), jnp.float32) * scale
    bq = jax.random.normal(ks[1], (1, D), jnp.float32) * scale
    wk = jax.random.normal(ks[2], (D, D), jnp.float32) * scale
    bk = jax.random.normal(ks[3], (1, D), jnp.float32) * scale
    wv = jax.random.normal(ks[4], (D, D), jnp.float32) * scale
    bv = jax.random.normal(ks[5], (1, D), jnp.float32) * scale
    wo = jax.random.normal(ks[6], (2 * D, D), jnp.float32) * scale
    bo = jax.random.normal(ks[7], (1, D), jnp.float32) * scale
    g = jnp.ones((1, D), jnp.float32)
    b = jnp.zeros((1, D), jnp.float32)
    return (wq, bq, wk, bk, wv, bv, wo, bo, g, b)


def init_ffn_params(key, D, scale=0.1):
    ks = jax.random.split(key, 4)
    w1 = jax.random.normal(ks[0], (D, 4 * D), jnp.float32) * scale
    b1 = jax.random.normal(ks[1], (1, 4 * D), jnp.float32) * scale
    w2 = jax.random.normal(ks[2], (4 * D, D), jnp.float32) * scale
    b2 = jax.random.normal(ks[3], (1, D), jnp.float32) * scale
    g = jnp.ones((1, D), jnp.float32)
    b = jnp.zeros((1, D), jnp.float32)
    return (w1, b1, w2, b2, g, b)


if __name__ == "__main__":
    B, Ty, Tx, D, H = 2, 8, 16, 32, 4

    key = jax.random.PRNGKey(0)
    k_x, k_y, k_ms, k_me, k_slf, k_enc, k_ffn = jax.random.split(key, 7)

    x = jax.random.normal(k_x, (B, Tx, D), jnp.float32)          # encoder output
    y = jax.random.normal(k_y, (B, Ty, D), jnp.float32)          # decoder input
    slf_mask = (jax.random.uniform(k_ms, (B, Ty, Ty)) > 0.2).astype(jnp.float32)
    enc_mask = (jax.random.uniform(k_me, (B, Ty, Tx)) > 0.2).astype(jnp.float32)
    # guarantee at least one unmasked key per query row (keeps the additive-bias
    # softmax in the kernel exactly equivalent to masked_fill + softmax)
    slf_mask = slf_mask.at[:, :, 0].set(1.0)
    enc_mask = enc_mask.at[:, :, 0].set(1.0)

    slf_p = init_mha_params(k_slf, D)
    enc_p = init_mha_params(k_enc, D)
    ffn_p = init_ffn_params(k_ffn, D)

    ref = _block_ref(x, y, slf_mask, enc_mask, slf_p, enc_p, ffn_p, H)

    # full-precision path
    out_f32 = transformer_block_ed(x, y, slf_mask, enc_mask, slf_p, enc_p,
                                   ffn_p, H, compute_dtype=jnp.float32)
    out_f32 = jax.block_until_ready(out_f32)
    assert out_f32.shape == (B, Ty, D)
    assert bool(jnp.allclose(out_f32, ref, rtol=2e-3, atol=2e-3)), \
        "f32 kernel mismatch vs reference"

    # bf16-matmul path (f32 accumulate / softmax / LayerNorm) — v6e/v7x fast path
    out_bf16 = transformer_block_ed(x, y, slf_mask, enc_mask, slf_p, enc_p,
                                    ffn_p, H, compute_dtype=jnp.bfloat16)
    out_bf16 = jax.block_until_ready(out_bf16)
    assert bool(jnp.allclose(out_bf16, ref, rtol=6e-2, atol=6e-2)), \
        "bf16 kernel mismatch vs reference"

    print("KERNEL_OK")
</pallas_src>

<mosaic_0001>
module attributes {stable_mosaic.version = 11 : i64} {
  func.func @transformer_block_kernel(%arg0: i32, %arg1: memref<1x8x32xf32, #tpu.memory_space<vmem>>, %arg2: memref<1x16x32xf32, #tpu.memory_space<vmem>>, %arg3: memref<1x8x8xi8, #tpu.memory_space<vmem>>, %arg4: memref<1x8x16xi8, #tpu.memory_space<vmem>>, %arg5: memref<32x96xf32, #tpu.memory_space<vmem>>, %arg6: memref<1x96xf32, #tpu.memory_space<vmem>>, %arg7: memref<32x32xf32, #tpu.memory_space<vmem>>, %arg8: memref<32x32xf32, #tpu.memory_space<vmem>>, %arg9: memref<1x32xf32, #tpu.memory_space<vmem>>, %arg10: memref<1x32xf32, #tpu.memory_space<vmem>>, %arg11: memref<1x32xf32, #tpu.memory_space<vmem>>, %arg12: memref<32x32xf32, #tpu.memory_space<vmem>>, %arg13: memref<1x32xf32, #tpu.memory_space<vmem>>, %arg14: memref<32x64xf32, #tpu.memory_space<vmem>>, %arg15: memref<1x64xf32, #tpu.memory_space<vmem>>, %arg16: memref<32x32xf32, #tpu.memory_space<vmem>>, %arg17: memref<32x32xf32, #tpu.memory_space<vmem>>, %arg18: memref<1x32xf32, #tpu.memory_space<vmem>>, %arg19: memref<1x32xf32, #tpu.memory_space<vmem>>, %arg20: memref<1x32xf32, #tpu.memory_space<vmem>>, %arg21: memref<32x128xf32, #tpu.memory_space<vmem>>, %arg22: memref<1x128xf32, #tpu.memory_space<vmem>>, %arg23: memref<128x32xf32, #tpu.memory_space<vmem>>, %arg24: memref<1x32xf32, #tpu.memory_space<vmem>>, %arg25: memref<1x32xf32, #tpu.memory_space<vmem>>, %arg26: memref<1x32xf32, #tpu.memory_space<vmem>>, %arg27: memref<1x8x32xf32, #tpu.memory_space<vmem>>, %arg28: memref<8x32xf32, #tpu.memory_space<vmem>>) attributes {dimension_semantics = [#tpu.dimension_semantics<parallel>], iteration_bounds = array<i64: 2>, scalar_prefetch = 0 : i64, scratch_operands = 1 : i64, tpu.core_type = #tpu.core_type<tc>, window_params = [{transform_indices = @transform_0, window_bounds = array<i64: 1, 8, 32>}, {transform_indices = @transform_1, window_bounds = array<i64: 1, 16, 32>}, {transform_indices = @transform_2, window_bounds = array<i64: 1, 8, 8>}, {transform_indices = @transform_3, window_bounds = array<i64: 1, 8, 16>}, {pipeline_mode = #tpu.pipeline_mode<synchronous>, transform_indices = @transform_4, window_bounds = array<i64: 32, 96>}, {pipeline_mode = #tpu.pipeline_mode<synchronous>, transform_indices = @transform_5, window_bounds = array<i64: 1, 96>}, {pipeline_mode = #tpu.pipeline_mode<synchronous>, transform_indices = @transform_6, window_bounds = array<i64: 32, 32>}, {pipeline_mode = #tpu.pipeline_mode<synchronous>, transform_indices = @transform_7, window_bounds = array<i64: 32, 32>}, {pipeline_mode = #tpu.pipeline_mode<synchronous>, transform_indices = @transform_8, window_bounds = array<i64: 1, 32>}, {pipeline_mode = #tpu.pipeline_mode<synchronous>, transform_indices = @transform_9, window_bounds = array<i64: 1, 32>}, {pipeline_mode = #tpu.pipeline_mode<synchronous>, transform_indices = @transform_10, window_bounds = array<i64: 1, 32>}, {pipeline_mode = #tpu.pipeline_mode<synchronous>, transform_indices = @transform_11, window_bounds = array<i64: 32, 32>}, {pipeline_mode = #tpu.pipeline_mode<synchronous>, transform_indices = @transform_12, window_bounds = array<i64: 1, 32>}, {pipeline_mode = #tpu.pipeline_mode<synchronous>, transform_indices = @transform_13, window_bounds = array<i64: 32, 64>}, {pipeline_mode = #tpu.pipeline_mode<synchronous>, transform_indices = @transform_14, window_bounds = array<i64: 1, 64>}, {pipeline_mode = #tpu.pipeline_mode<synchronous>, transform_indices = @transform_15, window_bounds = array<i64: 32, 32>}, {pipeline_mode = #tpu.pipeline_mode<synchronous>, transform_indices = @transform_16, window_bounds = array<i64: 32, 32>}, {pipeline_mode = #tpu.pipeline_mode<synchronous>, transform_indices = @transform_17, window_bounds = array<i64: 1, 32>}, {pipeline_mode = #tpu.pipeline_mode<synchronous>, transform_indices = @transform_18, window_bounds = array<i64: 1, 32>}, {pipeline_mode = #tpu.pipeline_mode<synchronous>, transform_indices = @transform_19, window_bounds = array<i64: 1, 32>}, {pipeline_mode = #tpu.pipeline_mode<synchronous>, transform_indices = @transform_20, window_bounds = array<i64: 32, 128>}, {pipeline_mode = #tpu.pipeline_mode<synchronous>, transform_indices = @transform_21, window_bounds = array<i64: 1, 128>}, {pipeline_mode = #tpu.pipeline_mode<synchronous>, transform_indices = @transform_22, window_bounds = array<i64: 128, 32>}, {pipeline_mode = #tpu.pipeline_mode<synchronous>, transform_indices = @transform_23, window_bounds = array<i64: 1, 32>}, {pipeline_mode = #tpu.pipeline_mode<synchronous>, transform_indices = @transform_24, window_bounds = array<i64: 1, 32>}, {pipeline_mode = #tpu.pipeline_mode<synchronous>, transform_indices = @transform_25, window_bounds = array<i64: 1, 32>}, {transform_indices = @transform_26, window_bounds = array<i64: 1, 8, 32>}]} {
    %c0 = arith.constant 0 : index
    %c0_0 = arith.constant 0 : index
    %c0_1 = arith.constant 0 : index
    %0 = vector.load %arg1[%c0, %c0_0, %c0_1] : memref<1x8x32xf32, #tpu.memory_space<vmem>>, vector<1x8x32xf32>
    %1 = vector.shape_cast %0 : vector<1x8x32xf32> to vector<8x32xf32>
    %c0_2 = arith.constant 0 : index
    %c0_3 = arith.constant 0 : index
    %c0_4 = arith.constant 0 : index
    %2 = vector.load %arg2[%c0_2, %c0_3, %c0_4] : memref<1x16x32xf32, #tpu.memory_space<vmem>>, vector<1x16x32xf32>
    %3 = vector.shape_cast %2 : vector<1x16x32xf32> to vector<16x32xf32>
    %c0_5 = arith.constant 0 : index
    %c0_6 = arith.constant 0 : index
    %4 = vector.load %arg5[%c0_5, %c0_6] : memref<32x96xf32, #tpu.memory_space<vmem>>, vector<32x96xf32>
    %cst = arith.constant dense<0.000000e+00> : vector<8x96xf32>
    %5 = tpu.matmul %1, %4, %cst {dimension_numbers = #tpu.dot_dimension_numbers<[1], [0], [0], [1], [0, 0, 1, 1], [], []>} : vector<8x32xf32>, vector<32x96xf32>, vector<8x96xf32> -> vector<8x96xf32>
    %c0_7 = arith.constant 0 : index
    %c0_8 = arith.constant 0 : index
    %6 = vector.load %arg6[%c0_7, %c0_8] : memref<1x96xf32, #tpu.memory_space<vmem>>, vector<1x96xf32>
    %7 = vector.broadcast %6 : vector<1x96xf32> to vector<8x96xf32>
    %8 = arith.addf %5, %7 : vector<8x96xf32>
    %9 = vector.extract_strided_slice %8 {offsets = [0, 0], sizes = [8, 32], strides = [1, 1]} : vector<8x96xf32> to vector<8x32xf32>
    %10 = vector.extract_strided_slice %8 {offsets = [0, 32], sizes = [8, 32], strides = [1, 1]} : vector<8x96xf32> to vector<8x32xf32>
    %11 = vector.extract_strided_slice %8 {offsets = [0, 64], sizes = [8, 32], strides = [1, 1]} : vector<8x96xf32> to vector<8x32xf32>
    %c0_9 = arith.constant 0 : index
    %c0_10 = arith.constant 0 : index
    %c0_11 = arith.constant 0 : index
    %12 = vector.load %arg3[%c0_9, %c0_10, %c0_11] : memref<1x8x8xi8, #tpu.memory_space<vmem>>, vector<1x8x8xi8>
    %13 = vector.shape_cast %12 : vector<1x8x8xi8> to vector<8x8xi8>
    %c0_12 = arith.constant 0 : index
    %c0_13 = arith.constant 0 : index
    %14 = vector.load %arg7[%c0_12, %c0_13] : memref<32x32xf32, #tpu.memory_space<vmem>>, vector<32x32xf32>
    %c0_14 = arith.constant 0 : index
    %c0_15 = arith.constant 0 : index
    %15 = vector.load %arg8[%c0_14, %c0_15] : memref<32x32xf32, #tpu.memory_space<vmem>>, vector<32x32xf32>
    %c0_16 = arith.constant 0 : index
    %c0_17 = arith.constant 0 : index
    %16 = vector.load %arg9[%c0_16, %c0_17] : memref<1x32xf32, #tpu.memory_space<vmem>>, vector<1x32xf32>
    %c0_18 = arith.constant 0 : index
    %c0_19 = arith.constant 0 : index
    %17 = vector.load %arg10[%c0_18, %c0_19] : memref<1x32xf32, #tpu.memory_space<vmem>>, vector<1x32xf32>
    %c0_20 = arith.constant 0 : index
    %c0_21 = arith.constant 0 : index
    %18 = vector.load %arg11[%c0_20, %c0_21] : memref<1x32xf32, #tpu.memory_space<vmem>>, vector<1x32xf32>
    %19 = arith.sitofp %13 : vector<8x8xi8> to vector<8x8xf32>
    %cst_22 = arith.constant 0.000000e+00 : f32
    %20 = vector.broadcast %cst_22 : f32 to vector<8x8xf32>
    %21 = arith.cmpf oeq, %19, %20 : vector<8x8xf32>
    %cst_23 = arith.constant -1.000000e+09 : f32
    %cst_24 = arith.constant 0.000000e+00 : f32
    %22 = vector.broadcast %cst_23 : f32 to vector<8x8xf32>
    %23 = vector.broadcast %cst_24 : f32 to vector<8x8xf32>
    %24 = arith.select %21, %22, %23 : vector<8x8xi1>, vector<8x8xf32>
    %cst_25 = arith.constant dense<0.000000e+00> : vector<8x32xf32>
    %25 = tpu.matmul %1, %14, %cst_25 {dimension_numbers = #tpu.dot_dimension_numbers<[1], [0], [0], [1], [0, 0, 1, 1], [], []>} : vector<8x32xf32>, vector<32x32xf32>, vector<8x32xf32> -> vector<8x32xf32>
    %26 = vector.broadcast %16 : vector<1x32xf32> to vector<8x32xf32>
    %27 = arith.addf %25, %26 : vector<8x32xf32>
    %28 = vector.extract_strided_slice %9 {offsets = [0, 0], sizes = [8, 8], strides = [1, 1]} : vector<8x32xf32> to vector<8x8xf32>
    %29 = vector.extract_strided_slice %10 {offsets = [0, 0], sizes = [8, 8], strides = [1, 1]} : vector<8x32xf32> to vector<8x8xf32>
    %30 = vector.extract_strided_slice %11 {offsets = [0, 0], sizes = [8, 8], strides = [1, 1]} : vector<8x32xf32> to vector<8x8xf32>
    %cst_26 = arith.constant dense<0.000000e+00> : vector<8x8xf32>
    %31 = tpu.matmul %28, %29, %cst_26 {dimension_numbers = #tpu.dot_dimension_numbers<[1], [1], [0], [0], [0, 0, 1, 0], [], []>} : vector<8x8xf32>, vector<8x8xf32>, vector<8x8xf32> -> vector<8x8xf32>
    %cst_27 = arith.constant 0.353553385 : f32
    %32 = vector.broadcast %cst_27 : f32 to vector<8x8xf32>
    %33 = arith.mulf %31, %32 : vector<8x8xf32>
    %34 = arith.addf %33, %24 : vector<8x8xf32>
    %cst_28 = arith.constant dense<0xFF800000> : vector<8xf32>
    %35 = vector.multi_reduction <maximumf>, %34, %cst_28 [1] : vector<8x8xf32> to vector<8xf32>
    %36 = vector.shape_cast %35 : vector<8xf32> to vector<8x1xf32>
    %37 = vector.broadcast %36 : vector<8x1xf32> to vector<8x8xf32>
    %38 = arith.subf %34, %37 : vector<8x8xf32>
    %39 = math.exp %38 : vector<8x8xf32>
    %cst_29 = arith.constant dense<0.000000e+00> : vector<8xf32>
    %40 = vector.multi_reduction <add>, %39, %cst_29 [1] : vector<8x8xf32> to vector<8xf32>
    %41 = vector.shape_cast %40 : vector<8xf32> to vector<8x1xf32>
    %42 = tpu.reciprocal %41 {approx = true} : vector<8x1xf32> -> vector<8x1xf32>
    %43 = vector.broadcast %42 : vector<8x1xf32> to vector<8x8xf32>
    %44 = arith.mulf %39, %43 : vector<8x8xf32>
    %cst_30 = arith.constant dense<0.000000e+00> : vector<8x8xf32>
    %45 = tpu.matmul %44, %30, %cst_30 {dimension_numbers = #tpu.dot_dimension_numbers<[1], [0], [0], [1], [0, 0, 1, 1], [], []>} : vector<8x8xf32>, vector<8x8xf32>, vector<8x8xf32> -> vector<8x8xf32>
    %c0_31 = arith.constant 0 : index
    %c0_32 = arith.constant 0 : index
    %46 = vector.load %arg28[%c0_31, %c0_32] : memref<8x32xf32, #tpu.memory_space<vmem>>, vector<8x8xf32>
    tpu.vector_store %arg28[%c0_31, %c0_32], %45 {strides = array<i32>} : memref<8x32xf32, #tpu.memory_space<vmem>>, vector<8x8xf32>,
    %47 = vector.extract_strided_slice %9 {offsets = [0, 8], sizes = [8, 8], strides = [1, 1]} : vector<8x32xf32> to vector<8x8xf32>
    %48 = vector.extract_strided_slice %10 {offsets = [0, 8], sizes = [8, 8], strides = [1, 1]} : vector<8x32xf32> to vector<8x8xf32>
    %49 = vector.extract_strided_slice %11 {offsets = [0, 8], sizes = [8, 8], strides = [1, 1]} : vector<8x32xf32> to vector<8x8xf32>
    %cst_33 = arith.constant dense<0.000000e+00> : vector<8x8xf32>
    %50 = tpu.matmul %47, %48, %cst_33 {dimension_numbers = #tpu.dot_dimension_numbers<[1], [1], [0], [0], [0, 0, 1, 0], [], []>} : vector<8x8xf32>, vector<8x8xf32>, vector<8x8xf32> -> vector<8x8xf32>
    %cst_34 = arith.constant 0.353553385 : f32
    %51 = vector.broadcast %cst_34 : f32 to vector<8x8xf32>
    %52 = arith.mulf %50, %51 : vector<8x8xf32>
    %53 = arith.addf %52, %24 : vector<8x8xf32>
    %cst_35 = arith.constant dense<0xFF800000> : vector<8xf32>
    %54 = vector.multi_reduction <maximumf>, %53, %cst_35 [1] : vector<8x8xf32> to vector<8xf32>
    %55 = vector.shape_cast %54 : vector<8xf32> to vector<8x1xf32>
    %56 = vector.broadcast %55 : vector<8x1xf32> to vector<8x8xf32>
    %57 = arith.subf %53, %56 : vector<8x8xf32>
    %58 = math.exp %57 : vector<8x8xf32>
    %cst_36 = arith.constant dense<0.000000e+00> : vector<8xf32>
    %59 = vector.multi_reduction <add>, %58, %cst_36 [1] : vector<8x8xf32> to vector<8xf32>
    %60 = vector.shape_cast %59 : vector<8xf32> to vector<8x1xf32>
    %61 = tpu.reciprocal %60 {approx = true} : vector<8x1xf32> -> vector<8x1xf32>
    %62 = vector.broadcast %61 : vector<8x1xf32> to vector<8x8xf32>
    %63 = arith.mulf %58, %62 : vector<8x8xf32>
    %cst_37 = arith.constant dense<0.000000e+00> : vector<8x8xf32>
    %64 = tpu.matmul %63, %49, %cst_37 {dimension_numbers = #tpu.dot_dimension_numbers<[1], [0], [0], [1], [0, 0, 1, 1], [], []>} : vector<8x8xf32>, vector<8x8xf32>, vector<8x8xf32> -> vector<8x8xf32>
    %c0_38 = arith.constant 0 : index
    %c8 = arith.constant 8 : index
    %65 = vector.load %arg28[%c0_38, %c8] : memref<8x32xf32, #tpu.memory_space<vmem>>, vector<8x8xf32>
    tpu.vector_store %arg28[%c0_38, %c8], %64 {strides = array<i32>} : memref<8x32xf32, #tpu.memory_space<vmem>>, vector<8x8xf32>,
    %66 = vector.extract_strided_slice %9 {offsets = [0, 16], sizes = [8, 8], strides = [1, 1]} : vector<8x32xf32> to vector<8x8xf32>
    %67 = vector.extract_strided_slice %10 {offsets = [0, 16], sizes = [8, 8], strides = [1, 1]} : vector<8x32xf32> to vector<8x8xf32>
    %68 = vector.extract_strided_slice %11 {offsets = [0, 16], sizes = [8, 8], strides = [1, 1]} : vector<8x32xf32> to vector<8x8xf32>
    %cst_39 = arith.constant dense<0.000000e+00> : vector<8x8xf32>
    %69 = tpu.matmul %66, %67, %cst_39 {dimension_numbers = #tpu.dot_dimension_numbers<[1], [1], [0], [0], [0, 0, 1, 0], [], []>} : vector<8x8xf32>, vector<8x8xf32>, vector<8x8xf32> -> vector<8x8xf32>
    %cst_40 = arith.constant 0.353553385 : f32
    %70 = vector.broadcast %cst_40 : f32 to vector<8x8xf32>
    %71 = arith.mulf %69, %70 : vector<8x8xf32>
    %72 = arith.addf %71, %24 : vector<8x8xf32>
    %cst_41 = arith.constant dense<0xFF800000> : vector<8xf32>
    %73 = vector.multi_reduction <maximumf>, %72, %cst_41 [1] : vector<8x8xf32> to vector<8xf32>
    %74 = vector.shape_cast %73 : vector<8xf32> to vector<8x1xf32>
    %75 = vector.broadcast %74 : vector<8x1xf32> to vector<8x8xf32>
    %76 = arith.subf %72, %75 : vector<8x8xf32>
    %77 = math.exp %76 : vector<8x8xf32>
    %cst_42 = arith.constant dense<0.000000e+00> : vector<8xf32>
    %78 = vector.multi_reduction <add>, %77, %cst_42 [1] : vector<8x8xf32> to vector<8xf32>
    %79 = vector.shape_cast %78 : vector<8xf32> to vector<8x1xf32>
    %80 = tpu.reciprocal %79 {approx = true} : vector<8x1xf32> -> vector<8x1xf32>
    %81 = vector.broadcast %80 : vector<8x1xf32> to vector<8x8xf32>
    %82 = arith.mulf %77, %81 : vector<8x8xf32>
    %cst_43 = arith.constant dense<0.000000e+00> : vector<8x8xf32>
    %83 = tpu.matmul %82, %68, %cst_43 {dimension_numbers = #tpu.dot_dimension_numbers<[1], [0], [0], [1], [0, 0, 1, 1], [], []>} : vector<8x8xf32>, vector<8x8xf32>, vector<8x8xf32> -> vector<8x8xf32>
    %c0_44 = arith.constant 0 : index
    %c16 = arith.constant 16 : index
    %84 = vector.load %arg28[%c0_44, %c16] : memref<8x32xf32, #tpu.memory_space<vmem>>, vector<8x8xf32>
    tpu.vector_store %arg28[%c0_44, %c16], %83 {strides = array<i32>} : memref<8x32xf32, #tpu.memory_space<vmem>>, vector<8x8xf32>,
    %85 = vector.extract_strided_slice %9 {offsets = [0, 24], sizes = [8, 8], strides = [1, 1]} : vector<8x32xf32> to vector<8x8xf32>
    %86 = vector.extract_strided_slice %10 {offsets = [0, 24], sizes = [8, 8], strides = [1, 1]} : vector<8x32xf32> to vector<8x8xf32>
    %87 = vector.extract_strided_slice %11 {offsets = [0, 24], sizes = [8, 8], strides = [1, 1]} : vector<8x32xf32> to vector<8x8xf32>
    %cst_45 = arith.constant dense<0.000000e+00> : vector<8x8xf32>
    %88 = tpu.matmul %85, %86, %cst_45 {dimension_numbers = #tpu.dot_dimension_numbers<[1], [1], [0], [0], [0, 0, 1, 0], [], []>} : vector<8x8xf32>, vector<8x8xf32>, vector<8x8xf32> -> vector<8x8xf32>
    %cst_46 = arith.constant 0.353553385 : f32
    %89 = vector.broadcast %cst_46 : f32 to vector<8x8xf32>
    %90 = arith.mulf %88, %89 : vector<8x8xf32>
    %91 = arith.addf %90, %24 : vector<8x8xf32>
    %cst_47 = arith.constant dense<0xFF800000> : vector<8xf32>
    %92 = vector.multi_reduction <maximumf>, %91, %cst_47 [1] : vector<8x8xf32> to vector<8xf32>
    %93 = vector.shape_cast %92 : vector<8xf32> to vector<8x1xf32>
    %94 = vector.broadcast %93 : vector<8x1xf32> to vector<8x8xf32>
    %95 = arith.subf %91, %94 : vector<8x8xf32>
    %96 = math.exp %95 : vector<8x8xf32>
    %cst_48 = arith.constant dense<0.000000e+00> : vector<8xf32>
    %97 = vector.multi_reduction <add>, %96, %cst_48 [1] : vector<8x8xf32> to vector<8xf32>
    %98 = vector.shape_cast %97 : vector<8xf32> to vector<8x1xf32>
    %99 = tpu.reciprocal %98 {approx = true} : vector<8x1xf32> -> vector<8x1xf32>
    %100 = vector.broadcast %99 : vector<8x1xf32> to vector<8x8xf32>
    %101 = arith.mulf %96, %100 : vector<8x8xf32>
    %cst_49 = arith.constant dense<0.000000e+00> : vector<8x8xf32>
    %102 = tpu.matmul %101, %87, %cst_49 {dimension_numbers = #tpu.dot_dimension_numbers<[1], [0], [0], [1], [0, 0, 1, 1], [], []>} : vector<8x8xf32>, vector<8x8xf32>, vector<8x8xf32> -> vector<8x8xf32>
    %c0_50 = arith.constant 0 : index
    %c24 = arith.constant 24 : index
    %103 = vector.load %arg28[%c0_50, %c24] : memref<8x32xf32, #tpu.memory_space<vmem>>, vector<8x8xf32>
    tpu.vector_store %arg28[%c0_50, %c24], %102 {strides = array<i32>} : memref<8x32xf32, #tpu.memory_space<vmem>>, vector<8x8xf32>,
    %c0_51 = arith.constant 0 : index
    %c0_52 = arith.constant 0 : index
    %104 = vector.load %arg28[%c0_51, %c0_52] : memref<8x32xf32, #tpu.memory_space<vmem>>, vector<8x32xf32>
    %cst_53 = arith.constant dense<0.000000e+00> : vector<8x32xf32>
    %105 = tpu.matmul %104, %15, %cst_53 {dimension_numbers = #tpu.dot_dimension_numbers<[1], [0], [0], [1], [0, 0, 1, 1], [], []>} : vector<8x32xf32>, vector<32x32xf32>, vector<8x32xf32> -> vector<8x32xf32>
    %106 = arith.addf %27, %105 : vector<8x32xf32>
    %107 = arith.addf %106, %1 : vector<8x32xf32>
    %cst_54 = arith.constant dense<0.000000e+00> : vector<8xf32>
    %108 = vector.multi_reduction <add>, %107, %cst_54 [1] : vector<8x32xf32> to vector<8xf32>
    %109 = vector.shape_cast %108 : vector<8xf32> to vector<8x1xf32>
    %cst_55 = arith.constant 3.200000e+01 : f32
    %110 = vector.broadcast %cst_55 : f32 to vector<8x1xf32>
    %111 = arith.divf %109, %110 : vector<8x1xf32>
    %112 = vector.broadcast %111 : vector<8x1xf32> to vector<8x32xf32>
    %113 = arith.subf %107, %112 : vector<8x32xf32>
    %114 = arith.mulf %113, %113 : vector<8x32xf32>
    %cst_56 = arith.constant dense<0.000000e+00> : vector<8xf32>
    %115 = vector.multi_reduction <add>, %114, %cst_56 [1] : vector<8x32xf32> to vector<8xf32>
    %116 = vector.shape_cast %115 : vector<8xf32> to vector<8x1xf32>
    %cst_57 = arith.constant 3.200000e+01 : f32
    %117 = vector.broadcast %cst_57 : f32 to vector<8x1xf32>
    %118 = arith.divf %116, %117 : vector<8x1xf32>
    %119 = vector.broadcast %111 : vector<8x1xf32> to vector<8x32xf32>
    %120 = arith.subf %107, %119 : vector<8x32xf32>
    %cst_58 = arith.constant 9.99999974E-6 : f32
    %121 = vector.broadcast %cst_58 : f32 to vector<8x1xf32>
    %122 = arith.addf %118, %121 : vector<8x1xf32>
    %123 = math.rsqrt %122 : vector<8x1xf32>
    %124 = vector.broadcast %123 : vector<8x1xf32> to vector<8x32xf32>
    %125 = arith.mulf %120, %124 : vector<8x32xf32>
    %126 = vector.broadcast %17 : vector<1x32xf32> to vector<8x32xf32>
    %127 = arith.mulf %125, %126 : vector<8x32xf32>
    %128 = vector.broadcast %18 : vector<1x32xf32> to vector<8x32xf32>
    %129 = arith.addf %127, %128 : vector<8x32xf32>
    %c0_59 = arith.constant 0 : index
    %c0_60 = arith.constant 0 : index
    %130 = vector.load %arg12[%c0_59, %c0_60] : memref<32x32xf32, #tpu.memory_space<vmem>>, vector<32x32xf32>
    %cst_61 = arith.constant dense<0.000000e+00> : vector<8x32xf32>
    %131 = tpu.matmul %129, %130, %cst_61 {dimension_numbers = #tpu.dot_dimension_numbers<[1], [0], [0], [1], [0, 0, 1, 1], [], []>} : vector<8x32xf32>, vector<32x32xf32>, vector<8x32xf32> -> vector<8x32xf32>
    %c0_62 = arith.constant 0 : index
    %c0_63 = arith.constant 0 : index
    %132 = vector.load %arg13[%c0_62, %c0_63] : memref<1x32xf32, #tpu.memory_space<vmem>>, vector<1x32xf32>
    %133 = vector.broadcast %132 : vector<1x32xf32> to vector<8x32xf32>
    %134 = arith.addf %131, %133 : vector<8x32xf32>
    %c0_64 = arith.constant 0 : index
    %c0_65 = arith.constant 0 : index
    %135 = vector.load %arg14[%c0_64, %c0_65] : memref<32x64xf32, #tpu.memory_space<vmem>>, vector<32x64xf32>
    %cst_66 = arith.constant dense<0.000000e+00> : vector<16x64xf32>
    %136 = tpu.matmul %3, %135, %cst_66 {dimension_numbers = #tpu.dot_dimension_numbers<[1], [0], [0], [1], [0, 0, 1, 1], [], []>} : vector<16x32xf32>, vector<32x64xf32>, vector<16x64xf32> -> vector<16x64xf32>
    %c0_67 = arith.constant 0 : index
    %c0_68 = arith.constant 0 : index
    %137 = vector.load %arg15[%c0_67, %c0_68] : memref<1x64xf32, #tpu.memory_space<vmem>>, vector<1x64xf32>
    %138 = vector.broadcast %137 : vector<1x64xf32> to vector<16x64xf32>
    %139 = arith.addf %136, %138 : vector<16x64xf32>
    %140 = vector.extract_strided_slice %139 {offsets = [0, 0], sizes = [16, 32], strides = [1, 1]} : vector<16x64xf32> to vector<16x32xf32>
    %141 = vector.extract_strided_slice %139 {offsets = [0, 32], sizes = [16, 32], strides = [1, 1]} : vector<16x64xf32> to vector<16x32xf32>
    %c0_69 = arith.constant 0 : index
    %c0_70 = arith.constant 0 : index
    %c0_71 = arith.constant 0 : index
    %142 = vector.load %arg4[%c0_69, %c0_70, %c0_71] : memref<1x8x16xi8, #tpu.memory_space<vmem>>, vector<1x8x16xi8>
    %143 = vector.shape_cast %142 : vector<1x8x16xi8> to vector<8x16xi8>
    %c0_72 = arith.constant 0 : index
    %c0_73 = arith.constant 0 : index
    %144 = vector.load %arg16[%c0_72, %c0_73] : memref<32x32xf32, #tpu.memory_space<vmem>>, vector<32x32xf32>
    %c0_74 = arith.constant 0 : index
    %c0_75 = arith.constant 0 : index
    %145 = vector.load %arg17[%c0_74, %c0_75] : memref<32x32xf32, #tpu.memory_space<vmem>>, vector<32x32xf32>
    %c0_76 = arith.constant 0 : index
    %c0_77 = arith.constant 0 : index
    %146 = vector.load %arg18[%c0_76, %c0_77] : memref<1x32xf32, #tpu.memory_space<vmem>>, vector<1x32xf32>
    %c0_78 = arith.constant 0 : index
    %c0_79 = arith.constant 0 : index
    %147 = vector.load %arg19[%c0_78, %c0_79] : memref<1x32xf32, #tpu.memory_space<vmem>>, vector<1x32xf32>
    %c0_80 = arith.constant 0 : index
    %c0_81 = arith.constant 0 : index
    %148 = vector.load %arg20[%c0_80, %c0_81] : memref<1x32xf32, #tpu.memory_space<vmem>>, vector<1x32xf32>
    %149 = arith.sitofp %143 : vector<8x16xi8> to vector<8x16xf32>
    %cst_82 = arith.constant 0.000000e+00 : f32
    %150 = vector.broadcast %cst_82 : f32 to vector<8x16xf32>
    %151 = arith.cmpf oeq, %149, %150 : vector<8x16xf32>
    %cst_83 = arith.constant -1.000000e+09 : f32
    %cst_84 = arith.constant 0.000000e+00 : f32
    %152 = vector.broadcast %cst_83 : f32 to vector<8x16xf32>
    %153 = vector.broadcast %cst_84 : f32 to vector<8x16xf32>
    %154 = arith.select %151, %152, %153 : vector<8x16xi1>, vector<8x16xf32>
    %cst_85 = arith.constant dense<0.000000e+00> : vector<8x32xf32>
    %155 = tpu.matmul %129, %144, %cst_85 {dimension_numbers = #tpu.dot_dimension_numbers<[1], [0], [0], [1], [0, 0, 1, 1], [], []>} : vector<8x32xf32>, vector<32x32xf32>, vector<8x32xf32> -> vector<8x32xf32>
    %156 = vector.broadcast %146 : vector<1x32xf32> to vector<8x32xf32>
    %157 = arith.addf %155, %156 : vector<8x32xf32>
    %158 = vector.extract_strided_slice %134 {offsets = [0, 0], sizes = [8, 8], strides = [1, 1]} : vector<8x32xf32> to vector<8x8xf32>
    %159 = vector.extract_strided_slice %140 {offsets = [0, 0], sizes = [16, 8], strides = [1, 1]} : vector<16x32xf32> to vector<16x8xf32>
    %160 = vector.extract_strided_slice %141 {offsets = [0, 0], sizes = [16, 8], strides = [1, 1]} : vector<16x32xf32> to vector<16x8xf32>
    %cst_86 = arith.constant dense<0.000000e+00> : vector<8x16xf32>
    %161 = tpu.matmul %158, %159, %cst_86 {dimension_numbers = #tpu.dot_dimension_numbers<[1], [1], [0], [0], [0, 0, 1, 0], [], []>} : vector<8x8xf32>, vector<16x8xf32>, vector<8x16xf32> -> vector<8x16xf32>
    %cst_87 = arith.constant 0.353553385 : f32
    %162 = vector.broadcast %cst_87 : f32 to vector<8x16xf32>
    %163 = arith.mulf %161, %162 : vector<8x16xf32>
    %164 = arith.addf %163, %154 : vector<8x16xf32>
    %cst_88 = arith.constant dense<0xFF800000> : vector<8xf32>
    %165 = vector.multi_reduction <maximumf>, %164, %cst_88 [1] : vector<8x16xf32> to vector<8xf32>
    %166 = vector.shape_cast %165 : vector<8xf32> to vector<8x1xf32>
    %167 = vector.broadcast %166 : vector<8x1xf32> to vector<8x16xf32>
    %168 = arith.subf %164, %167 : vector<8x16xf32>
    %169 = math.exp %168 : vector<8x16xf32>
    %cst_89 = arith.constant dense<0.000000e+00> : vector<8xf32>
    %170 = vector.multi_reduction <add>, %169, %cst_89 [1] : vector<8x16xf32> to vector<8xf32>
    %171 = vector.shape_cast %170 : vector<8xf32> to vector<8x1xf32>
    %172 = tpu.reciprocal %171 {approx = true} : vector<8x1xf32> -> vector<8x1xf32>
    %173 = vector.broadcast %172 : vector<8x1xf32> to vector<8x16xf32>
    %174 = arith.mulf %169, %173 : vector<8x16xf32>
    %cst_90 = arith.constant dense<0.000000e+00> : vector<8x8xf32>
    %175 = tpu.matmul %174, %160, %cst_90 {dimension_numbers = #tpu.dot_dimension_numbers<[1], [0], [0], [1], [0, 0, 1, 1], [], []>} : vector<8x16xf32>, vector<16x8xf32>, vector<8x8xf32> -> vector<8x8xf32>
    %c0_91 = arith.constant 0 : index
    %c0_92 = arith.constant 0 : index
    %176 = vector.load %arg28[%c0_91, %c0_92] : memref<8x32xf32, #tpu.memory_space<vmem>>, vector<8x8xf32>
    tpu.vector_store %arg28[%c0_91, %c0_92], %175 {strides = array<i32>} : memref<8x32xf32, #tpu.memory_space<vmem>>, vector<8x8xf32>,
    %177 = vector.extract_strided_slice %134 {offsets = [0, 8], sizes = [8, 8], strides = [1, 1]} : vector<8x32xf32> to vector<8x8xf32>
    %178 = vector.extract_strided_slice %140 {offsets = [0, 8], sizes = [16, 8], strides = [1, 1]} : vector<16x32xf32> to vector<16x8xf32>
    %179 = vector.extract_strided_slice %141 {offsets = [0, 8], sizes = [16, 8], strides = [1, 1]} : vector<16x32xf32> to vector<16x8xf32>
    %cst_93 = arith.constant dense<0.000000e+00> : vector<8x16xf32>
    %180 = tpu.matmul %177, %178, %cst_93 {dimension_numbers = #tpu.dot_dimension_numbers<[1], [1], [0], [0], [0, 0, 1, 0], [], []>} : vector<8x8xf32>, vector<16x8xf32>, vector<8x16xf32> -> vector<8x16xf32>
    %cst_94 = arith.constant 0.353553385 : f32
    %181 = vector.broadcast %cst_94 : f32 to vector<8x16xf32>
    %182 = arith.mulf %180, %181 : vector<8x16xf32>
    %183 = arith.addf %182, %154 : vector<8x16xf32>
    %cst_95 = arith.constant dense<0xFF800000> : vector<8xf32>
    %184 = vector.multi_reduction <maximumf>, %183, %cst_95 [1] : vector<8x16xf32> to vector<8xf32>
    %185 = vector.shape_cast %184 : vector<8xf32> to vector<8x1xf32>
    %186 = vector.broadcast %185 : vector<8x1xf32> to vector<8x16xf32>
    %187 = arith.subf %183, %186 : vector<8x16xf32>
    %188 = math.exp %187 : vector<8x16xf32>
    %cst_96 = arith.constant dense<0.000000e+00> : vector<8xf32>
    %189 = vector.multi_reduction <add>, %188, %cst_96 [1] : vector<8x16xf32> to vector<8xf32>
    %190 = vector.shape_cast %189 : vector<8xf32> to vector<8x1xf32>
    %191 = tpu.reciprocal %190 {approx = true} : vector<8x1xf32> -> vector<8x1xf32>
    %192 = vector.broadcast %191 : vector<8x1xf32> to vector<8x16xf32>
    %193 = arith.mulf %188, %192 : vector<8x16xf32>
    %cst_97 = arith.constant dense<0.000000e+00> : vector<8x8xf32>
    %194 = tpu.matmul %193, %179, %cst_97 {dimension_numbers = #tpu.dot_dimension_numbers<[1], [0], [0], [1], [0, 0, 1, 1], [], []>} : vector<8x16xf32>, vector<16x8xf32>, vector<8x8xf32> -> vector<8x8xf32>
    %c0_98 = arith.constant 0 : index
    %c8_99 = arith.constant 8 : index
    %195 = vector.load %arg28[%c0_98, %c8_99] : memref<8x32xf32, #tpu.memory_space<vmem>>, vector<8x8xf32>
    tpu.vector_store %arg28[%c0_98, %c8_99], %194 {strides = array<i32>} : memref<8x32xf32, #tpu.memory_space<vmem>>, vector<8x8xf32>,
    %196 = vector.extract_strided_slice %134 {offsets = [0, 16], sizes = [8, 8], strides = [1, 1]} : vector<8x32xf32> to vector<8x8xf32>
    %197 = vector.extract_strided_slice %140 {offsets = [0, 16], sizes = [16, 8], strides = [1, 1]} : vector<16x32xf32> to vector<16x8xf32>
    %198 = vector.extract_strided_slice %141 {offsets = [0, 16], sizes = [16, 8], strides = [1, 1]} : vector<16x32xf32> to vector<16x8xf32>
    %cst_100 = arith.constant dense<0.000000e+00> : vector<8x16xf32>
    %199 = tpu.matmul %196, %197, %cst_100 {dimension_numbers = #tpu.dot_dimension_numbers<[1], [1], [0], [0], [0, 0, 1, 0], [], []>} : vector<8x8xf32>, vector<16x8xf32>, vector<8x16xf32> -> vector<8x16xf32>
    %cst_101 = arith.constant 0.353553385 : f32
    %200 = vector.broadcast %cst_101 : f32 to vector<8x16xf32>
    %201 = arith.mulf %199, %200 : vector<8x16xf32>
    %202 = arith.addf %201, %154 : vector<8x16xf32>
    %cst_102 = arith.constant dense<0xFF800000> : vector<8xf32>
    %203 = vector.multi_reduction <maximumf>, %202, %cst_102 [1] : vector<8x16xf32> to vector<8xf32>
    %204 = vector.shape_cast %203 : vector<8xf32> to vector<8x1xf32>
    %205 = vector.broadcast %204 : vector<8x1xf32> to vector<8x16xf32>
    %206 = arith.subf %202, %205 : vector<8x16xf32>
    %207 = math.exp %206 : vector<8x16xf32>
    %cst_103 = arith.constant dense<0.000000e+00> : vector<8xf32>
    %208 = vector.multi_reduction <add>, %207, %cst_103 [1] : vector<8x16xf32> to vector<8xf32>
    %209 = vector.shape_cast %208 : vector<8xf32> to vector<8x1xf32>
    %210 = tpu.reciprocal %209 {approx = true} : vector<8x1xf32> -> vector<8x1xf32>
    %211 = vector.broadcast %210 : vector<8x1xf32> to vector<8x16xf32>
    %212 = arith.mulf %207, %211 : vector<8x16xf32>
    %cst_104 = arith.constant dense<0.000000e+00> : vector<8x8xf32>
    %213 = tpu.matmul %212, %198, %cst_104 {dimension_numbers = #tpu.dot_dimension_numbers<[1], [0], [0], [1], [0, 0, 1, 1], [], []>} : vector<8x16xf32>, vector<16x8xf32>, vector<8x8xf32> -> vector<8x8xf32>
    %c0_105 = arith.constant 0 : index
    %c16_106 = arith.constant 16 : index
    %214 = vector.load %arg28[%c0_105, %c16_106] : memref<8x32xf32, #tpu.memory_space<vmem>>, vector<8x8xf32>
    tpu.vector_store %arg28[%c0_105, %c16_106], %213 {strides = array<i32>} : memref<8x32xf32, #tpu.memory_space<vmem>>, vector<8x8xf32>,
    %215 = vector.extract_strided_slice %134 {offsets = [0, 24], sizes = [8, 8], strides = [1, 1]} : vector<8x32xf32> to vector<8x8xf32>
    %216 = vector.extract_strided_slice %140 {offsets = [0, 24], sizes = [16, 8], strides = [1, 1]} : vector<16x32xf32> to vector<16x8xf32>
    %217 = vector.extract_strided_slice %141 {offsets = [0, 24], sizes = [16, 8], strides = [1, 1]} : vector<16x32xf32> to vector<16x8xf32>
    %cst_107 = arith.constant dense<0.000000e+00> : vector<8x16xf32>
    %218 = tpu.matmul %215, %216, %cst_107 {dimension_numbers = #tpu.dot_dimension_numbers<[1], [1], [0], [0], [0, 0, 1, 0], [], []>} : vector<8x8xf32>, vector<16x8xf32>, vector<8x16xf32> -> vector<8x16xf32>
    %cst_108 = arith.constant 0.353553385 : f32
    %219 = vector.broadcast %cst_108 : f32 to vector<8x16xf32>
    %220 = arith.mulf %218, %219 : vector<8x16xf32>
    %221 = arith.addf %220, %154 : vector<8x16xf32>
    %cst_109 = arith.constant dense<0xFF800000> : vector<8xf32>
    %222 = vector.multi_reduction <maximumf>, %221, %cst_109 [1] : vector<8x16xf32> to vector<8xf32>
    %223 = vector.shape_cast %222 : vector<8xf32> to vector<8x1xf32>
    %224 = vector.broadcast %223 : vector<8x1xf32> to vector<8x16xf32>
    %225 = arith.subf %221, %224 : vector<8x16xf32>
    %226 = math.exp %225 : vector<8x16xf32>
    %cst_110 = arith.constant dense<0.000000e+00> : vector<8xf32>
    %227 = vector.multi_reduction <add>, %226, %cst_110 [1] : vector<8x16xf32> to vector<8xf32>
    %228 = vector.shape_cast %227 : vector<8xf32> to vector<8x1xf32>
    %229 = tpu.reciprocal %228 {approx = true} : vector<8x1xf32> -> vector<8x1xf32>
    %230 = vector.broadcast %229 : vector<8x1xf32> to vector<8x16xf32>
    %231 = arith.mulf %226, %230 : vector<8x16xf32>
    %cst_111 = arith.constant dense<0.000000e+00> : vector<8x8xf32>
    %232 = tpu.matmul %231, %217, %cst_111 {dimension_numbers = #tpu.dot_dimension_numbers<[1], [0], [0], [1], [0, 0, 1, 1], [], []>} : vector<8x16xf32>, vector<16x8xf32>, vector<8x8xf32> -> vector<8x8xf32>
    %c0_112 = arith.constant 0 : index
    %c24_113 = arith.constant 24 : index
    %233 = vector.load %arg28[%c0_112, %c24_113] : memref<8x32xf32, #tpu.memory_space<vmem>>, vector<8x8xf32>
    tpu.vector_store %arg28[%c0_112, %c24_113], %232 {strides = array<i32>} : memref<8x32xf32, #tpu.memory_space<vmem>>, vector<8x8xf32>,
    %c0_114 = arith.constant 0 : index
    %c0_115 = arith.constant 0 : index
    %234 = vector.load %arg28[%c0_114, %c0_115] : memref<8x32xf32, #tpu.memory_space<vmem>>, vector<8x32xf32>
    %cst_116 = arith.constant dense<0.000000e+00> : vector<8x32xf32>
    %235 = tpu.matmul %234, %145, %cst_116 {dimension_numbers = #tpu.dot_dimension_numbers<[1], [0], [0], [1], [0, 0, 1, 1], [], []>} : vector<8x32xf32>, vector<32x32xf32>, vector<8x32xf32> -> vector<8x32xf32>
    %236 = arith.addf %157, %235 : vector<8x32xf32>
    %237 = arith.addf %236, %129 : vector<8x32xf32>
    %cst_117 = arith.constant dense<0.000000e+00> : vector<8xf32>
    %238 = vector.multi_reduction <add>, %237, %cst_117 [1] : vector<8x32xf32> to vector<8xf32>
    %239 = vector.shape_cast %238 : vector<8xf32> to vector<8x1xf32>
    %cst_118 = arith.constant 3.200000e+01 : f32
    %240 = vector.broadcast %cst_118 : f32 to vector<8x1xf32>
    %241 = arith.divf %239, %240 : vector<8x1xf32>
    %242 = vector.broadcast %241 : vector<8x1xf32> to vector<8x32xf32>
    %243 = arith.subf %237, %242 : vector<8x32xf32>
    %244 = arith.mulf %243, %243 : vector<8x32xf32>
    %cst_119 = arith.constant dense<0.000000e+00> : vector<8xf32>
    %245 = vector.multi_reduction <add>, %244, %cst_119 [1] : vector<8x32xf32> to vector<8xf32>
    %246 = vector.shape_cast %245 : vector<8xf32> to vector<8x1xf32>
    %cst_120 = arith.constant 3.200000e+01 : f32
    %247 = vector.broadcast %cst_120 : f32 to vector<8x1xf32>
    %248 = arith.divf %246, %247 : vector<8x1xf32>
    %249 = vector.broadcast %241 : vector<8x1xf32> to vector<8x32xf32>
    %250 = arith.subf %237, %249 : vector<8x32xf32>
    %cst_121 = arith.constant 9.99999974E-6 : f32
    %251 = vector.broadcast %cst_121 : f32 to vector<8x1xf32>
    %252 = arith.addf %248, %251 : vector<8x1xf32>
    %253 = math.rsqrt %252 : vector<8x1xf32>
    %254 = vector.broadcast %253 : vector<8x1xf32> to vector<8x32xf32>
    %255 = arith.mulf %250, %254 : vector<8x32xf32>
    %256 = vector.broadcast %147 : vector<1x32xf32> to vector<8x32xf32>
    %257 = arith.mulf %255, %256 : vector<8x32xf32>
    %258 = vector.broadcast %148 : vector<1x32xf32> to vector<8x32xf32>
    %259 = arith.addf %257, %258 : vector<8x32xf32>
    %c0_122 = arith.constant 0 : index
    %c0_123 = arith.constant 0 : index
    %260 = vector.load %arg21[%c0_122, %c0_123] : memref<32x128xf32, #tpu.memory_space<vmem>>, vector<32x128xf32>
    %cst_124 = arith.constant dense<0.000000e+00> : vector<8x128xf32>
    %261 = tpu.matmul %259, %260, %cst_124 {dimension_numbers = #tpu.dot_dimension_numbers<[1], [0], [0], [1], [0, 0, 1, 1], [], []>} : vector<8x32xf32>, vector<32x128xf32>, vector<8x128xf32> -> vector<8x128xf32>
    %c0_125 = arith.constant 0 : index
    %c0_126 = arith.constant 0 : index
    %262 = vector.load %arg22[%c0_125, %c0_126] : memref<1x128xf32, #tpu.memory_space<vmem>>, vector<1x128xf32>
    %263 = vector.broadcast %262 : vector<1x128xf32> to vector<8x128xf32>
    %264 = arith.addf %261, %263 : vector<8x128xf32>
    %cst_127 = arith.constant 0.000000e+00 : f32
    %265 = vector.broadcast %cst_127 : f32 to vector<8x128xf32>
    %266 = arith.cmpf oge, %264, %265 : vector<8x128xf32>
    %cst_128 = arith.constant 2.000000e-01 : f32
    %267 = vector.broadcast %cst_128 : f32 to vector<8x128xf32>
    %268 = arith.mulf %267, %264 : vector<8x128xf32>
    %269 = arith.select %266, %264, %268 : vector<8x128xi1>, vector<8x128xf32>
    %c0_129 = arith.constant 0 : index
    %c0_130 = arith.constant 0 : index
    %270 = vector.load %arg23[%c0_129, %c0_130] : memref<128x32xf32, #tpu.memory_space<vmem>>, vector<128x32xf32>
    %cst_131 = arith.constant dense<0.000000e+00> : vector<8x32xf32>
    %271 = tpu.matmul %269, %270, %cst_131 {dimension_numbers = #tpu.dot_dimension_numbers<[1], [0], [0], [1], [0, 0, 1, 1], [], []>} : vector<8x128xf32>, vector<128x32xf32>, vector<8x32xf32> -> vector<8x32xf32>
    %c0_132 = arith.constant 0 : index
    %c0_133 = arith.constant 0 : index
    %272 = vector.load %arg24[%c0_132, %c0_133] : memref<1x32xf32, #tpu.memory_space<vmem>>, vector<1x32xf32>
    %273 = vector.broadcast %272 : vector<1x32xf32> to vector<8x32xf32>
    %274 = arith.addf %271, %273 : vector<8x32xf32>
    %275 = arith.addf %274, %259 : vector<8x32xf32>
    %c0_134 = arith.constant 0 : index
    %c0_135 = arith.constant 0 : index
    %276 = vector.load %arg25[%c0_134, %c0_135] : memref<1x32xf32, #tpu.memory_space<vmem>>, vector<1x32xf32>
    %c0_136 = arith.constant 0 : index
    %c0_137 = arith.constant 0 : index
    %277 = vector.load %arg26[%c0_136, %c0_137] : memref<1x32xf32, #tpu.memory_space<vmem>>, vector<1x32xf32>
    %cst_138 = arith.constant dense<0.000000e+00> : vector<8xf32>
    %278 = vector.multi_reduction <add>, %275, %cst_138 [1] : vector<8x32xf32> to vector<8xf32>
    %279 = vector.shape_cast %278 : vector<8xf32> to vector<8x1xf32>
    %cst_139 = arith.constant 3.200000e+01 : f32
    %280 = vector.broadcast %cst_139 : f32 to vector<8x1xf32>
    %281 = arith.divf %279, %280 : vector<8x1xf32>
    %282 = vector.broadcast %281 : vector<8x1xf32> to vector<8x32xf32>
    %283 = arith.subf %275, %282 : vector<8x32xf32>
    %284 = arith.mulf %283, %283 : vector<8x32xf32>
    %cst_140 = arith.constant dense<0.000000e+00> : vector<8xf32>
    %285 = vector.multi_reduction <add>, %284, %cst_140 [1] : vector<8x32xf32> to vector<8xf32>
    %286 = vector.shape_cast %285 : vector<8xf32> to vector<8x1xf32>
    %cst_141 = arith.constant 3.200000e+01 : f32
    %287 = vector.broadcast %cst_141 : f32 to vector<8x1xf32>
    %288 = arith.divf %286, %287 : vector<8x1xf32>
    %289 = vector.broadcast %281 : vector<8x1xf32> to vector<8x32xf32>
    %290 = arith.subf %275, %289 : vector<8x32xf32>
    %cst_142 = arith.constant 9.99999974E-6 : f32
    %291 = vector.broadcast %cst_142 : f32 to vector<8x1xf32>
    %292 = arith.addf %288, %291 : vector<8x1xf32>
    %293 = math.rsqrt %292 : vector<8x1xf32>
    %294 = vector.broadcast %293 : vector<8x1xf32> to vector<8x32xf32>
    %295 = arith.mulf %290, %294 : vector<8x32xf32>
    %296 = vector.broadcast %276 : vector<1x32xf32> to vector<8x32xf32>
    %297 = arith.mulf %295, %296 : vector<8x32xf32>
    %298 = vector.broadcast %277 : vector<1x32xf32> to vector<8x32xf32>
    %299 = arith.addf %297, %298 : vector<8x32xf32>
    %c0_143 = arith.constant 0 : index
    %c0_144 = arith.constant 0 : index
    %c0_145 = arith.constant 0 : index
    %300 = vector.load %arg27[%c0_143, %c0_144, %c0_145] : memref<1x8x32xf32, #tpu.memory_space<vmem>>, vector<1x8x32xf32>
    %301 = vector.shape_cast %300 : vector<1x8x32xf32> to vector<8x32xf32>
    %302 = vector.shape_cast %299 : vector<8x32xf32> to vector<1x8x32xf32>
    tpu.vector_store %arg27[%c0_143, %c0_144, %c0_145], %302 {strides = array<i32>} : memref<1x8x32xf32, #tpu.memory_space<vmem>>, vector<1x8x32xf32>,
    return
  }
  func.func @transform_0(%arg0: i32) -> (i32, i32, i32) {
    %c0_i32 = arith.constant 0 : i32
    %c0_i32_0 = arith.constant 0 : i32
    %c0_i32_1 = arith.constant 0 : i32
    return %arg0, %c0_i32, %c0_i32_0 : i32, i32, i32
  }
  func.func @transform_1(%arg0: i32) -> (i32, i32, i32) {
    %c0_i32 = arith.constant 0 : i32
    %c0_i32_0 = arith.constant 0 : i32
    %c0_i32_1 = arith.constant 0 : i32
    return %arg0, %c0_i32, %c0_i32_0 : i32, i32, i32
  }
  func.func @transform_2(%arg0: i32) -> (i32, i32, i32) {
    %c0_i32 = arith.constant 0 : i32
    %c0_i32_0 = arith.constant 0 : i32
    %c0_i32_1 = arith.constant 0 : i32
    return %arg0, %c0_i32, %c0_i32_0 : i32, i32, i32
  }
  func.func @transform_3(%arg0: i32) -> (i32, i32, i32) {
    %c0_i32 = arith.constant 0 : i32
    %c0_i32_0 = arith.constant 0 : i32
    %c0_i32_1 = arith.constant 0 : i32
    return %arg0, %c0_i32, %c0_i32_0 : i32, i32, i32
  }
  func.func @transform_4(%arg0: i32) -> (i32, i32) {
    %c0_i32 = arith.constant 0 : i32
    %c0_i32_0 = arith.constant 0 : i32
    %c0_i32_1 = arith.constant 0 : i32
    return %c0_i32, %c0_i32_0 : i32, i32
  }
  func.func @transform_5(%arg0: i32) -> (i32, i32) {
    %c0_i32 = arith.constant 0 : i32
    %c0_i32_0 = arith.constant 0 : i32
    %c0_i32_1 = arith.constant 0 : i32
    return %c0_i32, %c0_i32_0 : i32, i32
  }
  func.func @transform_6(%arg0: i32) -> (i32, i32) {
    %c0_i32 = arith.constant 0 : i32
    %c0_i32_0 = arith.constant 0 : i32
    %c0_i32_1 = arith.constant 0 : i32
    return %c0_i32, %c0_i32_0 : i32, i32
  }
  func.func @transform_7(%arg0: i32) -> (i32, i32) {
    %c0_i32 = arith.constant 0 : i32
    %c0_i32_0 = arith.constant 0 : i32
    %c0_i32_1 = arith.constant 0 : i32
    return %c0_i32, %c0_i32_0 : i32, i32
  }
  func.func @transform_8(%arg0: i32) -> (i32, i32) {
    %c0_i32 = arith.constant 0 : i32
    %c0_i32_0 = arith.constant 0 : i32
    %c0_i32_1 = arith.constant 0 : i32
    return %c0_i32, %c0_i32_0 : i32, i32
  }
  func.func @transform_9(%arg0: i32) -> (i32, i32) {
    %c0_i32 = arith.constant 0 : i32
    %c0_i32_0 = arith.constant 0 : i32
    %c0_i32_1 = arith.constant 0 : i32
    return %c0_i32, %c0_i32_0 : i32, i32
  }
  func.func @transform_10(%arg0: i32) -> (i32, i32) {
    %c0_i32 = arith.constant 0 : i32
    %c0_i32_0 = arith.constant 0 : i32
    %c0_i32_1 = arith.constant 0 : i32
    return %c0_i32, %c0_i32_0 : i32, i32
  }
  func.func @transform_11(%arg0: i32) -> (i32, i32) {
    %c0_i32 = arith.constant 0 : i32
    %c0_i32_0 = arith.constant 0 : i32
    %c0_i32_1 = arith.constant 0 : i32
    return %c0_i32, %c0_i32_0 : i32, i32
  }
  func.func @transform_12(%arg0: i32) -> (i32, i32) {
    %c0_i32 = arith.constant 0 : i32
    %c0_i32_0 = arith.constant 0 : i32
    %c0_i32_1 = arith.constant 0 : i32
    return %c0_i32, %c0_i32_0 : i32, i32
  }
  func.func @transform_13(%arg0: i32) -> (i32, i32) {
    %c0_i32 = arith.constant 0 : i32
    %c0_i32_0 = arith.constant 0 : i32
    %c0_i32_1 = arith.constant 0 : i32
    return %c0_i32, %c0_i32_0 : i32, i32
  }
  func.func @transform_14(%arg0: i32) -> (i32, i32) {
    %c0_i32 = arith.constant 0 : i32
    %c0_i32_0 = arith.constant 0 : i32
    %c0_i32_1 = arith.constant 0 : i32
    return %c0_i32, %c0_i32_0 : i32, i32
  }
  func.func @transform_15(%arg0: i32) -> (i32, i32) {
    %c0_i32 = arith.constant 0 : i32
    %c0_i32_0 = arith.constant 0 : i32
    %c0_i32_1 = arith.constant 0 : i32
    return %c0_i32, %c0_i32_0 : i32, i32
  }
  func.func @transform_16(%arg0: i32) -> (i32, i32) {
    %c0_i32 = arith.constant 0 : i32
    %c0_i32_0 = arith.constant 0 : i32
    %c0_i32_1 = arith.constant 0 : i32
    return %c0_i32, %c0_i32_0 : i32, i32
  }
  func.func @transform_17(%arg0: i32) -> (i32, i32) {
    %c0_i32 = arith.constant 0 : i32
    %c0_i32_0 = arith.constant 0 : i32
    %c0_i32_1 = arith.constant 0 : i32
    return %c0_i32, %c0_i32_0 : i32, i32
  }
  func.func @transform_18(%arg0: i32) -> (i32, i32) {
    %c0_i32 = arith.constant 0 : i32
    %c0_i32_0 = arith.constant 0 : i32
    %c0_i32_1 = arith.constant 0 : i32
    return %c0_i32, %c0_i32_0 : i32, i32
  }
  func.func @transform_19(%arg0: i32) -> (i32, i32) {
    %c0_i32 = arith.constant 0 : i32
    %c0_i32_0 = arith.constant 0 : i32
    %c0_i32_1 = arith.constant 0 : i32
    return %c0_i32, %c0_i32_0 : i32, i32
  }
  func.func @transform_20(%arg0: i32) -> (i32, i32) {
    %c0_i32 = arith.constant 0 : i32
    %c0_i32_0 = arith.constant 0 : i32
    %c0_i32_1 = arith.constant 0 : i32
    return %c0_i32, %c0_i32_0 : i32, i32
  }
  func.func @transform_21(%arg0: i32) -> (i32, i32) {
    %c0_i32 = arith.constant 0 : i32
    %c0_i32_0 = arith.constant 0 : i32
    %c0_i32_1 = arith.constant 0 : i32
    return %c0_i32, %c0_i32_0 : i32, i32
  }
  func.func @transform_22(%arg0: i32) -> (i32, i32) {
    %c0_i32 = arith.constant 0 : i32
    %c0_i32_0 = arith.constant 0 : i32
    %c0_i32_1 = arith.constant 0 : i32
    return %c0_i32, %c0_i32_0 : i32, i32
  }
  func.func @transform_23(%arg0: i32) -> (i32, i32) {
    %c0_i32 = arith.constant 0 : i32
    %c0_i32_0 = arith.constant 0 : i32
    %c0_i32_1 = arith.constant 0 : i32
    return %c0_i32, %c0_i32_0 : i32, i32
  }
  func.func @transform_24(%arg0: i32) -> (i32, i32) {
    %c0_i32 = arith.constant 0 : i32
    %c0_i32_0 = arith.constant 0 : i32
    %c0_i32_1 = arith.constant 0 : i32
    return %c0_i32, %c0_i32_0 : i32, i32
  }
  func.func @transform_25(%arg0: i32) -> (i32, i32) {
    %c0_i32 = arith.constant 0 : i32
    %c0_i32_0 = arith.constant 0 : i32
    %c0_i32_1 = arith.constant 0 : i32
    return %c0_i32, %c0_i32_0 : i32, i32
  }
  func.func @transform_26(%arg0: i32) -> (i32, i32, i32) {
    %c0_i32 = arith.constant 0 : i32
    %c0_i32_0 = arith.constant 0 : i32
    %c0_i32_1 = arith.constant 0 : i32
    return %arg0, %c0_i32, %c0_i32_0 : i32, i32, i32
  }
}

</mosaic_0001>

<llo_original>
// kernel: tpu_custom_call.1
$region0: #{tpu_custom_call.1}
  #allocation0 [shape = 'u32[]', space=smem, size = 0x4, offset = 0x4, fixed_abs, tag = 'smem constant byte address 0x4 - core index']
  #allocation1 [shape = 'u32[144,128]{1,0:T(1,128)}', space=vmem, size = 0x12000, scoped, tag = 'internal scratch']
  #allocation2 [shape = 'f32[8,32]{1,0:T(8,128)}', space=vmem, size = 0x1000, scoped, tag = 'scratch operand']
  %s0 = inlined_call_operand.hbm [shape: f32[2,8,32], index: 0, kind: input, shape index: {}]
  %s1 = inlined_call_operand.vmem [shape: f32[2,16,32], index: 1, kind: input, shape index: {}]
  %s2 = inlined_call_operand.hbm [shape: s8[2,8,8], index: 2, kind: input, shape index: {}]
  %s3 = inlined_call_operand.hbm [shape: s8[2,8,16], index: 3, kind: input, shape index: {}]
  %s4 = inlined_call_operand.vmem [shape: f32[32,96], index: 4, kind: input, shape index: {}]
  %s5 = inlined_call_operand.hbm [shape: f32[1,96], index: 5, kind: input, shape index: {}]
  %s6 = inlined_call_operand.vmem [shape: f32[32,32], index: 6, kind: input, shape index: {}]
  %s7 = inlined_call_operand.vmem [shape: f32[32,32], index: 7, kind: input, shape index: {}]
  %s8 = inlined_call_operand.hbm [shape: f32[1,32], index: 8, kind: input, shape index: {}]
  %s9 = inlined_call_operand.hbm [shape: f32[1,32], index: 9, kind: input, shape index: {}]
  %s10 = inlined_call_operand.hbm [shape: f32[1,32], index: 10, kind: input, shape index: {}]
  %s11 = inlined_call_operand.vmem [shape: f32[32,32], index: 11, kind: input, shape index: {}]
  %s12 = inlined_call_operand.hbm [shape: f32[1,32], index: 12, kind: input, shape index: {}]
  %s13 = inlined_call_operand.vmem [shape: f32[32,64], index: 13, kind: input, shape index: {}]
  %s14 = inlined_call_operand.hbm [shape: f32[1,64], index: 14, kind: input, shape index: {}]
  %s15 = inlined_call_operand.hbm [shape: f32[32,32], index: 15, kind: input, shape index: {}]
  %s16 = inlined_call_operand.hbm [shape: f32[32,32], index: 16, kind: input, shape index: {}]
  %s17 = inlined_call_operand.hbm [shape: f32[1,32], index: 17, kind: input, shape index: {}]
  %s18 = inlined_call_operand.vmem [shape: f32[1,32], index: 18, kind: input, shape index: {}]
  %s19 = inlined_call_operand.vmem [shape: f32[1,32], index: 19, kind: input, shape index: {}]
  %s20 = inlined_call_operand.hbm [shape: f32[32,128], index: 20, kind: input, shape index: {}]
  %s21 = inlined_call_operand.vmem [shape: f32[1,128], index: 21, kind: input, shape index: {}]
  %s22 = inlined_call_operand.vmem [shape: f32[128,32], index: 22, kind: input, shape index: {}]
  %s23 = inlined_call_operand.vmem [shape: f32[1,32], index: 23, kind: input, shape index: {}]
  %s24 = inlined_call_operand.vmem [shape: f32[1,32], index: 24, kind: input, shape index: {}]
  %s25 = inlined_call_operand.vmem [shape: f32[1,32], index: 25, kind: input, shape index: {}]
  %s26 = inlined_call_operand.hbm [shape: f32[2,8,32], index: 26, kind: output, shape index: {}]
  %s27 = sld [smem:[#allocation0]]
  $region189: #{tpu_custom_call.1} parent=0
    _
  %s29 = ssub.s32 1, %s27
  %s30 = scalar_select 0, %s29, %s27
  $region1: #{tpu_custom_call.1} parent=0
    #allocation3 [shape = 'u8[8192]{0}', space=vmem, size = 0x2000, scoped, tag = 'input window, operand 0']
    #allocation4 [shape = 's32[2]{0}', space=sflag, size = 0x8, scoped, tag = 'scoped memory for tpu_custom_call.1']
    #allocation5 [shape = 's32[2]{0}', space=sflag, size = 0x8, scoped, tag = 'scoped memory for tpu_custom_call.1']
    #allocation6 [shape = 'u8[2048]{0}', space=vmem, size = 0x800, scoped, tag = 'input window, operand 2']
    #allocation7 [shape = 's32[2]{0}', space=sflag, size = 0x8, scoped, tag = 'scoped memory for tpu_custom_call.1']
    #allocation8 [shape = 'u8[2048]{0}', space=vmem, size = 0x800, scoped, tag = 'input window, operand 3']
    #allocation9 [shape = 'u8[512]{0}', space=vmem, size = 0x400, scoped, tag = 'input window, operand 5, single buffered']
    #allocation10 [shape = 's32[1]{0}', space=sflag, size = 0x4, scoped, tag = 'scoped memory for tpu_custom_call.1']
    #allocation11 [shape = 'u8[512]{0}', space=vmem, size = 0x400, scoped, tag = 'input window, operand 8, single buffered']
    #allocation12 [shape = 'u8[512]{0}', space=vmem, size = 0x400, scoped, tag = 'input window, operand 9, single buffered']
    #allocation13 [shape = 's32[1]{0}', space=sflag, size = 0x4, scoped, tag = 'scoped memory for tpu_custom_call.1']
    #allocation14 [shape = 'u8[512]{0}', space=vmem, size = 0x400, scoped, tag = 'input window, operand 10, single buffered']
    #allocation15 [shape = 'u8[512]{0}', space=vmem, size = 0x400, scoped, tag = 'input window, operand 12, single buffered']
    #allocation16 [shape = 's32[1]{0}', space=sflag, size = 0x4, scoped, tag = 'scoped memory for tpu_custom_call.1']
    #allocation17 [shape = 'u8[512]{0}', space=vmem, size = 0x400, scoped, tag = 'input window, operand 14, single buffered']
    #allocation18 [shape = 'u8[16384]{0}', space=vmem, size = 0x4000, scoped, tag = 'input window, operand 15, single buffered']
    #allocation19 [shape = 's32[1]{0}', space=sflag, size = 0x4, scoped, tag = 'scoped memory for tpu_custom_call.1']
    #allocation20 [shape = 'u8[16384]{0}', space=vmem, size = 0x4000, scoped, tag = 'input window, operand 16, single buffered']
    #allocation21 [shape = 'u8[512]{0}', space=vmem, size = 0x400, scoped, tag = 'input window, operand 17, single buffered']
    #allocation22 [shape = 's32[1]{0}', space=sflag, size = 0x4, scoped, tag = 'scoped memory for tpu_custom_call.1']
    #allocation23 [shape = 'u8[16384]{0}', space=vmem, size = 0x4000, scoped, tag = 'input window, operand 20, single buffered']
    #allocation24 [shape = 'u8[8192]{0}', space=vmem, size = 0x2000, scoped, tag = 'output window, operand 0']
    %31 = vsyncpa [#allocation4], 0
    %s32 = scalar_lea.sflag [#allocation4], 1
    %33 = vsyncpa %s32, 0
    %34 = vsyncpa [#allocation7], 0
    %s35 = scalar_lea.sflag [#allocation7], 1
    %36 = vsyncpa %s35, 0
    %37 = vsyncpa [#allocation10], 0
    %38 = vsyncpa [#allocation13], 0
    %39 = vsyncpa [#allocation16], 0
    %40 = vsyncpa [#allocation19], 0
    %41 = vsyncpa [#allocation22], 0
    %42 = vsyncpa [#allocation5], 0
    %s43 = scalar_lea.sflag [#allocation5], 1
    %44 = vsyncpa %s43, 0
    loop: start=0, step=1, limit=4
    $region2: #{tpu_custom_call.1} parent=1 // loop_pre_header
      _
    $region3: #{tpu_custom_call.1} parent=1 // loop_header
      %s46 = sphi 0, %s50
      %p47 = scmp.ge.s32.totalorder %s46, 4
      %s56 = sphi 0, %s58
      %s59 = sphi 0, %s56
      %s60 = sphi 0, %s59
      %s76 = sphi 0, %s60
      %s82 = sphi 0, %s84
      %s85 = sphi 0, %s82
      %s86 = sphi 0, %s85
      %s102 = sphi 0, %s86
      %s108 = sphi 0, %s110
      %s111 = sphi 0, %s108
      %s112 = sphi 0, %s111
      %s128 = sphi 0, %s112
      %s134 = sphi 0, %s136
      %s137 = sphi 0, %s134
      %s138 = sphi 0, %s137
      %s154 = sphi 0, %s138
      %s158 = sphi 0, %s158
      %s160 = sphi 0, %s158
      %s161 = sphi 0, %s160
      %s175 = sphi 0, %s161
      %s179 = sphi 0, %s179
      %s181 = sphi 0, %s179
      %s182 = sphi 0, %s181
      %s196 = sphi 0, %s182
      %s200 = sphi 0, %s200
      %s202 = sphi 0, %s200
      %s203 = sphi 0, %s202
      %s217 = sphi 0, %s203
      %s221 = sphi 0, %s221
      %s223 = sphi 0, %s221
      %s224 = sphi 0, %s223
      %s238 = sphi 0, %s224
      %s242 = sphi 0, %s242
      %s244 = sphi 0, %s242
      %s245 = sphi 0, %s244
      %s259 = sphi 0, %s245
      %s263 = sphi 0, %s263
      %s265 = sphi 0, %s263
      %s266 = sphi 0, %s265
      %s280 = sphi 0, %s266
      %s284 = sphi 0, %s284
      %s286 = sphi 0, %s284
      %s287 = sphi 0, %s286
      %s301 = sphi 0, %s287
      %s305 = sphi 0, %s305
      %s307 = sphi 0, %s305
      %s308 = sphi 0, %s307
      %s322 = sphi 0, %s308
      %s326 = sphi 0, %s326
      %s328 = sphi 0, %s326
      %s329 = sphi 0, %s328
      %s343 = sphi 0, %s329
      %s347 = sphi 0, %s347
      %s349 = sphi 0, %s347
      %s350 = sphi 0, %s349
      %s364 = sphi 0, %s350
      %s368 = sphi 0, %s368
      %s370 = sphi 0, %s368
      %s371 = sphi 0, %s370
      %s385 = sphi 0, %s371
      %s389 = sphi 0, %s389
      %s391 = sphi 0, %s389
      %s392 = sphi 0, %s391
      %s406 = sphi 0, %s392
      %s410 = sphi 0, %s410
      %s412 = sphi 0, %s410
      %s413 = sphi 0, %s412
      %s427 = sphi 0, %s413
      %s431 = sphi 0, %s431
      %s433 = sphi 0, %s431
      %s434 = sphi 0, %s433
      %s448 = sphi 0, %s434
      %s452 = sphi 0, %s452
      %s454 = sphi 0, %s452
      %s455 = sphi 0, %s454
      %s469 = sphi 0, %s455
      %s473 = sphi 0, %s473
      %s475 = sphi 0, %s473
      %s476 = sphi 0, %s475
      %s490 = sphi 0, %s476
      %s494 = sphi 0, %s494
      %s496 = sphi 0, %s494
      %s497 = sphi 0, %s496
      %s511 = sphi 0, %s497
      %s515 = sphi 0, %s515
      %s517 = sphi 0, %s515
      %s518 = sphi 0, %s517
      %s532 = sphi 0, %s518
      %s536 = sphi 0, %s536
      %s538 = sphi 0, %s536
      %s539 = sphi 0, %s538
      %s553 = sphi 0, %s539
      %s557 = sphi 0, %s557
      %s559 = sphi 0, %s557
      %s560 = sphi 0, %s559
      %s574 = sphi 0, %s560
      %s578 = sphi 0, %s578
      %s580 = sphi 0, %s578
      %s581 = sphi 0, %s580
      %s595 = sphi 0, %s581
      %s599 = sphi 0, %s599
      %s601 = sphi 0, %s599
      %s602 = sphi 0, %s601
      %s616 = sphi 0, %s602
      %s622 = sphi 0, %s624
      %s625 = sphi 0, %s622
      %s626 = sphi 0, %s625
      %s642 = sphi 0, %s626
    $region4: #{tpu_custom_call.1} parent=1 // loop_header_branch
      %49 = sbr.rel (%p47) target = $region8
    $region5: #{tpu_custom_call.1} parent=1 // loop_body
      %s51 = ssub.s32 %s46, 1
      %s52 = ssub.s32 %s46, 2
      %s53 = sadd.s32 %s46, 1
      %s54 = ssub.s32 %s46, %s53
      %p55 = scmp.eq.s32.totalorder %s54, 0
      %s57 = sadd.s32 %s56, 1
      %s58 = scalar_select %p55, %s56, %s57
      %p61 = pneg %p55
      %p62 = scmp.eq.s32.totalorder %s46, 1
      %p63 = por %p61, %p62
      %p64 = scmp.ne.s32.totalorder %s56, %s59
      %p65 = scmp.eq.s32.totalorder %s46, 0
      %p66 = por %p64, %p65
      %p67 = scmp.ne.s32.totalorder %s56, %s59
      %p68 = scmp.eq.s32.totalorder %s51, 1
      %p69 = por %p67, %p68
      %p70 = scmp.ne.s32.totalorder %s59, %s60
      %p71 = scmp.eq.s32.totalorder %s51, 0
      %p72 = por %p70, %p71
      %p73 = scmp.ne.s32.totalorder %s59, %s60
      %p74 = scmp.eq.s32.totalorder %s52, 1
      %p75 = por %p73, %p74
      %p77 = scmp.ne.s32.totalorder %s60, %s76
      %p78 = scmp.eq.s32.totalorder %s52, 0
      %p79 = por %p77, %p78
      %s80 = ssub.s32 %s46, %s53
      %p81 = scmp.eq.s32.totalorder %s80, 0
      %s83 = sadd.s32 %s82, 1
      %s84 = scalar_select %p81, %s82, %s83
      %p87 = pneg %p81
      %p88 = scmp.eq.s32.totalorder %s46, 1
      %p89 = por %p87, %p88
      %p90 = scmp.ne.s32.totalorder %s82, %s85
      %p91 = scmp.eq.s32.totalorder %s46, 0
      %p92 = por %p90, %p91
      %p93 = scmp.ne.s32.totalorder %s82, %s85
      %p94 = scmp.eq.s32.totalorder %s51, 1
      %p95 = por %p93, %p94
      %p96 = scmp.ne.s32.totalorder %s85, %s86
      %p97 = scmp.eq.s32.totalorder %s51, 0
      %p98 = por %p96, %p97
      %p99 = scmp.ne.s32.totalorder %s85, %s86
      %p100 = scmp.eq.s32.totalorder %s52, 1
      %p101 = por %p99, %p100
      %p103 = scmp.ne.s32.totalorder %s86, %s102
      %p104 = scmp.eq.s32.totalorder %s52, 0
      %p105 = por %p103, %p104
      %s106 = ssub.s32 %s46, %s53
      %p107 = scmp.eq.s32.totalorder %s106, 0
      %s109 = sadd.s32 %s108, 1
      %s110 = scalar_select %p107, %s108, %s109
      %p113 = pneg %p107
      %p114 = scmp.eq.s32.totalorder %s46, 1
      %p115 = por %p113, %p114
      %p116 = scmp.ne.s32.totalorder %s108, %s111
      %p117 = scmp.eq.s32.totalorder %s46, 0
      %p118 = por %p116, %p117
      %p119 = scmp.ne.s32.totalorder %s108, %s111
      %p120 = scmp.eq.s32.totalorder %s51, 1
      %p121 = por %p119, %p120
      %p122 = scmp.ne.s32.totalorder %s111, %s112
      %p123 = scmp.eq.s32.totalorder %s51, 0
      %p124 = por %p122, %p123
      %p125 = scmp.ne.s32.totalorder %s111, %s112
      %p126 = scmp.eq.s32.totalorder %s52, 1
      %p127 = por %p125, %p126
      %p129 = scmp.ne.s32.totalorder %s112, %s128
      %p130 = scmp.eq.s32.totalorder %s52, 0
      %p131 = por %p129, %p130
      %s132 = ssub.s32 %s46, %s53
      %p133 = scmp.eq.s32.totalorder %s132, 0
      %s135 = sadd.s32 %s134, 1
      %s136 = scalar_select %p133, %s134, %s135
      %p139 = pneg %p133
      %p140 = scmp.eq.s32.totalorder %s46, 1
      %p141 = por %p139, %p140
      %p142 = scmp.ne.s32.totalorder %s134, %s137
      %p143 = scmp.eq.s32.totalorder %s46, 0
      %p144 = por %p142, %p143
      %p145 = scmp.ne.s32.totalorder %s134, %s137
      %p146 = scmp.eq.s32.totalorder %s51, 1
      %p147 = por %p145, %p146
      %p148 = scmp.ne.s32.totalorder %s137, %s138
      %p149 = scmp.eq.s32.totalorder %s51, 0
      %p150 = por %p148, %p149
      %p151 = scmp.ne.s32.totalorder %s137, %s138
      %p152 = scmp.eq.s32.totalorder %s52, 1
      %p153 = por %p151, %p152
      %p155 = scmp.ne.s32.totalorder %s138, %s154
      %p156 = scmp.eq.s32.totalorder %s52, 0
      %p157 = por %p155, %p156
      %s159 = sadd.s32 %s158, 1
      %p162 = scmp.eq.s32.totalorder %s46, 1
      %p163 = scmp.ne.s32.totalorder %s158, %s160
      %p164 = scmp.eq.s32.totalorder %s46, 0
      %p165 = por %p163, %p164
      %p166 = scmp.ne.s32.totalorder %s158, %s160
      %p167 = scmp.eq.s32.totalorder %s51, 1
      %p168 = por %p166, %p167
      %p169 = scmp.ne.s32.totalorder %s160, %s161
      %p170 = scmp.eq.s32.totalorder %s51, 0
      %p171 = por %p169, %p170
      %p172 = scmp.ne.s32.totalorder %s160, %s161
      %p173 = scmp.eq.s32.totalorder %s52, 1
      %p174 = por %p172, %p173
      %p176 = scmp.ne.s32.totalorder %s161, %s175
      %p177 = scmp.eq.s32.totalorder %s52, 0
      %p178 = por %p176, %p177
      %s180 = sadd.s32 %s179, 1
      %p183 = scmp.eq.s32.totalorder %s46, 1
      %p184 = scmp.ne.s32.totalorder %s179, %s181
      %p185 = scmp.eq.s32.totalorder %s46, 0
      %p186 = por %p184, %p185
      %p187 = scmp.ne.s32.totalorder %s179, %s181
      %p188 = scmp.eq.s32.totalorder %s51, 1
      %p189 = por %p187, %p188
      %p190 = scmp.ne.s32.totalorder %s181, %s182
      %p191 = scmp.eq.s32.totalorder %s51, 0
      %p192 = por %p190, %p191
      %p193 = scmp.ne.s32.totalorder %s181, %s182
      %p194 = scmp.eq.s32.totalorder %s52, 1
      %p195 = por %p193, %p194
      %p197 = scmp.ne.s32.totalorder %s182, %s196
      %p198 = scmp.eq.s32.totalorder %s52, 0
      %p199 = por %p197, %p198
      %s201 = sadd.s32 %s200, 1
      %p204 = scmp.eq.s32.totalorder %s46, 1
      %p205 = scmp.ne.s32.totalorder %s200, %s202
      %p206 = scmp.eq.s32.totalorder %s46, 0
      %p207 = por %p205, %p206
      %p208 = scmp.ne.s32.totalorder %s200, %s202
      %p209 = scmp.eq.s32.totalorder %s51, 1
      %p210 = por %p208, %p209
      %p211 = scmp.ne.s32.totalorder %s202, %s203
      %p212 = scmp.eq.s32.totalorder %s51, 0
      %p213 = por %p211, %p212
      %p214 = scmp.ne.s32.totalorder %s202, %s203
      %p215 = scmp.eq.s32.totalorder %s52, 1
      %p216 = por %p214, %p215
      %p218 = scmp.ne.s32.totalorder %s203, %s217
      %p219 = scmp.eq.s32.totalorder %s52, 0
      %p220 = por %p218, %p219
      %s222 = sadd.s32 %s221, 1
      %p225 = scmp.eq.s32.totalorder %s46, 1
      %p226 = scmp.ne.s32.totalorder %s221, %s223
      %p227 = scmp.eq.s32.totalorder %s46, 0
      %p228 = por %p226, %p227
      %p229 = scmp.ne.s32.totalorder %s221, %s223
      %p230 = scmp.eq.s32.totalorder %s51, 1
      %p231 = por %p229, %p230
      %p232 = scmp.ne.s32.totalorder %s223, %s224
      %p233 = scmp.eq.s32.totalorder %s51, 0
      %p234 = por %p232, %p233
      %p235 = scmp.ne.s32.totalorder %s223, %s224
      %p236 = scmp.eq.s32.totalorder %s52, 1
      %p237 = por %p235, %p236
      %p239 = scmp.ne.s32.totalorder %s224, %s238
      %p240 = scmp.eq.s32.totalorder %s52, 0
      %p241 = por %p239, %p240
      %s243 = sadd.s32 %s242, 1
      %p246 = scmp.eq.s32.totalorder %s46, 1
      %p247 = scmp.ne.s32.totalorder %s242, %s244
      %p248 = scmp.eq.s32.totalorder %s46, 0
      %p249 = por %p247, %p248
      %p250 = scmp.ne.s32.totalorder %s242, %s244
      %p251 = scmp.eq.s32.totalorder %s51, 1
      %p252 = por %p250, %p251
      %p253 = scmp.ne.s32.totalorder %s244, %s245
      %p254 = scmp.eq.s32.totalorder %s51, 0
      %p255 = por %p253, %p254
      %p256 = scmp.ne.s32.totalorder %s244, %s245
      %p257 = scmp.eq.s32.totalorder %s52, 1
      %p258 = por %p256, %p257
      %p260 = scmp.ne.s32.totalorder %s245, %s259
      %p261 = scmp.eq.s32.totalorder %s52, 0
      %p262 = por %p260, %p261
      %s264 = sadd.s32 %s263, 1
      %p267 = scmp.eq.s32.totalorder %s46, 1
      %p268 = scmp.ne.s32.totalorder %s263, %s265
      %p269 = scmp.eq.s32.totalorder %s46, 0
      %p270 = por %p268, %p269
      %p271 = scmp.ne.s32.totalorder %s263, %s265
      %p272 = scmp.eq.s32.totalorder %s51, 1
      %p273 = por %p271, %p272
      %p274 = scmp.ne.s32.totalorder %s265, %s266
      %p275 = scmp.eq.s32.totalorder %s51, 0
      %p276 = por %p274, %p275
      %p277 = scmp.ne.s32.totalorder %s265, %s266
      %p278 = scmp.eq.s32.totalorder %s52, 1
      %p279 = por %p277, %p278
      %p281 = scmp.ne.s32.totalorder %s266, %s280
      %p282 = scmp.eq.s32.totalorder %s52, 0
      %p283 = por %p281, %p282
      %s285 = sadd.s32 %s284, 1
      %p288 = scmp.eq.s32.totalorder %s46, 1
      %p289 = scmp.ne.s32.totalorder %s284, %s286
      %p290 = scmp.eq.s32.totalorder %s46, 0
      %p291 = por %p289, %p290
      %p292 = scmp.ne.s32.totalorder %s284, %s286
      %p293 = scmp.eq.s32.totalorder %s51, 1
      %p294 = por %p292, %p293
      %p295 = scmp.ne.s32.totalorder %s286, %s287
      %p296 = scmp.eq.s32.totalorder %s51, 0
      %p297 = por %p295, %p296
      %p298 = scmp.ne.s32.totalorder %s286, %s287
      %p299 = scmp.eq.s32.totalorder %s52, 1
      %p300 = por %p298, %p299
      %p302 = scmp.ne.s32.totalorder %s287, %s301
      %p303 = scmp.eq.s32.totalorder %s52, 0
      %p304 = por %p302, %p303
      %s306 = sadd.s32 %s305, 1
      %p309 = scmp.eq.s32.totalorder %s46, 1
      %p310 = scmp.ne.s32.totalorder %s305, %s307
      %p311 = scmp.eq.s32.totalorder %s46, 0
      %p312 = por %p310, %p311
      %p313 = scmp.ne.s32.totalorder %s305, %s307
      %p314 = scmp.eq.s32.totalorder %s51, 1
      %p315 = por %p313, %p314
      %p316 = scmp.ne.s32.totalorder %s307, %s308
      %p317 = scmp.eq.s32.totalorder %s51, 0
      %p318 = por %p316, %p317
      %p319 = scmp.ne.s32.totalorder %s307, %s308
      %p320 = scmp.eq.s32.totalorder %s52, 1
      %p321 = por %p319, %p320
      %p323 = scmp.ne.s32.totalorder %s308, %s322
      %p324 = scmp.eq.s32.totalorder %s52, 0
      %p325 = por %p323, %p324
      %s327 = sadd.s32 %s326, 1
      %p330 = scmp.eq.s32.totalorder %s46, 1
      %p331 = scmp.ne.s32.totalorder %s326, %s328
      %p332 = scmp.eq.s32.totalorder %s46, 0
      %p333 = por %p331, %p332
      %p334 = scmp.ne.s32.totalorder %s326, %s328
      %p335 = scmp.eq.s32.totalorder %s51, 1
      %p336 = por %p334, %p335
      %p337 = scmp.ne.s32.totalorder %s328, %s329
      %p338 = scmp.eq.s32.totalorder %s51, 0
      %p339 = por %p337, %p338
      %p340 = scmp.ne.s32.totalorder %s328, %s329
      %p341 = scmp.eq.s32.totalorder %s52, 1
      %p342 = por %p340, %p341
      %p344 = scmp.ne.s32.totalorder %s329, %s343
      %p345 = scmp.eq.s32.totalorder %s52, 0
      %p346 = por %p344, %p345
      %s348 = sadd.s32 %s347, 1
      %p351 = scmp.eq.s32.totalorder %s46, 1
      %p352 = scmp.ne.s32.totalorder %s347, %s349
      %p353 = scmp.eq.s32.totalorder %s46, 0
      %p354 = por %p352, %p353
      %p355 = scmp.ne.s32.totalorder %s347, %s349
      %p356 = scmp.eq.s32.totalorder %s51, 1
      %p357 = por %p355, %p356
      %p358 = scmp.ne.s32.totalorder %s349, %s350
      %p359 = scmp.eq.s32.totalorder %s51, 0
      %p360 = por %p358, %p359
      %p361 = scmp.ne.s32.totalorder %s349, %s350
      %p362 = scmp.eq.s32.totalorder %s52, 1
      %p363 = por %p361, %p362
      %p365 = scmp.ne.s32.totalorder %s350, %s364
      %p366 = scmp.eq.s32.totalorder %s52, 0
      %p367 = por %p365, %p366
      %s369 = sadd.s32 %s368, 1
      %p372 = scmp.eq.s32.totalorder %s46, 1
      %p373 = scmp.ne.s32.totalorder %s368, %s370
      %p374 = scmp.eq.s32.totalorder %s46, 0
      %p375 = por %p373, %p374
      %p376 = scmp.ne.s32.totalorder %s368, %s370
      %p377 = scmp.eq.s32.totalorder %s51, 1
      %p378 = por %p376, %p377
      %p379 = scmp.ne.s32.totalorder %s370, %s371
      %p380 = scmp.eq.s32.totalorder %s51, 0
      %p381 = por %p379, %p380
      %p382 = scmp.ne.s32.totalorder %s370, %s371
      %p383 = scmp.eq.s32.totalorder %s52, 1
      %p384 = por %p382, %p383
      %p386 = scmp.ne.s32.totalorder %s371, %s385
      %p387 = scmp.eq.s32.totalorder %s52, 0
      %p388 = por %p386, %p387
      %s390 = sadd.s32 %s389, 1
      %p393 = scmp.eq.s32.totalorder %s46, 1
      %p394 = scmp.ne.s32.totalorder %s389, %s391
      %p395 = scmp.eq.s32.totalorder %s46, 0
      %p396 = por %p394, %p395
      %p397 = scmp.ne.s32.totalorder %s389, %s391
      %p398 = scmp.eq.s32.totalorder %s51, 1
      %p399 = por %p397, %p398
      %p400 = scmp.ne.s32.totalorder %s391, %s392
      %p401 = scmp.eq.s32.totalorder %s51, 0
      %p402 = por %p400, %p401
      %p403 = scmp.ne.s32.totalorder %s391, %s392
      %p404 = scmp.eq.s32.totalorder %s52, 1
      %p405 = por %p403, %p404
      %p407 = scmp.ne.s32.totalorder %s392, %s406
      %p408 = scmp.eq.s32.totalorder %s52, 0
      %p409 = por %p407, %p408
      %s411 = sadd.s32 %s410, 1
      %p414 = scmp.eq.s32.totalorder %s46, 1
      %p415 = scmp.ne.s32.totalorder %s410, %s412
      %p416 = scmp.eq.s32.totalorder %s46, 0
      %p417 = por %p415, %p416
      %p418 = scmp.ne.s32.totalorder %s410, %s412
      %p419 = scmp.eq.s32.totalorder %s51, 1
      %p420 = por %p418, %p419
      %p421 = scmp.ne.s32.totalorder %s412, %s413
      %p422 = scmp.eq.s32.totalorder %s51, 0
      %p423 = por %p421, %p422
      %p424 = scmp.ne.s32.totalorder %s412, %s413
      %p425 = scmp.eq.s32.totalorder %s52, 1
      %p426 = por %p424, %p425
      %p428 = scmp.ne.s32.totalorder %s413, %s427
      %p429 = scmp.eq.s32.totalorder %s52, 0
      %p430 = por %p428, %p429
      %s432 = sadd.s32 %s431, 1
      %p435 = scmp.eq.s32.totalorder %s46, 1
      %p436 = scmp.ne.s32.totalorder %s431, %s433
      %p437 = scmp.eq.s32.totalorder %s46, 0
      %p438 = por %p436, %p437
      %p439 = scmp.ne.s32.totalorder %s431, %s433
      %p440 = scmp.eq.s32.totalorder %s51, 1
      %p441 = por %p439, %p440
      %p442 = scmp.ne.s32.totalorder %s433, %s434
      %p443 = scmp.eq.s32.totalorder %s51, 0
      %p444 = por %p442, %p443
      %p445 = scmp.ne.s32.totalorder %s433, %s434
      %p446 = scmp.eq.s32.totalorder %s52, 1
      %p447 = por %p445, %p446
      %p449 = scmp.ne.s32.totalorder %s434, %s448
      %p450 = scmp.eq.s32.totalorder %s52, 0
      %p451 = por %p449, %p450
      %s453 = sadd.s32 %s452, 1
      %p456 = scmp.eq.s32.totalorder %s46, 1
      %p457 = scmp.ne.s32.totalorder %s452, %s454
      %p458 = scmp.eq.s32.totalorder %s46, 0
      %p459 = por %p457, %p458
      %p460 = scmp.ne.s32.totalorder %s452, %s454
      %p461 = scmp.eq.s32.totalorder %s51, 1
      %p462 = por %p460, %p461
      %p463 = scmp.ne.s32.totalorder %s454, %s455
      %p464 = scmp.eq.s32.totalorder %s51, 0
      %p465 = por %p463, %p464
      %p466 = scmp.ne.s32.totalorder %s454, %s455
      %p467 = scmp.eq.s32.totalorder %s52, 1
      %p468 = por %p466, %p467
      %p470 = scmp.ne.s32.totalorder %s455, %s469
      %p471 = scmp.eq.s32.totalorder %s52, 0
      %p472 = por %p470, %p471
      %s474 = sadd.s32 %s473, 1
      %p477 = scmp.eq.s32.totalorder %s46, 1
      %p478 = scmp.ne.s32.totalorder %s473, %s475
      %p479 = scmp.eq.s32.totalorder %s46, 0
      %p480 = por %p478, %p479
      %p481 = scmp.ne.s32.totalorder %s473, %s475
      %p482 = scmp.eq.s32.totalorder %s51, 1
      %p483 = por %p481, %p482
      %p484 = scmp.ne.s32.totalorder %s475, %s476
      %p485 = scmp.eq.s32.totalorder %s51, 0
      %p486 = por %p484, %p485
      %p487 = scmp.ne.s32.totalorder %s475, %s476
      %p488 = scmp.eq.s32.totalorder %s52, 1
      %p489 = por %p487, %p488
      %p491 = scmp.ne.s32.totalorder %s476, %s490
      %p492 = scmp.eq.s32.totalorder %s52, 0
      %p493 = por %p491, %p492
      %s495 = sadd.s32 %s494, 1
      %p498 = scmp.eq.s32.totalorder %s46, 1
      %p499 = scmp.ne.s32.totalorder %s494, %s496
      %p500 = scmp.eq.s32.totalorder %s46, 0
      %p501 = por %p499, %p500
      %p502 = scmp.ne.s32.totalorder %s494, %s496
      %p503 = scmp.eq.s32.totalorder %s51, 1
      %p504 = por %p502, %p503
      %p505 = scmp.ne.s32.totalorder %s496, %s497
      %p506 = scmp.eq.s32.totalorder %s51, 0
      %p507 = por %p505, %p506
      %p508 = scmp.ne.s32.totalorder %s496, %s497
      %p509 = scmp.eq.s32.totalorder %s52, 1
      %p510 = por %p508, %p509
      %p512 = scmp.ne.s32.totalorder %s497, %s511
      %p513 = scmp.eq.s32.totalorder %s52, 0
      %p514 = por %p512, %p513
      %s516 = sadd.s32 %s515, 1
      %p519 = scmp.eq.s32.totalorder %s46, 1
      %p520 = scmp.ne.s32.totalorder %s515, %s517
      %p521 = scmp.eq.s32.totalorder %s46, 0
      %p522 = por %p520, %p521
      %p523 = scmp.ne.s32.totalorder %s515, %s517
      %p524 = scmp.eq.s32.totalorder %s51, 1
      %p525 = por %p523, %p524
      %p526 = scmp.ne.s32.totalorder %s517, %s518
      %p527 = scmp.eq.s32.totalorder %s51, 0
      %p528 = por %p526, %p527
      %p529 = scmp.ne.s32.totalorder %s517, %s518
      %p530 = scmp.eq.s32.totalorder %s52, 1
      %p531 = por %p529, %p530
      %p533 = scmp.ne.s32.totalorder %s518, %s532
      %p534 = scmp.eq.s32.totalorder %s52, 0
      %p535 = por %p533, %p534
      %s537 = sadd.s32 %s536, 1
      %p540 = scmp.eq.s32.totalorder %s46, 1
      %p541 = scmp.ne.s32.totalorder %s536, %s538
      %p542 = scmp.eq.s32.totalorder %s46, 0
      %p543 = por %p541, %p542
      %p544 = scmp.ne.s32.totalorder %s536, %s538
      %p545 = scmp.eq.s32.totalorder %s51, 1
      %p546 = por %p544, %p545
      %p547 = scmp.ne.s32.totalorder %s538, %s539
      %p548 = scmp.eq.s32.totalorder %s51, 0
      %p549 = por %p547, %p548
      %p550 = scmp.ne.s32.totalorder %s538, %s539
      %p551 = scmp.eq.s32.totalorder %s52, 1
      %p552 = por %p550, %p551
      %p554 = scmp.ne.s32.totalorder %s539, %s553
      %p555 = scmp.eq.s32.totalorder %s52, 0
      %p556 = por %p554, %p555
      %s558 = sadd.s32 %s557, 1
      %p561 = scmp.eq.s32.totalorder %s46, 1
      %p562 = scmp.ne.s32.totalorder %s557, %s559
      %p563 = scmp.eq.s32.totalorder %s46, 0
      %p564 = por %p562, %p563
      %p565 = scmp.ne.s32.totalorder %s557, %s559
      %p566 = scmp.eq.s32.totalorder %s51, 1
      %p567 = por %p565, %p566
      %p568 = scmp.ne.s32.totalorder %s559, %s560
      %p569 = scmp.eq.s32.totalorder %s51, 0
      %p570 = por %p568, %p569
      %p571 = scmp.ne.s32.totalorder %s559, %s560
      %p572 = scmp.eq.s32.totalorder %s52, 1
      %p573 = por %p571, %p572
      %p575 = scmp.ne.s32.totalorder %s560, %s574
      %p576 = scmp.eq.s32.totalorder %s52, 0
      %p577 = por %p575, %p576
      %s579 = sadd.s32 %s578, 1
      %p582 = scmp.eq.s32.totalorder %s46, 1
      %p583 = scmp.ne.s32.totalorder %s578, %s580
      %p584 = scmp.eq.s32.totalorder %s46, 0
      %p585 = por %p583, %p584
      %p586 = scmp.ne.s32.totalorder %s578, %s580
      %p587 = scmp.eq.s32.totalorder %s51, 1
      %p588 = por %p586, %p587
      %p589 = scmp.ne.s32.totalorder %s580, %s581
      %p590 = scmp.eq.s32.totalorder %s51, 0
      %p591 = por %p589, %p590
      %p592 = scmp.ne.s32.totalorder %s580, %s581
      %p593 = scmp.eq.s32.totalorder %s52, 1
      %p594 = por %p592, %p593
      %p596 = scmp.ne.s32.totalorder %s581, %s595
      %p597 = scmp.eq.s32.totalorder %s52, 0
      %p598 = por %p596, %p597
      %s600 = sadd.s32 %s599, 1
      %p603 = scmp.eq.s32.totalorder %s46, 1
      %p604 = scmp.ne.s32.totalorder %s599, %s601
      %p605 = scmp.eq.s32.totalorder %s46, 0
      %p606 = por %p604, %p605
      %p607 = scmp.ne.s32.totalorder %s599, %s601
      %p608 = scmp.eq.s32.totalorder %s51, 1
      %p609 = por %p607, %p608
      %p610 = scmp.ne.s32.totalorder %s601, %s602
      %p611 = scmp.eq.s32.totalorder %s51, 0
      %p612 = por %p610, %p611
      %p613 = scmp.ne.s32.totalorder %s601, %s602
      %p614 = scmp.eq.s32.totalorder %s52, 1
      %p615 = por %p613, %p614
      %p617 = scmp.ne.s32.totalorder %s602, %s616
      %p618 = scmp.eq.s32.totalorder %s52, 0
      %p619 = por %p617, %p618
      %s620 = ssub.s32 %s46, %s53
      %p621 = scmp.eq.s32.totalorder %s620, 0
      %s623 = sadd.s32 %s622, 1
      %s624 = scalar_select %p621, %s622, %s623
      %p627 = pneg %p621
      %p628 = scmp.eq.s32.totalorder %s46, 1
      %p629 = por %p627, %p628
      %p630 = scmp.ne.s32.totalorder %s622, %s625
      %p631 = scmp.eq.s32.totalorder %s46, 0
      %p632 = por %p630, %p631
      %p633 = scmp.ne.s32.totalorder %s622, %s625
      %p634 = scmp.eq.s32.totalorder %s51, 1
      %p635 = por %p633, %p634
      %p636 = scmp.ne.s32.totalorder %s625, %s626
      %p637 = scmp.eq.s32.totalorder %s51, 0
      %p638 = por %p636, %p637
      %p639 = scmp.ne.s32.totalorder %s625, %s626
      %p640 = scmp.eq.s32.totalorder %s52, 1
      %p641 = por %p639, %p640
      %p643 = scmp.ne.s32.totalorder %s626, %s642
      %p644 = scmp.eq.s32.totalorder %s52, 0
      %p645 = por %p643, %p644
      %p646 = scmp.le.s32.totalorder 1, %s46
      %p647 = scmp.lt.s32.totalorder %s46, 3
      %p648 = pnand %p646, %p647
      %p649 = pneg %p648
      // Predicated region
      $region9: #{tpu_custom_call.1} parent=5 // pred_check
        _
      $region10: #{tpu_custom_call.1} parent=5 // pred_check_branch
        %651 = sbr.rel (%p648) target = $region12
      $region11: #{tpu_custom_call.1} parent=5 // pred_region
        %s652 = ssub.s32 %s46, 1
        // Predicated region
        $region13: #{tpu_custom_call.1} parent=11 // pred_check
          %p653 = pneg %p171
        $region14: #{tpu_custom_call.1} parent=11 // pred_check_branch
          %655 = sbr.rel (%p653) target = $region16
        $region15: #{tpu_custom_call.1} parent=11 // pred_region
          _
        $region16: #{tpu_custom_call.1} parent=11 // pred_fallthru
          _
        // Predicated region
        $region17: #{tpu_custom_call.1} parent=11 // pred_check
          %p656 = pneg %p192
        $region18: #{tpu_custom_call.1} parent=11 // pred_check_branch
          %658 = sbr.rel (%p656) target = $region20
        $region19: #{tpu_custom_call.1} parent=11 // pred_region
          %s660 = ssub.s32 16, 16
          %661 = vsyncadd [#allocation10], %s660
          %s663 = sshll.u32 [#allocation9], 4
          %s664 = int_to_ptr.vmem [resolvable:$true] %s663
          %666 = dma.hbm_to_vmem [thread:$0]  %s5, 16, %s664, [#allocation10]
        $region20: #{tpu_custom_call.1} parent=11 // pred_fallthru
          _
        // Predicated region
        $region21: #{tpu_custom_call.1} parent=11 // pred_check
          %p667 = pneg %p213
        $region22: #{tpu_custom_call.1} parent=11 // pred_check_branch
          %669 = sbr.rel (%p667) target = $region24
        $region23: #{tpu_custom_call.1} parent=11 // pred_region
          _
        $region24: #{tpu_custom_call.1} parent=11 // pred_fallthru
          _
        // Predicated region
        $region25: #{tpu_custom_call.1} parent=11 // pred_check
          %p670 = pneg %p234
        $region26: #{tpu_custom_call.1} parent=11 // pred_check_branch
          %672 = sbr.rel (%p670) target = $region28
        $region27: #{tpu_custom_call.1} parent=11 // pred_region
          _
        $region28: #{tpu_custom_call.1} parent=11 // pred_fallthru
          _
        // Predicated region
        $region29: #{tpu_custom_call.1} parent=11 // pred_check
          %p673 = pneg %p255
        $region30: #{tpu_custom_call.1} parent=11 // pred_check_branch
          %675 = sbr.rel (%p673) target = $region32
        $region31: #{tpu_custom_call.1} parent=11 // pred_region
          %s677 = ssub.s32 16, 16
          %678 = vsyncadd [#allocation10], %s677
          %s680 = sshll.u32 [#allocation11], 4
          %s681 = int_to_ptr.vmem [resolvable:$true] %s680
          %683 = dma.hbm_to_vmem [thread:$0]  %s8, 16, %s681, [#allocation10]
        $region32: #{tpu_custom_call.1} parent=11 // pred_fallthru
          _
        // Predicated region
        $region33: #{tpu_custom_call.1} parent=11 // pred_check
          %p684 = pneg %p276
        $region34: #{tpu_custom_call.1} parent=11 // pred_check_branch
          %686 = sbr.rel (%p684) target = $region36
        $region35: #{tpu_custom_call.1} parent=11 // pred_region
          %s688 = ssub.s32 16, 16
          %689 = vsyncadd [#allocation13], %s688
          %s691 = sshll.u32 [#allocation12], 4
          %s692 = int_to_ptr.vmem [resolvable:$true] %s691
          %694 = dma.hbm_to_vmem [thread:$0]  %s9, 16, %s692, [#allocation13]
        $region36: #{tpu_custom_call.1} parent=11 // pred_fallthru
          _
        // Predicated region
        $region37: #{tpu_custom_call.1} parent=11 // pred_check
          %p695 = pneg %p297
        $region38: #{tpu_custom_call.1} parent=11 // pred_check_branch
          %697 = sbr.rel (%p695) target = $region40
        $region39: #{tpu_custom_call.1} parent=11 // pred_region
          %s699 = ssub.s32 16, 16
          %700 = vsyncadd [#allocation13], %s699
          %s702 = sshll.u32 [#allocation14], 4
          %s703 = int_to_ptr.vmem [resolvable:$true] %s702
          %705 = dma.hbm_to_vmem [thread:$0]  %s10, 16, %s703, [#allocation13]
        $region40: #{tpu_custom_call.1} parent=11 // pred_fallthru
          _
        // Predicated region
        $region41: #{tpu_custom_call.1} parent=11 // pred_check
          %p706 = pneg %p318
        $region42: #{tpu_custom_call.1} parent=11 // pred_check_branch
          %708 = sbr.rel (%p706) target = $region44
        $region43: #{tpu_custom_call.1} parent=11 // pred_region
          _
        $region44: #{tpu_custom_call.1} parent=11 // pred_fallthru
          _
        // Predicated region
        $region45: #{tpu_custom_call.1} parent=11 // pred_check
          %p709 = pneg %p339
        $region46: #{tpu_custom_call.1} parent=11 // pred_check_branch
          %711 = sbr.rel (%p709) target = $region48
        $region47: #{tpu_custom_call.1} parent=11 // pred_region
          %s713 = ssub.s32 16, 16
          %714 = vsyncadd [#allocation16], %s713
          %s716 = sshll.u32 [#allocation15], 4
          %s717 = int_to_ptr.vmem [resolvable:$true] %s716
          %719 = dma.hbm_to_vmem [thread:$0]  %s12, 16, %s717, [#allocation16]
        $region48: #{tpu_custom_call.1} parent=11 // pred_fallthru
          _
        // Predicated region
        $region49: #{tpu_custom_call.1} parent=11 // pred_check
          %p720 = pneg %p360
        $region50: #{tpu_custom_call.1} parent=11 // pred_check_branch
          %722 = sbr.rel (%p720) target = $region52
        $region51: #{tpu_custom_call.1} parent=11 // pred_region
          _
        $region52: #{tpu_custom_call.1} parent=11 // pred_fallthru
          _
        // Predicated region
        $region53: #{tpu_custom_call.1} parent=11 // pred_check
          %p723 = pneg %p381
        $region54: #{tpu_custom_call.1} parent=11 // pred_check_branch
          %725 = sbr.rel (%p723) target = $region56
        $region55: #{tpu_custom_call.1} parent=11 // pred_region
          %s727 = ssub.s32 16, 16
          %728 = vsyncadd [#allocation16], %s727
          %s730 = sshll.u32 [#allocation17], 4
          %s731 = int_to_ptr.vmem [resolvable:$true] %s730
          %733 = dma.hbm_to_vmem [thread:$0]  %s14, 16, %s731, [#allocation16]
        $region56: #{tpu_custom_call.1} parent=11 // pred_fallthru
          _
        // Predicated region
        $region57: #{tpu_custom_call.1} parent=11 // pred_check
          %p734 = pneg %p402
        $region58: #{tpu_custom_call.1} parent=11 // pred_check_branch
          %736 = sbr.rel (%p734) target = $region60
        $region59: #{tpu_custom_call.1} parent=11 // pred_region
          %s738 = ssub.s32 512, 512
          %739 = vsyncadd [#allocation19], %s738
          %s740 = sshll.u32 [#allocation18], 4
          %s741 = int_to_ptr.vmem [resolvable:$true] %s740
          %746 = dma.hbm_to_vmem [thread:$0]  %s15, 512, %s741, [#allocation19], 128, 128, 8
        $region60: #{tpu_custom_call.1} parent=11 // pred_fallthru
          _
        // Predicated region
        $region61: #{tpu_custom_call.1} parent=11 // pred_check
          %p747 = pneg %p423
        $region62: #{tpu_custom_call.1} parent=11 // pred_check_branch
          %749 = sbr.rel (%p747) target = $region64
        $region63: #{tpu_custom_call.1} parent=11 // pred_region
          %s751 = ssub.s32 512, 512
          %752 = vsyncadd [#allocation19], %s751
          %s753 = sshll.u32 [#allocation20], 4
          %s754 = int_to_ptr.vmem [resolvable:$true] %s753
          %759 = dma.hbm_to_vmem [thread:$0]  %s16, 512, %s754, [#allocation19], 128, 128, 8
        $region64: #{tpu_custom_call.1} parent=11 // pred_fallthru
          _
        // Predicated region
        $region65: #{tpu_custom_call.1} parent=11 // pred_check
          %p760 = pneg %p444
        $region66: #{tpu_custom_call.1} parent=11 // pred_check_branch
          %762 = sbr.rel (%p760) target = $region68
        $region67: #{tpu_custom_call.1} parent=11 // pred_region
          %s764 = ssub.s32 16, 16
          %765 = vsyncadd [#allocation22], %s764
          %s767 = sshll.u32 [#allocation21], 4
          %s768 = int_to_ptr.vmem [resolvable:$true] %s767
          %770 = dma.hbm_to_vmem [thread:$0]  %s17, 16, %s768, [#allocation22]
        $region68: #{tpu_custom_call.1} parent=11 // pred_fallthru
          _
        // Predicated region
        $region69: #{tpu_custom_call.1} parent=11 // pred_check
          %p771 = pneg %p465
        $region70: #{tpu_custom_call.1} parent=11 // pred_check_branch
          %773 = sbr.rel (%p771) target = $region72
        $region71: #{tpu_custom_call.1} parent=11 // pred_region
          _
        $region72: #{tpu_custom_call.1} parent=11 // pred_fallthru
          _
        // Predicated region
        $region73: #{tpu_custom_call.1} parent=11 // pred_check
          %p774 = pneg %p486
        $region74: #{tpu_custom_call.1} parent=11 // pred_check_branch
          %776 = sbr.rel (%p774) target = $region76
        $region75: #{tpu_custom_call.1} parent=11 // pred_region
          _
        $region76: #{tpu_custom_call.1} parent=11 // pred_fallthru
          _
        // Predicated region
        $region77: #{tpu_custom_call.1} parent=11 // pred_check
          %p777 = pneg %p507
        $region78: #{tpu_custom_call.1} parent=11 // pred_check_branch
          %779 = sbr.rel (%p777) target = $region80
        $region79: #{tpu_custom_call.1} parent=11 // pred_region
          %s781 = ssub.s32 512, 512
          %782 = vsyncadd [#allocation22], %s781
          %s783 = sshll.u32 [#allocation23], 4
          %s784 = int_to_ptr.vmem [resolvable:$true] %s783
          %789 = dma.hbm_to_vmem [thread:$0]  %s20, 512, %s784, [#allocation22], 128, 128, 8
        $region80: #{tpu_custom_call.1} parent=11 // pred_fallthru
          _
        // Predicated region
        $region81: #{tpu_custom_call.1} parent=11 // pred_check
          %p790 = pneg %p528
        $region82: #{tpu_custom_call.1} parent=11 // pred_check_branch
          %792 = sbr.rel (%p790) target = $region84
        $region83: #{tpu_custom_call.1} parent=11 // pred_region
          _
        $region84: #{tpu_custom_call.1} parent=11 // pred_fallthru
          _
        // Predicated region
        $region85: #{tpu_custom_call.1} parent=11 // pred_check
          %p793 = pneg %p549
        $region86: #{tpu_custom_call.1} parent=11 // pred_check_branch
          %795 = sbr.rel (%p793) target = $region88
        $region87: #{tpu_custom_call.1} parent=11 // pred_region
          _
        $region88: #{tpu_custom_call.1} parent=11 // pred_fallthru
          _
        // Predicated region
        $region89: #{tpu_custom_call.1} parent=11 // pred_check
          %p796 = pneg %p570
        $region90: #{tpu_custom_call.1} parent=11 // pred_check_branch
          %798 = sbr.rel (%p796) target = $region92
        $region91: #{tpu_custom_call.1} parent=11 // pred_region
          _
        $region92: #{tpu_custom_call.1} parent=11 // pred_fallthru
          _
        // Predicated region
        $region93: #{tpu_custom_call.1} parent=11 // pred_check
          %p799 = pneg %p591
        $region94: #{tpu_custom_call.1} parent=11 // pred_check_branch
          %801 = sbr.rel (%p799) target = $region96
        $region95: #{tpu_custom_call.1} parent=11 // pred_region
          _
        $region96: #{tpu_custom_call.1} parent=11 // pred_fallthru
          _
        // Predicated region
        $region97: #{tpu_custom_call.1} parent=11 // pred_check
          %p802 = pneg %p612
        $region98: #{tpu_custom_call.1} parent=11 // pred_check_branch
          %804 = sbr.rel (%p802) target = $region100
        $region99: #{tpu_custom_call.1} parent=11 // pred_region
          _
        $region100: #{tpu_custom_call.1} parent=11 // pred_fallthru
          _
      $region12: #{tpu_custom_call.1} parent=5 // pred_fallthru
        _
      %p805 = scmp.lt.s32.totalorder %s46, 2
      // Predicated region
      $region101: #{tpu_custom_call.1} parent=5 // pred_check
        %p806 = pneg %p805
      $region102: #{tpu_custom_call.1} parent=5 // pred_check_branch
        %808 = sbr.rel (%p806) target = $region104
      $region103: #{tpu_custom_call.1} parent=5 // pred_region
        // Predicated region
        $region105: #{tpu_custom_call.1} parent=103 // pred_check
          %p809 = pneg %p66
        $region106: #{tpu_custom_call.1} parent=103 // pred_check_branch
          %811 = sbr.rel (%p809) target = $region108
        $region107: #{tpu_custom_call.1} parent=103 // pred_region
          %s812 = sand.u32 %s56, 1
          %s813 = scalar_lea.sflag [#allocation4], %s812
          %s814 = sand.u32 %s56, 1
          %s815 = smul.addr %s814, 8
          %s816 = scalar_lea.vmem [#allocation3], %s815
          %s818 = ssub.s32 128, 128
          %819 = vsyncadd %s813, %s818
          %s820 = smul.addr %s46, 128
          %s821 = scalar_lea.hbm %s0, %s820
          %s823 = sshll.u32 %s816, 4
          %s824 = int_to_ptr.vmem [resolvable:$true] %s823
          %826 = dma.hbm_to_vmem [thread:$0]  %s821, 128, %s824, %s813
        $region108: #{tpu_custom_call.1} parent=103 // pred_fallthru
          _
        // Predicated region
        $region109: #{tpu_custom_call.1} parent=103 // pred_check
          %p827 = pneg %p92
        $region110: #{tpu_custom_call.1} parent=103 // pred_check_branch
          %829 = sbr.rel (%p827) target = $region112
        $region111: #{tpu_custom_call.1} parent=103 // pred_region
          %p830 = scmp.lt.s32.totalorder %s46, 1
          %s831 = scalar_select %p830, %s46, 1
          %s832 = smul.addr %s831, 2
          %s833 = smul.addr %s832, 8
          %s834 = scalar_lea.vmem %s1, %s833
        $region112: #{tpu_custom_call.1} parent=103 // pred_fallthru
          _
        // Predicated region
        $region113: #{tpu_custom_call.1} parent=103 // pred_check
          %p835 = pneg %p118
        $region114: #{tpu_custom_call.1} parent=103 // pred_check_branch
          %837 = sbr.rel (%p835) target = $region116
        $region115: #{tpu_custom_call.1} parent=103 // pred_region
          %s838 = sand.u32 %s46, 1
          %s839 = scalar_lea.sflag [#allocation7], %s838
          %s840 = sand.u32 %s108, 1
          %s841 = smul.addr %s840, 2
          %s842 = scalar_lea.vmem [#allocation6], %s841
          %s844 = ssub.s32 32, 32
          %845 = vsyncadd %s839, %s844
          %s846 = smul.addr %s46, 32
          %s847 = scalar_lea.hbm %s2, %s846
          %s849 = sshll.u32 %s842, 4
          %s850 = int_to_ptr.vmem [resolvable:$true] %s849
          %852 = dma.hbm_to_vmem [thread:$0]  %s847, 32, %s850, %s839
        $region116: #{tpu_custom_call.1} parent=103 // pred_fallthru
          _
        // Predicated region
        $region117: #{tpu_custom_call.1} parent=103 // pred_check
          %p853 = pneg %p144
        $region118: #{tpu_custom_call.1} parent=103 // pred_check_branch
          %855 = sbr.rel (%p853) target = $region120
        $region119: #{tpu_custom_call.1} parent=103 // pred_region
          %s856 = sand.u32 %s46, 1
          %s857 = scalar_lea.sflag [#allocation7], %s856
          %s858 = sand.u32 %s134, 1
          %s859 = smul.addr %s858, 2
          %s860 = scalar_lea.vmem [#allocation8], %s859
          %s862 = ssub.s32 32, 32
          %863 = vsyncadd %s857, %s862
          %s864 = smul.addr %s46, 32
          %s865 = scalar_lea.hbm %s3, %s864
          %s867 = sshll.u32 %s860, 4
          %s868 = int_to_ptr.vmem [resolvable:$true] %s867
          %870 = dma.hbm_to_vmem [thread:$0]  %s865, 32, %s868, %s857
        $region120: #{tpu_custom_call.1} parent=103 // pred_fallthru
          _
      $region104: #{tpu_custom_call.1} parent=5 // pred_fallthru
        _
      %p871 = scmp.le.s32.totalorder 1, %s46
      %p872 = scmp.lt.s32.totalorder %s46, 3
      %p873 = pnand %p871, %p872
      %p874 = pneg %p873
      // Predicated region
      $region121: #{tpu_custom_call.1} parent=5 // pred_check
        _
      $region122: #{tpu_custom_call.1} parent=5 // pred_check_branch
        %876 = sbr.rel (%p873) target = $region124
      $region123: #{tpu_custom_call.1} parent=5 // pred_region
        %s877 = ssub.s32 %s46, 1
        %s878 = sand.u32 %s59, 1
        %s879 = scalar_lea.sflag [#allocation4], %s878
        %s880 = sand.u32 %s59, 1
        %s881 = smul.addr %s880, 8
        %s882 = scalar_lea.vmem [#allocation3], %s881
        // Predicated region
        $region125: #{tpu_custom_call.1} parent=123 // pred_check
          %p883 = pneg %p72
        $region126: #{tpu_custom_call.1} parent=123 // pred_check_branch
          %885 = sbr.rel (%p883) target = $region128
        $region127: #{tpu_custom_call.1} parent=123 // pred_region
          %886 = dma.done %s879, 128
        $region128: #{tpu_custom_call.1} parent=123 // pred_fallthru
          _
        %s887 = sand.u32 %s51, 1
        %s888 = scalar_lea.sflag [#allocation7], %s887
        %s889 = sand.u32 %s111, 1
        %s890 = smul.addr %s889, 2
        %s891 = scalar_lea.vmem [#allocation6], %s890
        // Predicated region
        $region129: #{tpu_custom_call.1} parent=123 // pred_check
          %p892 = pneg %p124
        $region130: #{tpu_custom_call.1} parent=123 // pred_check_branch
          %894 = sbr.rel (%p892) target = $region132
        $region131: #{tpu_custom_call.1} parent=123 // pred_region
          %895 = dma.done %s888, 32
        $region132: #{tpu_custom_call.1} parent=123 // pred_fallthru
          _
        %s896 = sand.u32 %s51, 1
        %s897 = scalar_lea.sflag [#allocation7], %s896
        %s898 = sand.u32 %s137, 1
        %s899 = smul.addr %s898, 2
        %s900 = scalar_lea.vmem [#allocation8], %s899
        // Predicated region
        $region133: #{tpu_custom_call.1} parent=123 // pred_check
          %p901 = pneg %p150
        $region134: #{tpu_custom_call.1} parent=123 // pred_check_branch
          %903 = sbr.rel (%p901) target = $region136
        $region135: #{tpu_custom_call.1} parent=123 // pred_region
          %904 = dma.done %s897, 32
        $region136: #{tpu_custom_call.1} parent=123 // pred_fallthru
          _
        // Predicated region
        $region137: #{tpu_custom_call.1} parent=123 // pred_check
          %p905 = pneg %p192
        $region138: #{tpu_custom_call.1} parent=123 // pred_check_branch
          %907 = sbr.rel (%p905) target = $region140
        $region139: #{tpu_custom_call.1} parent=123 // pred_region
          %908 = dma.done [#allocation10], 16
        $region140: #{tpu_custom_call.1} parent=123 // pred_fallthru
          _
        // Predicated region
        $region141: #{tpu_custom_call.1} parent=123 // pred_check
          %p909 = pneg %p255
        $region142: #{tpu_custom_call.1} parent=123 // pred_check_branch
          %911 = sbr.rel (%p909) target = $region144
        $region143: #{tpu_custom_call.1} parent=123 // pred_region
          %912 = dma.done [#allocation10], 16
        $region144: #{tpu_custom_call.1} parent=123 // pred_fallthru
          _
        // Predicated region
        $region145: #{tpu_custom_call.1} parent=123 // pred_check
          %p913 = pneg %p276
        $region146: #{tpu_custom_call.1} parent=123 // pred_check_branch
          %915 = sbr.rel (%p913) target = $region148
        $region147: #{tpu_custom_call.1} parent=123 // pred_region
          %916 = dma.done [#allocation13], 16
        $region148: #{tpu_custom_call.1} parent=123 // pred_fallthru
          _
        // Predicated region
        $region149: #{tpu_custom_call.1} parent=123 // pred_check
          %p917 = pneg %p297
        $region150: #{tpu_custom_call.1} parent=123 // pred_check_branch
          %919 = sbr.rel (%p917) target = $region152
        $region151: #{tpu_custom_call.1} parent=123 // pred_region
          %920 = dma.done [#allocation13], 16
        $region152: #{tpu_custom_call.1} parent=123 // pred_fallthru
          _
        // Predicated region
        $region153: #{tpu_custom_call.1} parent=123 // pred_check
          %p921 = pneg %p339
        $region154: #{tpu_custom_call.1} parent=123 // pred_check_branch
          %923 = sbr.rel (%p921) target = $region156
        $region155: #{tpu_custom_call.1} parent=123 // pred_region
          %924 = dma.done [#allocation16], 16
        $region156: #{tpu_custom_call.1} parent=123 // pred_fallthru
          _
        // Predicated region
        $region157: #{tpu_custom_call.1} parent=123 // pred_check
          %p925 = pneg %p381
        $region158: #{tpu_custom_call.1} parent=123 // pred_check_branch
          %927 = sbr.rel (%p925) target = $region160
        $region159: #{tpu_custom_call.1} parent=123 // pred_region
          %928 = dma.done [#allocation16], 16
        $region160: #{tpu_custom_call.1} parent=123 // pred_fallthru
          _
        // Predicated region
        $region161: #{tpu_custom_call.1} parent=123 // pred_check
          %p929 = pneg %p402
        $region162: #{tpu_custom_call.1} parent=123 // pred_check_branch
          %931 = sbr.rel (%p929) target = $region164
        $region163: #{tpu_custom_call.1} parent=123 // pred_region
          %932 = dma.done [#allocation19], 512
        $region164: #{tpu_custom_call.1} parent=123 // pred_fallthru
          _
        // Predicated region
        $region165: #{tpu_custom_call.1} parent=123 // pred_check
          %p933 = pneg %p423
        $region166: #{tpu_custom_call.1} parent=123 // pred_check_branch
          %935 = sbr.rel (%p933) target = $region168
        $region167: #{tpu_custom_call.1} parent=123 // pred_region
          %936 = dma.done [#allocation19], 512
        $region168: #{tpu_custom_call.1} parent=123 // pred_fallthru
          _
        // Predicated region
        $region169: #{tpu_custom_call.1} parent=123 // pred_check
          %p937 = pneg %p444
        $region170: #{tpu_custom_call.1} parent=123 // pred_check_branch
          %939 = sbr.rel (%p937) target = $region172
        $region171: #{tpu_custom_call.1} parent=123 // pred_region
          %940 = dma.done [#allocation22], 16
        $region172: #{tpu_custom_call.1} parent=123 // pred_fallthru
          _
        // Predicated region
        $region173: #{tpu_custom_call.1} parent=123 // pred_check
          %p941 = pneg %p507
        $region174: #{tpu_custom_call.1} parent=123 // pred_check_branch
          %943 = sbr.rel (%p941) target = $region176
        $region175: #{tpu_custom_call.1} parent=123 // pred_region
          %944 = dma.done [#allocation22], 512
        $region176: #{tpu_custom_call.1} parent=123 // pred_fallthru
          _
        %s945 = sand.u32 %s59, 1
        %s946 = scalar_lea.sflag [#allocation4], %s945
        %s947 = sand.u32 %s59, 1
        %s948 = smul.addr %s947, 8
        %s949 = scalar_lea.vmem [#allocation3], %s948
        %p950 = pneg %p72
        %p951 = pneg %p69
        %p952 = scmp.lt.s32.totalorder %s51, 1
        %s953 = scalar_select %p952, %s51, 1
        %s954 = smul.addr %s953, 2
        %s955 = smul.addr %s954, 8
        %s956 = scalar_lea.vmem %s1, %s955
        %p957 = pneg %p98
        %p958 = pneg %p95
        %s959 = sand.u32 %s51, 1
        %s960 = scalar_lea.sflag [#allocation7], %s959
        %s961 = sand.u32 %s111, 1
        %s962 = smul.addr %s961, 2
        %s963 = scalar_lea.vmem [#allocation6], %s962
        %p964 = pneg %p124
        %p965 = pneg %p121
        %s966 = sand.u32 %s51, 1
        %s967 = scalar_lea.sflag [#allocation7], %s966
        %s968 = sand.u32 %s137, 1
        %s969 = smul.addr %s968, 2
        %s970 = scalar_lea.vmem [#allocation8], %s969
        %p971 = pneg %p150
        %p972 = pneg %p147
        %p973 = pneg %p171
        %p974 = pneg %p168
        %p975 = pneg %p192
        %p976 = pneg %p189
        %p977 = pneg %p213
        %p978 = pneg %p210
        %p979 = pneg %p234
        %p980 = pneg %p231
        %p981 = pneg %p255
        %p982 = pneg %p252
        %p983 = pneg %p276
        %p984 = pneg %p273
        %p985 = pneg %p297
        %p986 = pneg %p294
        %p987 = pneg %p318
        %p988 = pneg %p315
        %p989 = pneg %p339
        %p990 = pneg %p336
        %p991 = pneg %p360
        %p992 = pneg %p357
        %p993 = pneg %p381
        %p994 = pneg %p378
        %p995 = pneg %p402
        %p996 = pneg %p399
        %p997 = pneg %p423
        %p998 = pneg %p420
        %p999 = pneg %p444
        %p1000 = pneg %p441
        %p1001 = pneg %p465
        %p1002 = pneg %p462
        %p1003 = pneg %p486
        %p1004 = pneg %p483
        %p1005 = pneg %p507
        %p1006 = pneg %p504
        %p1007 = pneg %p528
        %p1008 = pneg %p525
        %p1009 = pneg %p549
        %p1010 = pneg %p546
        %p1011 = pneg %p570
        %p1012 = pneg %p567
        %p1013 = pneg %p591
        %p1014 = pneg %p588
        %p1015 = pneg %p612
        %p1016 = pneg %p609
        %p1017 = pneg %p638
        %p1018 = pneg %p635
        %s1019 = sand.u32 %s625, 1
        %s1020 = scalar_lea.sflag [#allocation5], %s1019
        %s1021 = sand.u32 %s625, 1
        %s1022 = smul.addr %s1021, 8
        %s1023 = scalar_lea.vmem [#allocation24], %s1022
        %p1024 = scmp.lt.s32.totalorder %s51, 1
        %s1025 = scalar_select %p1024, %s51, 1
        %s1026 = smul.addr %s1025, 2
        %s1027 = smul.addr %s1026, 8
        %s1028 = scalar_lea.vmem %s1, %s1027
        %v1029 = vld [vmem:[%s882] sm:$0xff]
        %v1030 = vld [vmem:[%s1028] sm:$0xff]
        %v1031 = vld [vmem:[%s1028 + $0x8] sm:$0xff]
        %v1032 = vld [vmem:[%s4] sm:$0xff]
        %v1033 = vld [vmem:[%s4 + $0x8] sm:$0xff]
        %v1034 = vld [vmem:[%s4 + $0x10] sm:$0xff]
        %v1035 = vld [vmem:[%s4 + $0x18] sm:$0xff]
        %v1036 = vld [vmem:[#allocation9] sm:$0x1]
        %v1038 = vlaneseq
        %v1039 = vshrl.u32 %v1038, 7
        %v1040 = vsub.s32 0, %v1039
        %v1041 = vrot.slane %v1036, %v1040
        %vm1043 = vcmask 261120
        %v1045 = vsel %vm1043, %v1029, 0
        %1047 = vmatprep.subr.mxu0 0.0
        %1048 = vmatpush1.msra.mxu0 %v1032
        %1049 = vmatprep.subr.mxu0 0.0
        %1050 = vmatpush1.msra.mxu0 %v1033
        %1051 = vmatprep.subr.mxu0 0.0
        %1052 = vmatpush1.msra.mxu0 %v1034
        %1053 = vmatprep.subr.mxu0 0.0
        %1054 = vmatpush1.msra.mxu0 %v1035
        %1055 = vmatprep.subr.mxu0 0.0
        %1056 = vmatpush1.msra.mxu0 0.0
        %1057 = vmatprep.subr.mxu0 0.0
        %1058 = vmatpush1.msra.mxu0 0.0
        %1059 = vmatprep.subr.mxu0 0.0
        %1060 = vmatpush1.msra.mxu0 0.0
        %1061 = vmatprep.subr.mxu0 0.0
        %1062 = vmatpush1.msra.mxu0 0.0
        %1063 = vmatprep.subr.mxu0 0.0
        %1064 = vmatpush1.msra.mxu0 0.0
        %1065 = vmatprep.subr.mxu0 0.0
        %1066 = vmatpush1.msra.mxu0 0.0
        %1067 = vmatprep.subr.mxu0 0.0
        %1068 = vmatpush1.msra.mxu0 0.0
        %1069 = vmatprep.subr.mxu0 0.0
        %1070 = vmatpush1.msra.mxu0 0.0
        %1071 = vmatprep.subr.mxu0 0.0
        %1072 = vmatpush1.msra.mxu0 0.0
        %1073 = vmatprep.subr.mxu0 0.0
        %1074 = vmatpush1.msra.mxu0 0.0
        %1075 = vmatprep.subr.mxu0 0.0
        %1076 = vmatpush1.msra.mxu0 0.0
        %1077 = vmatprep.subr.mxu0 0.0
        %1078 = vmatpush1.msra.mxu0 0.0
        %1079 = vmatprep.subr.mxu0 0.0
        %1080 = vmatpush1.msra.mxu0 0.0
        %1081 = vmatprep.subr.mxu0 0.0
        %1082 = vmatpush1.msra.mxu0 0.0
        %1083 = vmatprep.subr.mxu0 0.0
        %1084 = vmatpush1.msra.mxu0 0.0
        %1085 = vmatprep.subr.mxu0 0.0
        %1086 = vmatpush1.msra.mxu0 0.0
        %1087 = vmatprep.subr.mxu0 0.0
        %1088 = vmatpush1.msra.mxu0 0.0
        %1089 = vmatprep.subr.mxu0 0.0
        %1090 = vmatpush1.msra.mxu0 0.0
        %1091 = vmatprep.subr.mxu0 0.0
        %1092 = vmatpush1.msra.mxu0 0.0
        %1093 = vmatprep.subr.mxu0 0.0
        %1094 = vmatpush1.msra.mxu0 0.0
        %1095 = vmatprep.subr.mxu0 0.0
        %1096 = vmatpush1.msra.mxu0 0.0
        %1097 = vmatprep.subr.mxu0 0.0
        %1098 = vmatpush1.msra.mxu0 0.0
        %1099 = vmatprep.subr.mxu0 0.0
        %1100 = vmatpush1.msra.mxu0 0.0
        %1101 = vmatprep.subr.mxu0 0.0
        %1102 = vmatpush1.msra.mxu0 0.0
        %1103 = vmatprep.subr.mxu0 0.0
        %1104 = vmatpush1.msra.mxu0 0.0
        %1105 = vmatprep.subr.mxu0 0.0
        %1106 = vmatpush1.msra.mxu0 0.0
        %1107 = vmatprep.subr.mxu0 0.0
        %1108 = vmatpush1.msra.mxu0 0.0
        %1109 = vmatprep.subr.mxu0 0.0
        %1110 = vmatpush1.msra.mxu0 0.0
        %1111 = vmatprep.mubr.f32.mxu0 0.0
        %1112 = vmatmul.mubr.f32.gmra.mrb[0].mxu0 %v1045
        %v1113 = vpop.f32.mrb[0].mxu0
        %v1114 = vadd.f32 %v1041, %v1113
        %v1115 = vpop.f32.mrb[0].mxu0
        %1116 = vdwg.mxu0
        %v1117 = vld [vmem:[%s891] sm:$0x3]
        %v1118 = vld [vmem:[%s6] sm:$0xff]
        %v1119 = vld [vmem:[%s6 + $0x8] sm:$0xff]
        %v1120 = vld [vmem:[%s6 + $0x10] sm:$0xff]
        %v1121 = vld [vmem:[%s6 + $0x18] sm:$0xff]
        %v1122 = vld [vmem:[%s7] sm:$0xff]
        %v1123 = vld [vmem:[%s7 + $0x8] sm:$0xff]
        %v1124 = vld [vmem:[%s7 + $0x10] sm:$0xff]
        %v1125 = vld [vmem:[%s7 + $0x18] sm:$0xff]
        %v1126 = vld [vmem:[#allocation11] sm:$0x1]
        %v1127 = vld [vmem:[#allocation12] sm:$0x1]
        %v1128 = vld [vmem:[#allocation14] sm:$0x1]
        %v1129 = vunpack.c.0.s8 %v1117
        %v1130 = vcvt.s32.f32 %v1129
        %vm1131 = vcmp.eq.f32.partialorder %v1130, 0.0
        %v1132 = vsel %vm1131, -1e+09, 0.0
        %v1134 = vlaneseq
        %v1135 = vshrl.u32 %v1134, 7
        %v1136 = vsub.s32 0, %v1135
        %v1137 = vrot.slane %v1126, %v1136
        %1139 = vmatprep.subr.mxu0 0.0
        %1140 = vmatpush1.msra.mxu0 %v1118
        %1141 = vmatprep.subr.mxu0 0.0
        %1142 = vmatpush1.msra.mxu0 %v1119
        %1143 = vmatprep.subr.mxu0 0.0
        %1144 = vmatpush1.msra.mxu0 %v1120
        %1145 = vmatprep.subr.mxu0 0.0
        %1146 = vmatpush1.msra.mxu0 %v1121
        %1147 = vmatprep.subr.mxu0 0.0
        %1148 = vmatpush1.msra.mxu0 0.0
        %1149 = vmatprep.subr.mxu0 0.0
        %1150 = vmatpush1.msra.mxu0 0.0
        %1151 = vmatprep.subr.mxu0 0.0
        %1152 = vmatpush1.msra.mxu0 0.0
        %1153 = vmatprep.subr.mxu0 0.0
        %1154 = vmatpush1.msra.mxu0 0.0
        %1155 = vmatprep.subr.mxu0 0.0
        %1156 = vmatpush1.msra.mxu0 0.0
        %1157 = vmatprep.subr.mxu0 0.0
        %1158 = vmatpush1.msra.mxu0 0.0
        %1159 = vmatprep.subr.mxu0 0.0
        %1160 = vmatpush1.msra.mxu0 0.0
        %1161 = vmatprep.subr.mxu0 0.0
        %1162 = vmatpush1.msra.mxu0 0.0
        %1163 = vmatprep.subr.mxu0 0.0
        %1164 = vmatpush1.msra.mxu0 0.0
        %1165 = vmatprep.subr.mxu0 0.0
        %1166 = vmatpush1.msra.mxu0 0.0
        %1167 = vmatprep.subr.mxu0 0.0
        %1168 = vmatpush1.msra.mxu0 0.0
        %1169 = vmatprep.subr.mxu0 0.0
        %1170 = vmatpush1.msra.mxu0 0.0
        %1171 = vmatprep.subr.mxu0 0.0
        %1172 = vmatpush1.msra.mxu0 0.0
        %1173 = vmatprep.subr.mxu0 0.0
        %1174 = vmatpush1.msra.mxu0 0.0
        %1175 = vmatprep.subr.mxu0 0.0
        %1176 = vmatpush1.msra.mxu0 0.0
        %1177 = vmatprep.subr.mxu0 0.0
        %1178 = vmatpush1.msra.mxu0 0.0
        %1179 = vmatprep.subr.mxu0 0.0
        %1180 = vmatpush1.msra.mxu0 0.0
        %1181 = vmatprep.subr.mxu0 0.0
        %1182 = vmatpush1.msra.mxu0 0.0
        %1183 = vmatprep.subr.mxu0 0.0
        %1184 = vmatpush1.msra.mxu0 0.0
        %1185 = vmatprep.subr.mxu0 0.0
        %1186 = vmatpush1.msra.mxu0 0.0
        %1187 = vmatprep.subr.mxu0 0.0
        %1188 = vmatpush1.msra.mxu0 0.0
        %1189 = vmatprep.subr.mxu0 0.0
        %1190 = vmatpush1.msra.mxu0 0.0
        %1191 = vmatprep.subr.mxu0 0.0
        %1192 = vmatpush1.msra.mxu0 0.0
        %1193 = vmatprep.subr.mxu0 0.0
        %1194 = vmatpush1.msra.mxu0 0.0
        %1195 = vmatprep.subr.mxu0 0.0
        %1196 = vmatpush1.msra.mxu0 0.0
        %1197 = vmatprep.subr.mxu0 0.0
        %1198 = vmatpush1.msra.mxu0 0.0
        %1199 = vmatprep.subr.mxu0 0.0
        %1200 = vmatpush1.msra.mxu0 0.0
        %1201 = vmatprep.subr.mxu0 0.0
        %1202 = vmatpush1.msra.mxu0 0.0
        %1203 = vmatprep.mubr.f32.mxu0 0.0
        %1204 = vmatmul.mubr.f32.gmra.mrb[0].mxu0 %v1045
        %v1205 = vpop.f32.mrb[0].mxu0
        %v1206 = vadd.f32 %v1137, %v1205
        %v1207 = vpop.f32.mrb[0].mxu0
        %1208 = vdwg.mxu0
        %1210 = vrot.lane.b32.xlu0 %v1114, 96
        %v1211 = vpop.permute.xlu0 %1210
        %vm1212 = vcmask 64512
        %v1213 = vsel %vm1212, %v1114, 0
        %v1215 = vsel %vm1212, %v1211, 0
        %1217 = vmatprep.subr.mxu0 0.0
        %1218 = vmatpush1.xpose.msra.mxu0 %v1215
        %1219 = vmatprep.subr.mxu0 0.0
        %1220 = vmatpush1.xpose.msra.mxu0 0.0
        %1221 = vmatprep.subr.mxu0 0.0
        %1222 = vmatpush1.xpose.msra.mxu0 0.0
        %1223 = vmatprep.subr.mxu0 0.0
        %1224 = vmatpush1.xpose.msra.mxu0 0.0
        %1225 = vmatprep.subr.mxu0 0.0
        %1226 = vmatpush1.xpose.msra.mxu0 0.0
        %1227 = vmatprep.subr.mxu0 0.0
        %1228 = vmatpush1.xpose.msra.mxu0 0.0
        %1229 = vmatprep.subr.mxu0 0.0
        %1230 = vmatpush1.xpose.msra.mxu0 0.0
        %1231 = vmatprep.subr.mxu0 0.0
        %1232 = vmatpush1.xpose.msra.mxu0 0.0
        %1233 = vmatprep.subr.mxu0 0.0
        %1234 = vmatpush1.xpose.msra.mxu0 0.0
        %1235 = vmatprep.subr.mxu0 0.0
        %1236 = vmatpush1.xpose.msra.mxu0 0.0
        %1237 = vmatprep.subr.mxu0 0.0
        %1238 = vmatpush1.xpose.msra.mxu0 0.0
        %1239 = vmatprep.subr.mxu0 0.0
        %1240 = vmatpush1.xpose.msra.mxu0 0.0
        %1241 = vmatprep.subr.mxu0 0.0
        %1242 = vmatpush1.xpose.msra.mxu0 0.0
        %1243 = vmatprep.subr.mxu0 0.0
        %1244 = vmatpush1.xpose.msra.mxu0 0.0
        %1245 = vmatprep.subr.mxu0 0.0
        %1246 = vmatpush1.xpose.msra.mxu0 0.0
        %1247 = vmatprep.subr.mxu0 0.0
        %1248 = vmatpush1.xpose.msra.mxu0 0.0
        %1249 = vmatprep.subr.mxu0 0.0
        %1250 = vmatpush1.xpose.msra.mxu0 0.0
        %1251 = vmatprep.subr.mxu0 0.0
        %1252 = vmatpush1.xpose.msra.mxu0 0.0
        %1253 = vmatprep.subr.mxu0 0.0
        %1254 = vmatpush1.xpose.msra.mxu0 0.0
        %1255 = vmatprep.subr.mxu0 0.0
        %1256 = vmatpush1.xpose.msra.mxu0 0.0
        %1257 = vmatprep.subr.mxu0 0.0
        %1258 = vmatpush1.xpose.msra.mxu0 0.0
        %1259 = vmatprep.subr.mxu0 0.0
        %1260 = vmatpush1.xpose.msra.mxu0 0.0
        %1261 = vmatprep.subr.mxu0 0.0
        %1262 = vmatpush1.xpose.msra.mxu0 0.0
        %1263 = vmatprep.subr.mxu0 0.0
        %1264 = vmatpush1.xpose.msra.mxu0 0.0
        %1265 = vmatprep.subr.mxu0 0.0
        %1266 = vmatpush1.xpose.msra.mxu0 0.0
        %1267 = vmatprep.subr.mxu0 0.0
        %1268 = vmatpush1.xpose.msra.mxu0 0.0
        %1269 = vmatprep.subr.mxu0 0.0
        %1270 = vmatpush1.xpose.msra.mxu0 0.0
        %1271 = vmatprep.subr.mxu0 0.0
        %1272 = vmatpush1.xpose.msra.mxu0 0.0
        %1273 = vmatprep.subr.mxu0 0.0
        %1274 = vmatpush1.xpose.msra.mxu0 0.0
        %1275 = vmatprep.subr.mxu0 0.0
        %1276 = vmatpush1.xpose.msra.mxu0 0.0
        %1277 = vmatprep.subr.mxu0 0.0
        %1278 = vmatpush1.xpose.msra.mxu0 0.0
        %1279 = vmatprep.subr.mxu0 0.0
        %1280 = vmatpush1.xpose.msra.mxu0 0.0
        %1281 = vmatprep.mubr.f32.mxu0 0.0
        %1282 = vmatmul.mubr.f32.gmra.mrb[0].mxu0 %v1213
        %v1283 = vpop.f32.mrb[0].mxu0
        %v1284 = vadd.f32 0.0, %v1283
        %v1285 = vpop.f32.mrb[0].mxu0
        %1286 = vdwg.mxu0
        %v1287 = vmul.f32 %v1284, 0.35355338
        %v1288 = vadd.f32 %v1287, %v1132
        %v1289 = vsel %vm1212, %v1288, -inf
        %1290 = vmax.xlane.f32.xlu0 %v1289
        %v1291 = vpop.xlane.xlu0 %1290
        %v1292 = vsub.f32 %v1288, %v1291
        %v1293 = vmul.f32 %v1292, 1.442695
        %v1294 = vpow.pop %v1293
        %v1295 = vsel %vm1212, %v1294, 0.0
        %1296 = vadd.xlane.f32.xlu0 %v1295
        %v1297 = vpop.xlane.xlu0 %1296
        %v1298 = vrcp.pop %v1297
        %v1299 = vmul.f32 %v1294, %v1298
        %1300 = vrot.lane.b32.xlu0 %v1114, 64
        %v1301 = vpop.permute.xlu0 %1300
        %v1304 = vsel %vm1212, %v1299, 0
        %1306 = vmatprep.subr.mxu0 0.0
        %1307 = vmatpush1.msra.mxu0 %v1301
        %1308 = vmatprep.subr.mxu0 0.0
        %1309 = vmatpush1.msra.mxu0 0.0
        %1310 = vmatprep.subr.mxu0 0.0
        %1311 = vmatpush1.msra.mxu0 0.0
        %1312 = vmatprep.subr.mxu0 0.0
        %1313 = vmatpush1.msra.mxu0 0.0
        %1314 = vmatprep.subr.mxu0 0.0
        %1315 = vmatpush1.msra.mxu0 0.0
        %1316 = vmatprep.subr.mxu0 0.0
        %1317 = vmatpush1.msra.mxu0 0.0
        %1318 = vmatprep.subr.mxu0 0.0
        %1319 = vmatpush1.msra.mxu0 0.0
        %1320 = vmatprep.subr.mxu0 0.0
        %1321 = vmatpush1.msra.mxu0 0.0
        %1322 = vmatprep.subr.mxu0 0.0
        %1323 = vmatpush1.msra.mxu0 0.0
        %1324 = vmatprep.subr.mxu0 0.0
        %1325 = vmatpush1.msra.mxu0 0.0
        %1326 = vmatprep.subr.mxu0 0.0
        %1327 = vmatpush1.msra.mxu0 0.0
        %1328 = vmatprep.subr.mxu0 0.0
        %1329 = vmatpush1.msra.mxu0 0.0
        %1330 = vmatprep.subr.mxu0 0.0
        %1331 = vmatpush1.msra.mxu0 0.0
        %1332 = vmatprep.subr.mxu0 0.0
        %1333 = vmatpush1.msra.mxu0 0.0
        %1334 = vmatprep.subr.mxu0 0.0
        %1335 = vmatpush1.msra.mxu0 0.0
        %1336 = vmatprep.subr.mxu0 0.0
        %1337 = vmatpush1.msra.mxu0 0.0
        %1338 = vmatprep.subr.mxu0 0.0
        %1339 = vmatpush1.msra.mxu0 0.0
        %1340 = vmatprep.subr.mxu0 0.0
        %1341 = vmatpush1.msra.mxu0 0.0
        %1342 = vmatprep.subr.mxu0 0.0
        %1343 = vmatpush1.msra.mxu0 0.0
        %1344 = vmatprep.subr.mxu0 0.0
        %1345 = vmatpush1.msra.mxu0 0.0
        %1346 = vmatprep.subr.mxu0 0.0
        %1347 = vmatpush1.msra.mxu0 0.0
        %1348 = vmatprep.subr.mxu0 0.0
        %1349 = vmatpush1.msra.mxu0 0.0
        %1350 = vmatprep.subr.mxu0 0.0
        %1351 = vmatpush1.msra.mxu0 0.0
        %1352 = vmatprep.subr.mxu0 0.0
        %1353 = vmatpush1.msra.mxu0 0.0
        %1354 = vmatprep.subr.mxu0 0.0
        %1355 = vmatpush1.msra.mxu0 0.0
        %1356 = vmatprep.subr.mxu0 0.0
        %1357 = vmatpush1.msra.mxu0 0.0
        %1358 = vmatprep.subr.mxu0 0.0
        %1359 = vmatpush1.msra.mxu0 0.0
        %1360 = vmatprep.subr.mxu0 0.0
        %1361 = vmatpush1.msra.mxu0 0.0
        %1362 = vmatprep.subr.mxu0 0.0
        %1363 = vmatpush1.msra.mxu0 0.0
        %1364 = vmatprep.subr.mxu0 0.0
        %1365 = vmatpush1.msra.mxu0 0.0
        %1366 = vmatprep.subr.mxu0 0.0
        %1367 = vmatpush1.msra.mxu0 0.0
        %1368 = vmatprep.subr.mxu0 0.0
        %1369 = vmatpush1.msra.mxu0 0.0
        %1370 = vmatprep.mubr.f32.mxu0 0.0
        %1371 = vmatmul.mubr.f32.gmra.mrb[0].mxu0 %v1304
        %v1372 = vpop.f32.mrb[0].mxu0
        %v1373 = vadd.f32 0.0, %v1372
        %v1374 = vpop.f32.mrb[0].mxu0
        %1375 = vdwg.mxu0
        %1376 = vst.msk [vmem:[#allocation2] sm:$0xff] %vm1212, %v1373
        %1377 = vrot.lane.b32.xlu0 %v1114, 120
        %v1378 = vpop.permute.xlu0 %1377
        %1379 = vrot.lane.b32.xlu0 %v1114, 88
        %v1380 = vpop.permute.xlu0 %1379
        %v1381 = vsel %vm1212, %v1378, 0
        %v1383 = vsel %vm1212, %v1380, 0
        %1385 = vmatprep.subr.mxu0 0.0
        %1386 = vmatpush1.xpose.msra.mxu0 %v1383
        %1387 = vmatprep.subr.mxu0 0.0
        %1388 = vmatpush1.xpose.msra.mxu0 0.0
        %1389 = vmatprep.subr.mxu0 0.0
        %1390 = vmatpush1.xpose.msra.mxu0 0.0
        %1391 = vmatprep.subr.mxu0 0.0
        %1392 = vmatpush1.xpose.msra.mxu0 0.0
        %1393 = vmatprep.subr.mxu0 0.0
        %1394 = vmatpush1.xpose.msra.mxu0 0.0
        %1395 = vmatprep.subr.mxu0 0.0
        %1396 = vmatpush1.xpose.msra.mxu0 0.0
        %1397 = vmatprep.subr.mxu0 0.0
        %1398 = vmatpush1.xpose.msra.mxu0 0.0
        %1399 = vmatprep.subr.mxu0 0.0
        %1400 = vmatpush1.xpose.msra.mxu0 0.0
        %1401 = vmatprep.subr.mxu0 0.0
        %1402 = vmatpush1.xpose.msra.mxu0 0.0
        %1403 = vmatprep.subr.mxu0 0.0
        %1404 = vmatpush1.xpose.msra.mxu0 0.0
        %1405 = vmatprep.subr.mxu0 0.0
        %1406 = vmatpush1.xpose.msra.mxu0 0.0
        %1407 = vmatprep.subr.mxu0 0.0
        %1408 = vmatpush1.xpose.msra.mxu0 0.0
        %1409 = vmatprep.subr.mxu0 0.0
        %1410 = vmatpush1.xpose.msra.mxu0 0.0
        %1411 = vmatprep.subr.mxu0 0.0
        %1412 = vmatpush1.xpose.msra.mxu0 0.0
        %1413 = vmatprep.subr.mxu0 0.0
        %1414 = vmatpush1.xpose.msra.mxu0 0.0
        %1415 = vmatprep.subr.mxu0 0.0
        %1416 = vmatpush1.xpose.msra.mxu0 0.0
        %1417 = vmatprep.subr.mxu0 0.0
        %1418 = vmatpush1.xpose.msra.mxu0 0.0
        %1419 = vmatprep.subr.mxu0 0.0
        %1420 = vmatpush1.xpose.msra.mxu0 0.0
        %1421 = vmatprep.subr.mxu0 0.0
        %1422 = vmatpush1.xpose.msra.mxu0 0.0
        %1423 = vmatprep.subr.mxu0 0.0
        %1424 = vmatpush1.xpose.msra.mxu0 0.0
        %1425 = vmatprep.subr.mxu0 0.0
        %1426 = vmatpush1.xpose.msra.mxu0 0.0
        %1427 = vmatprep.subr.mxu0 0.0
        %1428 = vmatpush1.xpose.msra.mxu0 0.0
        %1429 = vmatprep.subr.mxu0 0.0
        %1430 = vmatpush1.xpose.msra.mxu0 0.0
        %1431 = vmatprep.subr.mxu0 0.0
        %1432 = vmatpush1.xpose.msra.mxu0 0.0
        %1433 = vmatprep.subr.mxu0 0.0
        %1434 = vmatpush1.xpose.msra.mxu0 0.0
        %1435 = vmatprep.subr.mxu0 0.0
        %1436 = vmatpush1.xpose.msra.mxu0 0.0
        %1437 = vmatprep.subr.mxu0 0.0
        %1438 = vmatpush1.xpose.msra.mxu0 0.0
        %1439 = vmatprep.subr.mxu0 0.0
        %1440 = vmatpush1.xpose.msra.mxu0 0.0
        %1441 = vmatprep.subr.mxu0 0.0
        %1442 = vmatpush1.xpose.msra.mxu0 0.0
        %1443 = vmatprep.subr.mxu0 0.0
        %1444 = vmatpush1.xpose.msra.mxu0 0.0
        %1445 = vmatprep.subr.mxu0 0.0
        %1446 = vmatpush1.xpose.msra.mxu0 0.0
        %1447 = vmatprep.subr.mxu0 0.0
        %1448 = vmatpush1.xpose.msra.mxu0 0.0
        %1449 = vmatprep.mubr.f32.mxu0 0.0
        %1450 = vmatmul.mubr.f32.gmra.mrb[0].mxu0 %v1381
        %v1451 = vpop.f32.mrb[0].mxu0
        %v1452 = vadd.f32 0.0, %v1451
        %v1453 = vpop.f32.mrb[0].mxu0
        %1454 = vdwg.mxu0
        %v1455 = vmul.f32 %v1452, 0.35355338
        %v1456 = vadd.f32 %v1455, %v1132
        %v1457 = vsel %vm1212, %v1456, -inf
        %1458 = vmax.xlane.f32.xlu0 %v1457
        %v1459 = vpop.xlane.xlu0 %1458
        %v1460 = vsub.f32 %v1456, %v1459
        %v1461 = vmul.f32 %v1460, 1.442695
        %v1462 = vpow.pop %v1461
        %v1463 = vsel %vm1212, %v1462, 0.0
        %1464 = vadd.xlane.f32.xlu0 %v1463
        %v1465 = vpop.xlane.xlu0 %1464
        %v1466 = vrcp.pop %v1465
        %v1467 = vmul.f32 %v1462, %v1466
        %1468 = vrot.lane.b32.xlu0 %v1114, 56
        %v1469 = vpop.permute.xlu0 %1468
        %v1472 = vsel %vm1212, %v1467, 0
        %1474 = vmatprep.subr.mxu0 0.0
        %1475 = vmatpush1.msra.mxu0 %v1469
        %1476 = vmatprep.subr.mxu0 0.0
        %1477 = vmatpush1.msra.mxu0 0.0
        %1478 = vmatprep.subr.mxu0 0.0
        %1479 = vmatpush1.msra.mxu0 0.0
        %1480 = vmatprep.subr.mxu0 0.0
        %1481 = vmatpush1.msra.mxu0 0.0
        %1482 = vmatprep.subr.mxu0 0.0
        %1483 = vmatpush1.msra.mxu0 0.0
        %1484 = vmatprep.subr.mxu0 0.0
        %1485 = vmatpush1.msra.mxu0 0.0
        %1486 = vmatprep.subr.mxu0 0.0
        %1487 = vmatpush1.msra.mxu0 0.0
        %1488 = vmatprep.subr.mxu0 0.0
        %1489 = vmatpush1.msra.mxu0 0.0
        %1490 = vmatprep.subr.mxu0 0.0
        %1491 = vmatpush1.msra.mxu0 0.0
        %1492 = vmatprep.subr.mxu0 0.0
        %1493 = vmatpush1.msra.mxu0 0.0
        %1494 = vmatprep.subr.mxu0 0.0
        %1495 = vmatpush1.msra.mxu0 0.0
        %1496 = vmatprep.subr.mxu0 0.0
        %1497 = vmatpush1.msra.mxu0 0.0
        %1498 = vmatprep.subr.mxu0 0.0
        %1499 = vmatpush1.msra.mxu0 0.0
        %1500 = vmatprep.subr.mxu0 0.0
        %1501 = vmatpush1.msra.mxu0 0.0
        %1502 = vmatprep.subr.mxu0 0.0
        %1503 = vmatpush1.msra.mxu0 0.0
        %1504 = vmatprep.subr.mxu0 0.0
        %1505 = vmatpush1.msra.mxu0 0.0
        %1506 = vmatprep.subr.mxu0 0.0
        %1507 = vmatpush1.msra.mxu0 0.0
        %1508 = vmatprep.subr.mxu0 0.0
        %1509 = vmatpush1.msra.mxu0 0.0
        %1510 = vmatprep.subr.mxu0 0.0
        %1511 = vmatpush1.msra.mxu0 0.0
        %1512 = vmatprep.subr.mxu0 0.0
        %1513 = vmatpush1.msra.mxu0 0.0
        %1514 = vmatprep.subr.mxu0 0.0
        %1515 = vmatpush1.msra.mxu0 0.0
        %1516 = vmatprep.subr.mxu0 0.0
        %1517 = vmatpush1.msra.mxu0 0.0
        %1518 = vmatprep.subr.mxu0 0.0
        %1519 = vmatpush1.msra.mxu0 0.0
        %1520 = vmatprep.subr.mxu0 0.0
        %1521 = vmatpush1.msra.mxu0 0.0
        %1522 = vmatprep.subr.mxu0 0.0
        %1523 = vmatpush1.msra.mxu0 0.0
        %1524 = vmatprep.subr.mxu0 0.0
        %1525 = vmatpush1.msra.mxu0 0.0
        %1526 = vmatprep.subr.mxu0 0.0
        %1527 = vmatpush1.msra.mxu0 0.0
        %1528 = vmatprep.subr.mxu0 0.0
        %1529 = vmatpush1.msra.mxu0 0.0
        %1530 = vmatprep.subr.mxu0 0.0
        %1531 = vmatpush1.msra.mxu0 0.0
        %1532 = vmatprep.subr.mxu0 0.0
        %1533 = vmatpush1.msra.mxu0 0.0
        %1534 = vmatprep.subr.mxu0 0.0
        %1535 = vmatpush1.msra.mxu0 0.0
        %1536 = vmatprep.subr.mxu0 0.0
        %1537 = vmatpush1.msra.mxu0 0.0
        %1538 = vmatprep.mubr.f32.mxu0 0.0
        %1539 = vmatmul.mubr.f32.gmra.mrb[0].mxu0 %v1472
        %v1540 = vpop.f32.mrb[0].mxu0
        %v1541 = vadd.f32 0.0, %v1540
        %v1542 = vpop.f32.mrb[0].mxu0
        %1543 = vdwg.mxu0
        %1545 = vrot.lane.b32.xlu0 %v1541, 8
        %v1546 = vpop.permute.xlu0 %1545
        %vm1548 = vcmask 130112
        %1549 = vst.msk [vmem:[#allocation2] sm:$0xff] %vm1548, %v1546
        %1550 = vrot.lane.b32.xlu0 %v1114, 112
        %v1551 = vpop.permute.xlu0 %1550
        %1552 = vrot.lane.b32.xlu0 %v1114, 80
        %v1553 = vpop.permute.xlu0 %1552
        %v1554 = vsel %vm1212, %v1551, 0
        %v1556 = vsel %vm1212, %v1553, 0
        %1558 = vmatprep.subr.mxu0 0.0
        %1559 = vmatpush1.xpose.msra.mxu0 %v1556
        %1560 = vmatprep.subr.mxu0 0.0
        %1561 = vmatpush1.xpose.msra.mxu0 0.0
        %1562 = vmatprep.subr.mxu0 0.0
        %1563 = vmatpush1.xpose.msra.mxu0 0.0
        %1564 = vmatprep.subr.mxu0 0.0
        %1565 = vmatpush1.xpose.msra.mxu0 0.0
        %1566 = vmatprep.subr.mxu0 0.0
        %1567 = vmatpush1.xpose.msra.mxu0 0.0
        %1568 = vmatprep.subr.mxu0 0.0
        %1569 = vmatpush1.xpose.msra.mxu0 0.0
        %1570 = vmatprep.subr.mxu0 0.0
        %1571 = vmatpush1.xpose.msra.mxu0 0.0
        %1572 = vmatprep.subr.mxu0 0.0
        %1573 = vmatpush1.xpose.msra.mxu0 0.0
        %1574 = vmatprep.subr.mxu0 0.0
        %1575 = vmatpush1.xpose.msra.mxu0 0.0
        %1576 = vmatprep.subr.mxu0 0.0
        %1577 = vmatpush1.xpose.msra.mxu0 0.0
        %1578 = vmatprep.subr.mxu0 0.0
        %1579 = vmatpush1.xpose.msra.mxu0 0.0
        %1580 = vmatprep.subr.mxu0 0.0
        %1581 = vmatpush1.xpose.msra.mxu0 0.0
        %1582 = vmatprep.subr.mxu0 0.0
        %1583 = vmatpush1.xpose.msra.mxu0 0.0
        %1584 = vmatprep.subr.mxu0 0.0
        %1585 = vmatpush1.xpose.msra.mxu0 0.0
        %1586 = vmatprep.subr.mxu0 0.0
        %1587 = vmatpush1.xpose.msra.mxu0 0.0
        %1588 = vmatprep.subr.mxu0 0.0
        %1589 = vmatpush1.xpose.msra.mxu0 0.0
        %1590 = vmatprep.subr.mxu0 0.0
        %1591 = vmatpush1.xpose.msra.mxu0 0.0
        %1592 = vmatprep.subr.mxu0 0.0
        %1593 = vmatpush1.xpose.msra.mxu0 0.0
        %1594 = vmatprep.subr.mxu0 0.0
        %1595 = vmatpush1.xpose.msra.mxu0 0.0
        %1596 = vmatprep.subr.mxu0 0.0
        %1597 = vmatpush1.xpose.msra.mxu0 0.0
        %1598 = vmatprep.subr.mxu0 0.0
        %1599 = vmatpush1.xpose.msra.mxu0 0.0
        %1600 = vmatprep.subr.mxu0 0.0
        %1601 = vmatpush1.xpose.msra.mxu0 0.0
        %1602 = vmatprep.subr.mxu0 0.0
        %1603 = vmatpush1.xpose.msra.mxu0 0.0
        %1604 = vmatprep.subr.mxu0 0.0
        %1605 = vmatpush1.xpose.msra.mxu0 0.0
        %1606 = vmatprep.subr.mxu0 0.0
        %1607 = vmatpush1.xpose.msra.mxu0 0.0
        %1608 = vmatprep.subr.mxu0 0.0
        %1609 = vmatpush1.xpose.msra.mxu0 0.0
        %1610 = vmatprep.subr.mxu0 0.0
        %1611 = vmatpush1.xpose.msra.mxu0 0.0
        %1612 = vmatprep.subr.mxu0 0.0
        %1613 = vmatpush1.xpose.msra.mxu0 0.0
        %1614 = vmatprep.subr.mxu0 0.0
        %1615 = vmatpush1.xpose.msra.mxu0 0.0
        %1616 = vmatprep.subr.mxu0 0.0
        %1617 = vmatpush1.xpose.msra.mxu0 0.0
        %1618 = vmatprep.subr.mxu0 0.0
        %1619 = vmatpush1.xpose.msra.mxu0 0.0
        %1620 = vmatprep.subr.mxu0 0.0
        %1621 = vmatpush1.xpose.msra.mxu0 0.0
        %1622 = vmatprep.mubr.f32.mxu0 0.0
        %1623 = vmatmul.mubr.f32.gmra.mrb[0].mxu0 %v1554
        %v1624 = vpop.f32.mrb[0].mxu0
        %v1625 = vadd.f32 0.0, %v1624
        %v1626 = vpop.f32.mrb[0].mxu0
        %1627 = vdwg.mxu0
        %v1628 = vmul.f32 %v1625, 0.35355338
        %v1629 = vadd.f32 %v1628, %v1132
        %v1630 = vsel %vm1212, %v1629, -inf
        %1631 = vmax.xlane.f32.xlu0 %v1630
        %v1632 = vpop.xlane.xlu0 %1631
        %v1633 = vsub.f32 %v1629, %v1632
        %v1634 = vmul.f32 %v1633, 1.442695
        %v1635 = vpow.pop %v1634
        %v1636 = vsel %vm1212, %v1635, 0.0
        %1637 = vadd.xlane.f32.xlu0 %v1636
        %v1638 = vpop.xlane.xlu0 %1637
        %v1639 = vrcp.pop %v1638
        %v1640 = vmul.f32 %v1635, %v1639
        %1641 = vrot.lane.b32.xlu0 %v1114, 48
        %v1642 = vpop.permute.xlu0 %1641
        %v1645 = vsel %vm1212, %v1640, 0
        %1647 = vmatprep.subr.mxu0 0.0
        %1648 = vmatpush1.msra.mxu0 %v1642
        %1649 = vmatprep.subr.mxu0 0.0
        %1650 = vmatpush1.msra.mxu0 0.0
        %1651 = vmatprep.subr.mxu0 0.0
        %1652 = vmatpush1.msra.mxu0 0.0
        %1653 = vmatprep.subr.mxu0 0.0
        %1654 = vmatpush1.msra.mxu0 0.0
        %1655 = vmatprep.subr.mxu0 0.0
        %1656 = vmatpush1.msra.mxu0 0.0
        %1657 = vmatprep.subr.mxu0 0.0
        %1658 = vmatpush1.msra.mxu0 0.0
        %1659 = vmatprep.subr.mxu0 0.0
        %1660 = vmatpush1.msra.mxu0 0.0
        %1661 = vmatprep.subr.mxu0 0.0
        %1662 = vmatpush1.msra.mxu0 0.0
        %1663 = vmatprep.subr.mxu0 0.0
        %1664 = vmatpush1.msra.mxu0 0.0
        %1665 = vmatprep.subr.mxu0 0.0
        %1666 = vmatpush1.msra.mxu0 0.0
        %1667 = vmatprep.subr.mxu0 0.0
        %1668 = vmatpush1.msra.mxu0 0.0
        %1669 = vmatprep.subr.mxu0 0.0
        %1670 = vmatpush1.msra.mxu0 0.0
        %1671 = vmatprep.subr.mxu0 0.0
        %1672 = vmatpush1.msra.mxu0 0.0
        %1673 = vmatprep.subr.mxu0 0.0
        %1674 = vmatpush1.msra.mxu0 0.0
        %1675 = vmatprep.subr.mxu0 0.0
        %1676 = vmatpush1.msra.mxu0 0.0
        %1677 = vmatprep.subr.mxu0 0.0
        %1678 = vmatpush1.msra.mxu0 0.0
        %1679 = vmatprep.subr.mxu0 0.0
        %1680 = vmatpush1.msra.mxu0 0.0
        %1681 = vmatprep.subr.mxu0 0.0
        %1682 = vmatpush1.msra.mxu0 0.0
        %1683 = vmatprep.subr.mxu0 0.0
        %1684 = vmatpush1.msra.mxu0 0.0
        %1685 = vmatprep.subr.mxu0 0.0
        %1686 = vmatpush1.msra.mxu0 0.0
        %1687 = vmatprep.subr.mxu0 0.0
        %1688 = vmatpush1.msra.mxu0 0.0
        %1689 = vmatprep.subr.mxu0 0.0
        %1690 = vmatpush1.msra.mxu0 0.0
        %1691 = vmatprep.subr.mxu0 0.0
        %1692 = vmatpush1.msra.mxu0 0.0
        %1693 = vmatprep.subr.mxu0 0.0
        %1694 = vmatpush1.msra.mxu0 0.0
        %1695 = vmatprep.subr.mxu0 0.0
        %1696 = vmatpush1.msra.mxu0 0.0
        %1697 = vmatprep.subr.mxu0 0.0
        %1698 = vmatpush1.msra.mxu0 0.0
        %1699 = vmatprep.subr.mxu0 0.0
        %1700 = vmatpush1.msra.mxu0 0.0
        %1701 = vmatprep.subr.mxu0 0.0
        %1702 = vmatpush1.msra.mxu0 0.0
        %1703 = vmatprep.subr.mxu0 0.0
        %1704 = vmatpush1.msra.mxu0 0.0
        %1705 = vmatprep.subr.mxu0 0.0
        %1706 = vmatpush1.msra.mxu0 0.0
        %1707 = vmatprep.subr.mxu0 0.0
        %1708 = vmatpush1.msra.mxu0 0.0
        %1709 = vmatprep.subr.mxu0 0.0
        %1710 = vmatpush1.msra.mxu0 0.0
        %1711 = vmatprep.mubr.f32.mxu0 0.0
        %1712 = vmatmul.mubr.f32.gmra.mrb[0].mxu0 %v1645
        %v1713 = vpop.f32.mrb[0].mxu0
        %v1714 = vadd.f32 0.0, %v1713
        %v1715 = vpop.f32.mrb[0].mxu0
        %1716 = vdwg.mxu0
        %1718 = vrot.lane.b32.xlu0 %v1714, 16
        %v1719 = vpop.permute.xlu0 %1718
        %vm1721 = vcmask 195712
        %1722 = vst.msk [vmem:[#allocation2] sm:$0xff] %vm1721, %v1719
        %1723 = vrot.lane.b32.xlu0 %v1114, 104
        %v1724 = vpop.permute.xlu0 %1723
        %1725 = vrot.lane.b32.xlu0 %v1114, 72
        %v1726 = vpop.permute.xlu0 %1725
        %v1727 = vsel %vm1212, %v1724, 0
        %v1729 = vsel %vm1212, %v1726, 0
        %1731 = vmatprep.subr.mxu0 0.0
        %1732 = vmatpush1.xpose.msra.mxu0 %v1729
        %1733 = vmatprep.subr.mxu0 0.0
        %1734 = vmatpush1.xpose.msra.mxu0 0.0
        %1735 = vmatprep.subr.mxu0 0.0
        %1736 = vmatpush1.xpose.msra.mxu0 0.0
        %1737 = vmatprep.subr.mxu0 0.0
        %1738 = vmatpush1.xpose.msra.mxu0 0.0
        %1739 = vmatprep.subr.mxu0 0.0
        %1740 = vmatpush1.xpose.msra.mxu0 0.0
        %1741 = vmatprep.subr.mxu0 0.0
        %1742 = vmatpush1.xpose.msra.mxu0 0.0
        %1743 = vmatprep.subr.mxu0 0.0
        %1744 = vmatpush1.xpose.msra.mxu0 0.0
        %1745 = vmatprep.subr.mxu0 0.0
        %1746 = vmatpush1.xpose.msra.mxu0 0.0
        %1747 = vmatprep.subr.mxu0 0.0
        %1748 = vmatpush1.xpose.msra.mxu0 0.0
        %1749 = vmatprep.subr.mxu0 0.0
        %1750 = vmatpush1.xpose.msra.mxu0 0.0
        %1751 = vmatprep.subr.mxu0 0.0
        %1752 = vmatpush1.xpose.msra.mxu0 0.0
        %1753 = vmatprep.subr.mxu0 0.0
        %1754 = vmatpush1.xpose.msra.mxu0 0.0
        %1755 = vmatprep.subr.mxu0 0.0
        %1756 = vmatpush1.xpose.msra.mxu0 0.0
        %1757 = vmatprep.subr.mxu0 0.0
        %1758 = vmatpush1.xpose.msra.mxu0 0.0
        %1759 = vmatprep.subr.mxu0 0.0
        %1760 = vmatpush1.xpose.msra.mxu0 0.0
        %1761 = vmatprep.subr.mxu0 0.0
        %1762 = vmatpush1.xpose.msra.mxu0 0.0
        %1763 = vmatprep.subr.mxu0 0.0
        %1764 = vmatpush1.xpose.msra.mxu0 0.0
        %1765 = vmatprep.subr.mxu0 0.0
        %1766 = vmatpush1.xpose.msra.mxu0 0.0
        %1767 = vmatprep.subr.mxu0 0.0
        %1768 = vmatpush1.xpose.msra.mxu0 0.0
        %1769 = vmatprep.subr.mxu0 0.0
        %1770 = vmatpush1.xpose.msra.mxu0 0.0
        %1771 = vmatprep.subr.mxu0 0.0
        %1772 = vmatpush1.xpose.msra.mxu0 0.0
        %1773 = vmatprep.subr.mxu0 0.0
        %1774 = vmatpush1.xpose.msra.mxu0 0.0
        %1775 = vmatprep.subr.mxu0 0.0
        %1776 = vmatpush1.xpose.msra.mxu0 0.0
        %1777 = vmatprep.subr.mxu0 0.0
        %1778 = vmatpush1.xpose.msra.mxu0 0.0
        %1779 = vmatprep.subr.mxu0 0.0
        %1780 = vmatpush1.xpose.msra.mxu0 0.0
        %1781 = vmatprep.subr.mxu0 0.0
        %1782 = vmatpush1.xpose.msra.mxu0 0.0
        %1783 = vmatprep.subr.mxu0 0.0
        %1784 = vmatpush1.xpose.msra.mxu0 0.0
        %1785 = vmatprep.subr.mxu0 0.0
        %1786 = vmatpush1.xpose.msra.mxu0 0.0
        %1787 = vmatprep.subr.mxu0 0.0
        %1788 = vmatpush1.xpose.msra.mxu0 0.0
        %1789 = vmatprep.subr.mxu0 0.0
        %1790 = vmatpush1.xpose.msra.mxu0 0.0
        %1791 = vmatprep.subr.mxu0 0.0
        %1792 = vmatpush1.xpose.msra.mxu0 0.0
        %1793 = vmatprep.subr.mxu0 0.0
        %1794 = vmatpush1.xpose.msra.mxu0 0.0
        %1795 = vmatprep.mubr.f32.mxu0 0.0
        %1796 = vmatmul.mubr.f32.gmra.mrb[0].mxu0 %v1727
        %v1797 = vpop.f32.mrb[0].mxu0
        %v1798 = vadd.f32 0.0, %v1797
        %v1799 = vpop.f32.mrb[0].mxu0
        %1800 = vdwg.mxu0
        %v1801 = vmul.f32 %v1798, 0.35355338
        %v1802 = vadd.f32 %v1801, %v1132
        %v1803 = vsel %vm1212, %v1802, -inf
        %1804 = vmax.xlane.f32.xlu0 %v1803
        %v1805 = vpop.xlane.xlu0 %1804
        %v1806 = vsub.f32 %v1802, %v1805
        %v1807 = vmul.f32 %v1806, 1.442695
        %v1808 = vpow.pop %v1807
        %v1809 = vsel %vm1212, %v1808, 0.0
        %1810 = vadd.xlane.f32.xlu0 %v1809
        %v1811 = vpop.xlane.xlu0 %1810
        %v1812 = vrcp.pop %v1811
        %v1813 = vmul.f32 %v1808, %v1812
        %1814 = vrot.lane.b32.xlu0 %v1114, 40
        %v1815 = vpop.permute.xlu0 %1814
        %v1818 = vsel %vm1212, %v1813, 0
        %1820 = vmatprep.subr.mxu0 0.0
        %1821 = vmatpush1.msra.mxu0 %v1815
        %1822 = vmatprep.subr.mxu0 0.0
        %1823 = vmatpush1.msra.mxu0 0.0
        %1824 = vmatprep.subr.mxu0 0.0
        %1825 = vmatpush1.msra.mxu0 0.0
        %1826 = vmatprep.subr.mxu0 0.0
        %1827 = vmatpush1.msra.mxu0 0.0
        %1828 = vmatprep.subr.mxu0 0.0
        %1829 = vmatpush1.msra.mxu0 0.0
        %1830 = vmatprep.subr.mxu0 0.0
        %1831 = vmatpush1.msra.mxu0 0.0
        %1832 = vmatprep.subr.mxu0 0.0
        %1833 = vmatpush1.msra.mxu0 0.0
        %1834 = vmatprep.subr.mxu0 0.0
        %1835 = vmatpush1.msra.mxu0 0.0
        %1836 = vmatprep.subr.mxu0 0.0
        %1837 = vmatpush1.msra.mxu0 0.0
        %1838 = vmatprep.subr.mxu0 0.0
        %1839 = vmatpush1.msra.mxu0 0.0
        %1840 = vmatprep.subr.mxu0 0.0
        %1841 = vmatpush1.msra.mxu0 0.0
        %1842 = vmatprep.subr.mxu0 0.0
        %1843 = vmatpush1.msra.mxu0 0.0
        %1844 = vmatprep.subr.mxu0 0.0
        %1845 = vmatpush1.msra.mxu0 0.0
        %1846 = vmatprep.subr.mxu0 0.0
        %1847 = vmatpush1.msra.mxu0 0.0
        %1848 = vmatprep.subr.mxu0 0.0
        %1849 = vmatpush1.msra.mxu0 0.0
        %1850 = vmatprep.subr.mxu0 0.0
        %1851 = vmatpush1.msra.mxu0 0.0
        %1852 = vmatprep.subr.mxu0 0.0
        %1853 = vmatpush1.msra.mxu0 0.0
        %1854 = vmatprep.subr.mxu0 0.0
        %1855 = vmatpush1.msra.mxu0 0.0
        %1856 = vmatprep.subr.mxu0 0.0
        %1857 = vmatpush1.msra.mxu0 0.0
        %1858 = vmatprep.subr.mxu0 0.0
        %1859 = vmatpush1.msra.mxu0 0.0
        %1860 = vmatprep.subr.mxu0 0.0
        %1861 = vmatpush1.msra.mxu0 0.0
        %1862 = vmatprep.subr.mxu0 0.0
        %1863 = vmatpush1.msra.mxu0 0.0
        %1864 = vmatprep.subr.mxu0 0.0
        %1865 = vmatpush1.msra.mxu0 0.0
        %1866 = vmatprep.subr.mxu0 0.0
        %1867 = vmatpush1.msra.mxu0 0.0
        %1868 = vmatprep.subr.mxu0 0.0
        %1869 = vmatpush1.msra.mxu0 0.0
        %1870 = vmatprep.subr.mxu0 0.0
        %1871 = vmatpush1.msra.mxu0 0.0
        %1872 = vmatprep.subr.mxu0 0.0
        %1873 = vmatpush1.msra.mxu0 0.0
        %1874 = vmatprep.subr.mxu0 0.0
        %1875 = vmatpush1.msra.mxu0 0.0
        %1876 = vmatprep.subr.mxu0 0.0
        %1877 = vmatpush1.msra.mxu0 0.0
        %1878 = vmatprep.subr.mxu0 0.0
        %1879 = vmatpush1.msra.mxu0 0.0
        %1880 = vmatprep.subr.mxu0 0.0
        %1881 = vmatpush1.msra.mxu0 0.0
        %1882 = vmatprep.subr.mxu0 0.0
        %1883 = vmatpush1.msra.mxu0 0.0
        %1884 = vmatprep.mubr.f32.mxu0 0.0
        %1885 = vmatmul.mubr.f32.gmra.mrb[0].mxu0 %v1818
        %v1886 = vpop.f32.mrb[0].mxu0
        %v1887 = vadd.f32 0.0, %v1886
        %v1888 = vpop.f32.mrb[0].mxu0
        %1889 = vdwg.mxu0
        %1891 = vrot.lane.b32.xlu0 %v1887, 24
        %v1892 = vpop.permute.xlu0 %1891
        %vm1894 = vcmask 261312
        %1895 = vst.msk [vmem:[#allocation2] sm:$0xff] %vm1894, %v1892
        %v1896 = vld [vmem:[#allocation2] sm:$0xff]
        %v1898 = vsel %vm1043, %v1896, 0
        %1900 = vmatprep.subr.mxu0 0.0
        %1901 = vmatpush1.msra.mxu0 %v1122
        %1902 = vmatprep.subr.mxu0 0.0
        %1903 = vmatpush1.msra.mxu0 %v1123
        %1904 = vmatprep.subr.mxu0 0.0
        %1905 = vmatpush1.msra.mxu0 %v1124
        %1906 = vmatprep.subr.mxu0 0.0
        %1907 = vmatpush1.msra.mxu0 %v1125
        %1908 = vmatprep.subr.mxu0 0.0
        %1909 = vmatpush1.msra.mxu0 0.0
        %1910 = vmatprep.subr.mxu0 0.0
        %1911 = vmatpush1.msra.mxu0 0.0
        %1912 = vmatprep.subr.mxu0 0.0
        %1913 = vmatpush1.msra.mxu0 0.0
        %1914 = vmatprep.subr.mxu0 0.0
        %1915 = vmatpush1.msra.mxu0 0.0
        %1916 = vmatprep.subr.mxu0 0.0
        %1917 = vmatpush1.msra.mxu0 0.0
        %1918 = vmatprep.subr.mxu0 0.0
        %1919 = vmatpush1.msra.mxu0 0.0
        %1920 = vmatprep.subr.mxu0 0.0
        %1921 = vmatpush1.msra.mxu0 0.0
        %1922 = vmatprep.subr.mxu0 0.0
        %1923 = vmatpush1.msra.mxu0 0.0
        %1924 = vmatprep.subr.mxu0 0.0
        %1925 = vmatpush1.msra.mxu0 0.0
        %1926 = vmatprep.subr.mxu0 0.0
        %1927 = vmatpush1.msra.mxu0 0.0
        %1928 = vmatprep.subr.mxu0 0.0
        %1929 = vmatpush1.msra.mxu0 0.0
        %1930 = vmatprep.subr.mxu0 0.0
        %1931 = vmatpush1.msra.mxu0 0.0
        %1932 = vmatprep.subr.mxu0 0.0
        %1933 = vmatpush1.msra.mxu0 0.0
        %1934 = vmatprep.subr.mxu0 0.0
        %1935 = vmatpush1.msra.mxu0 0.0
        %1936 = vmatprep.subr.mxu0 0.0
        %1937 = vmatpush1.msra.mxu0 0.0
        %1938 = vmatprep.subr.mxu0 0.0
        %1939 = vmatpush1.msra.mxu0 0.0
        %1940 = vmatprep.subr.mxu0 0.0
        %1941 = vmatpush1.msra.mxu0 0.0
        %1942 = vmatprep.subr.mxu0 0.0
        %1943 = vmatpush1.msra.mxu0 0.0
        %1944 = vmatprep.subr.mxu0 0.0
        %1945 = vmatpush1.msra.mxu0 0.0
        %1946 = vmatprep.subr.mxu0 0.0
        %1947 = vmatpush1.msra.mxu0 0.0
        %1948 = vmatprep.subr.mxu0 0.0
        %1949 = vmatpush1.msra.mxu0 0.0
        %1950 = vmatprep.subr.mxu0 0.0
        %1951 = vmatpush1.msra.mxu0 0.0
        %1952 = vmatprep.subr.mxu0 0.0
        %1953 = vmatpush1.msra.mxu0 0.0
        %1954 = vmatprep.subr.mxu0 0.0
        %1955 = vmatpush1.msra.mxu0 0.0
        %1956 = vmatprep.subr.mxu0 0.0
        %1957 = vmatpush1.msra.mxu0 0.0
        %1958 = vmatprep.subr.mxu0 0.0
        %1959 = vmatpush1.msra.mxu0 0.0
        %1960 = vmatprep.subr.mxu0 0.0
        %1961 = vmatpush1.msra.mxu0 0.0
        %1962 = vmatprep.subr.mxu0 0.0
        %1963 = vmatpush1.msra.mxu0 0.0
        %1964 = vmatprep.mubr.f32.mxu0 0.0
        %1965 = vmatmul.mubr.f32.gmra.mrb[0].mxu0 %v1898
        %v1966 = vpop.f32.mrb[0].mxu0
        %v1967 = vadd.f32 0.0, %v1966
        %v1968 = vpop.f32.mrb[0].mxu0
        %1969 = vdwg.mxu0
        %v1970 = vadd.f32 %v1206, %v1967
        %v1971 = vadd.f32 %v1970, %v1029
        %v1972 = vsel %vm1043, %v1971, 0.0
        %1973 = vadd.xlane.f32.xlu0 %v1972
        %v1974 = vpop.xlane.xlu0 %1973
        %v1975 = vrcp.pop 32.0
        %v1976 = vmul.f32 %v1974, %v1975
        %v1977 = vsub.f32 %v1971, %v1976
        %v1978 = vmul.f32 %v1977, %v1977
        %v1979 = vsel %vm1043, %v1978, 0.0
        %1980 = vadd.xlane.f32.xlu0 %v1979
        %v1981 = vpop.xlane.xlu0 %1980
        %v1982 = vmul.f32 %v1981, %v1975
        %v1983 = vadd.f32 %v1982, 1e-05
        %v1984 = vrsqrt.pop %v1983
        %v1985 = vmul.f32 %v1977, %v1984
        %v1987 = vlaneseq
        %v1988 = vshrl.u32 %v1987, 7
        %v1989 = vsub.s32 0, %v1988
        %v1990 = vrot.slane %v1127, %v1989
        %v1992 = vmul.f32 %v1985, %v1990
        %v1994 = vlaneseq
        %v1995 = vshrl.u32 %v1994, 7
        %v1996 = vsub.s32 0, %v1995
        %v1997 = vrot.slane %v1128, %v1996
        %v1999 = vadd.f32 %v1992, %v1997
        %v2000 = vld [vmem:[%s11] sm:$0xff]
        %v2001 = vld [vmem:[%s11 + $0x8] sm:$0xff]
        %v2002 = vld [vmem:[%s11 + $0x10] sm:$0xff]
        %v2003 = vld [vmem:[%s11 + $0x18] sm:$0xff]
        %v2004 = vld [vmem:[#allocation15] sm:$0x1]
        %v2006 = vlaneseq
        %v2007 = vshrl.u32 %v2006, 7
        %v2008 = vsub.s32 0, %v2007
        %v2009 = vrot.slane %v2004, %v2008
        %v2012 = vsel %vm1043, %v1999, 0
        %2014 = vmatprep.subr.mxu0 0.0
        %2015 = vmatpush1.msra.mxu0 %v2000
        %2016 = vmatprep.subr.mxu0 0.0
        %2017 = vmatpush1.msra.mxu0 %v2001
        %2018 = vmatprep.subr.mxu0 0.0
        %2019 = vmatpush1.msra.mxu0 %v2002
        %2020 = vmatprep.subr.mxu0 0.0
        %2021 = vmatpush1.msra.mxu0 %v2003
        %2022 = vmatprep.subr.mxu0 0.0
        %2023 = vmatpush1.msra.mxu0 0.0
        %2024 = vmatprep.subr.mxu0 0.0
        %2025 = vmatpush1.msra.mxu0 0.0
        %2026 = vmatprep.subr.mxu0 0.0
        %2027 = vmatpush1.msra.mxu0 0.0
        %2028 = vmatprep.subr.mxu0 0.0
        %2029 = vmatpush1.msra.mxu0 0.0
        %2030 = vmatprep.subr.mxu0 0.0
        %2031 = vmatpush1.msra.mxu0 0.0
        %2032 = vmatprep.subr.mxu0 0.0
        %2033 = vmatpush1.msra.mxu0 0.0
        %2034 = vmatprep.subr.mxu0 0.0
        %2035 = vmatpush1.msra.mxu0 0.0
        %2036 = vmatprep.subr.mxu0 0.0
        %2037 = vmatpush1.msra.mxu0 0.0
        %2038 = vmatprep.subr.mxu0 0.0
        %2039 = vmatpush1.msra.mxu0 0.0
        %2040 = vmatprep.subr.mxu0 0.0
        %2041 = vmatpush1.msra.mxu0 0.0
        %2042 = vmatprep.subr.mxu0 0.0
        %2043 = vmatpush1.msra.mxu0 0.0
        %2044 = vmatprep.subr.mxu0 0.0
        %2045 = vmatpush1.msra.mxu0 0.0
        %2046 = vmatprep.subr.mxu0 0.0
        %2047 = vmatpush1.msra.mxu0 0.0
        %2048 = vmatprep.subr.mxu0 0.0
        %2049 = vmatpush1.msra.mxu0 0.0
        %2050 = vmatprep.subr.mxu0 0.0
        %2051 = vmatpush1.msra.mxu0 0.0
        %2052 = vmatprep.subr.mxu0 0.0
        %2053 = vmatpush1.msra.mxu0 0.0
        %2054 = vmatprep.subr.mxu0 0.0
        %2055 = vmatpush1.msra.mxu0 0.0
        %2056 = vmatprep.subr.mxu0 0.0
        %2057 = vmatpush1.msra.mxu0 0.0
        %2058 = vmatprep.subr.mxu0 0.0
        %2059 = vmatpush1.msra.mxu0 0.0
        %2060 = vmatprep.subr.mxu0 0.0
        %2061 = vmatpush1.msra.mxu0 0.0
        %2062 = vmatprep.subr.mxu0 0.0
        %2063 = vmatpush1.msra.mxu0 0.0
        %2064 = vmatprep.subr.mxu0 0.0
        %2065 = vmatpush1.msra.mxu0 0.0
        %2066 = vmatprep.subr.mxu0 0.0
        %2067 = vmatpush1.msra.mxu0 0.0
        %2068 = vmatprep.subr.mxu0 0.0
        %2069 = vmatpush1.msra.mxu0 0.0
        %2070 = vmatprep.subr.mxu0 0.0
        %2071 = vmatpush1.msra.mxu0 0.0
        %2072 = vmatprep.subr.mxu0 0.0
        %2073 = vmatpush1.msra.mxu0 0.0
        %2074 = vmatprep.subr.mxu0 0.0
        %2075 = vmatpush1.msra.mxu0 0.0
        %2076 = vmatprep.subr.mxu0 0.0
        %2077 = vmatpush1.msra.mxu0 0.0
        %2078 = vmatprep.mubr.f32.mxu0 0.0
        %2079 = vmatmul.mubr.f32.gmra.mrb[0].mxu0 %v2012
        %v2080 = vpop.f32.mrb[0].mxu0
        %v2081 = vadd.f32 %v2009, %v2080
        %v2082 = vpop.f32.mrb[0].mxu0
        %2083 = vdwg.mxu0
        %v2084 = vld [vmem:[%s13] sm:$0xff]
        %v2085 = vld [vmem:[%s13 + $0x8] sm:$0xff]
        %v2086 = vld [vmem:[%s13 + $0x10] sm:$0xff]
        %v2087 = vld [vmem:[%s13 + $0x18] sm:$0xff]
        %v2088 = vld [vmem:[#allocation17] sm:$0x1]
        %v2090 = vlaneseq
        %v2091 = vshrl.u32 %v2090, 7
        %v2092 = vsub.s32 0, %v2091
        %v2093 = vrot.slane %v2088, %v2092
        %v2096 = vsel %vm1043, %v1030, 0
        %v2099 = vsel %vm1043, %v1031, 0
        %2101 = vmatprep.subr.mxu0 0.0
        %2102 = vmatpush1.msra.mxu0 %v2084
        %2103 = vmatprep.subr.mxu0 0.0
        %2104 = vmatpush1.msra.mxu0 %v2085
        %2105 = vmatprep.subr.mxu0 0.0
        %2106 = vmatpush1.msra.mxu0 %v2086
        %2107 = vmatprep.subr.mxu0 0.0
        %2108 = vmatpush1.msra.mxu0 %v2087
        %2109 = vmatprep.subr.mxu0 0.0
        %2110 = vmatpush1.msra.mxu0 0.0
        %2111 = vmatprep.subr.mxu0 0.0
        %2112 = vmatpush1.msra.mxu0 0.0
        %2113 = vmatprep.subr.mxu0 0.0
        %2114 = vmatpush1.msra.mxu0 0.0
        %2115 = vmatprep.subr.mxu0 0.0
        %2116 = vmatpush1.msra.mxu0 0.0
        %2117 = vmatprep.subr.mxu0 0.0
        %2118 = vmatpush1.msra.mxu0 0.0
        %2119 = vmatprep.subr.mxu0 0.0
        %2120 = vmatpush1.msra.mxu0 0.0
        %2121 = vmatprep.subr.mxu0 0.0
        %2122 = vmatpush1.msra.mxu0 0.0
        %2123 = vmatprep.subr.mxu0 0.0
        %2124 = vmatpush1.msra.mxu0 0.0
        %2125 = vmatprep.subr.mxu0 0.0
        %2126 = vmatpush1.msra.mxu0 0.0
        %2127 = vmatprep.subr.mxu0 0.0
        %2128 = vmatpush1.msra.mxu0 0.0
        %2129 = vmatprep.subr.mxu0 0.0
        %2130 = vmatpush1.msra.mxu0 0.0
        %2131 = vmatprep.subr.mxu0 0.0
        %2132 = vmatpush1.msra.mxu0 0.0
        %2133 = vmatprep.subr.mxu0 0.0
        %2134 = vmatpush1.msra.mxu0 0.0
        %2135 = vmatprep.subr.mxu0 0.0
        %2136 = vmatpush1.msra.mxu0 0.0
        %2137 = vmatprep.subr.mxu0 0.0
        %2138 = vmatpush1.msra.mxu0 0.0
        %2139 = vmatprep.subr.mxu0 0.0
        %2140 = vmatpush1.msra.mxu0 0.0
        %2141 = vmatprep.subr.mxu0 0.0
        %2142 = vmatpush1.msra.mxu0 0.0
        %2143 = vmatprep.subr.mxu0 0.0
        %2144 = vmatpush1.msra.mxu0 0.0
        %2145 = vmatprep.subr.mxu0 0.0
        %2146 = vmatpush1.msra.mxu0 0.0
        %2147 = vmatprep.subr.mxu0 0.0
        %2148 = vmatpush1.msra.mxu0 0.0
        %2149 = vmatprep.subr.mxu0 0.0
        %2150 = vmatpush1.msra.mxu0 0.0
        %2151 = vmatprep.subr.mxu0 0.0
        %2152 = vmatpush1.msra.mxu0 0.0
        %2153 = vmatprep.subr.mxu0 0.0
        %2154 = vmatpush1.msra.mxu0 0.0
        %2155 = vmatprep.subr.mxu0 0.0
        %2156 = vmatpush1.msra.mxu0 0.0
        %2157 = vmatprep.subr.mxu0 0.0
        %2158 = vmatpush1.msra.mxu0 0.0
        %2159 = vmatprep.subr.mxu0 0.0
        %2160 = vmatpush1.msra.mxu0 0.0
        %2161 = vmatprep.subr.mxu0 0.0
        %2162 = vmatpush1.msra.mxu0 0.0
        %2163 = vmatprep.subr.mxu0 0.0
        %2164 = vmatpush1.msra.mxu0 0.0
        %2165 = vmatprep.mubr.f32.mxu0 0.0
        %2166 = vmatmul.mubr.f32.gmra.mrb[0].mxu0 %v2096
        %v2167 = vpop.f32.mrb[0].mxu0
        %v2168 = vadd.f32 %v2093, %v2167
        %v2169 = vpop.f32.mrb[0].mxu0
        %2170 = vmatprep.mubr.f32.mxu0 0.0
        %2171 = vmatmul.mubr.f32.gmra.mrb[0].mxu0 %v2099
        %v2172 = vpop.f32.mrb[0].mxu0
        %v2173 = vadd.f32 %v2093, %v2172
        %v2174 = vpop.f32.mrb[0].mxu0
        %2175 = vdwg.mxu0
        %v2176 = vld [vmem:[%s900] sm:$0x3]
        %v2177 = vld [vmem:[#allocation18] sm:$0xff]
        %v2178 = vld [vmem:[#allocation18 + $0x8] sm:$0xff]
        %v2179 = vld [vmem:[#allocation18 + $0x10] sm:$0xff]
        %v2180 = vld [vmem:[#allocation18 + $0x18] sm:$0xff]
        %v2181 = vld [vmem:[#allocation20] sm:$0xff]
        %v2182 = vld [vmem:[#allocation20 + $0x8] sm:$0xff]
        %v2183 = vld [vmem:[#allocation20 + $0x10] sm:$0xff]
        %v2184 = vld [vmem:[#allocation20 + $0x18] sm:$0xff]
        %v2185 = vld [vmem:[#allocation21] sm:$0x1]
        %v2186 = vld [vmem:[%s18] sm:$0x1]
        %v2187 = vld [vmem:[%s19] sm:$0x1]
        %v2188 = vunpack.c.0.s8 %v2176
        %v2189 = vcvt.s32.f32 %v2188
        %vm2190 = vcmp.eq.f32.partialorder %v2189, 0.0
        %v2191 = vsel %vm2190, -1e+09, 0.0
        %v2193 = vlaneseq
        %v2194 = vshrl.u32 %v2193, 7
        %v2195 = vsub.s32 0, %v2194
        %v2196 = vrot.slane %v2185, %v2195
        %2198 = vmatprep.subr.mxu0 0.0
        %2199 = vmatpush1.msra.mxu0 %v2177
        %2200 = vmatprep.subr.mxu0 0.0
        %2201 = vmatpush1.msra.mxu0 %v2178
        %2202 = vmatprep.subr.mxu0 0.0
        %2203 = vmatpush1.msra.mxu0 %v2179
        %2204 = vmatprep.subr.mxu0 0.0
        %2205 = vmatpush1.msra.mxu0 %v2180
        %2206 = vmatprep.subr.mxu0 0.0
        %2207 = vmatpush1.msra.mxu0 0.0
        %2208 = vmatprep.subr.mxu0 0.0
        %2209 = vmatpush1.msra.mxu0 0.0
        %2210 = vmatprep.subr.mxu0 0.0
        %2211 = vmatpush1.msra.mxu0 0.0
        %2212 = vmatprep.subr.mxu0 0.0
        %2213 = vmatpush1.msra.mxu0 0.0
        %2214 = vmatprep.subr.mxu0 0.0
        %2215 = vmatpush1.msra.mxu0 0.0
        %2216 = vmatprep.subr.mxu0 0.0
        %2217 = vmatpush1.msra.mxu0 0.0
        %2218 = vmatprep.subr.mxu0 0.0
        %2219 = vmatpush1.msra.mxu0 0.0
        %2220 = vmatprep.subr.mxu0 0.0
        %2221 = vmatpush1.msra.mxu0 0.0
        %2222 = vmatprep.subr.mxu0 0.0
        %2223 = vmatpush1.msra.mxu0 0.0
        %2224 = vmatprep.subr.mxu0 0.0
        %2225 = vmatpush1.msra.mxu0 0.0
        %2226 = vmatprep.subr.mxu0 0.0
        %2227 = vmatpush1.msra.mxu0 0.0
        %2228 = vmatprep.subr.mxu0 0.0
        %2229 = vmatpush1.msra.mxu0 0.0
        %2230 = vmatprep.subr.mxu0 0.0
        %2231 = vmatpush1.msra.mxu0 0.0
        %2232 = vmatprep.subr.mxu0 0.0
        %2233 = vmatpush1.msra.mxu0 0.0
        %2234 = vmatprep.subr.mxu0 0.0
        %2235 = vmatpush1.msra.mxu0 0.0
        %2236 = vmatprep.subr.mxu0 0.0
        %2237 = vmatpush1.msra.mxu0 0.0
        %2238 = vmatprep.subr.mxu0 0.0
        %2239 = vmatpush1.msra.mxu0 0.0
        %2240 = vmatprep.subr.mxu0 0.0
        %2241 = vmatpush1.msra.mxu0 0.0
        %2242 = vmatprep.subr.mxu0 0.0
        %2243 = vmatpush1.msra.mxu0 0.0
        %2244 = vmatprep.subr.mxu0 0.0
        %2245 = vmatpush1.msra.mxu0 0.0
        %2246 = vmatprep.subr.mxu0 0.0
        %2247 = vmatpush1.msra.mxu0 0.0
        %2248 = vmatprep.subr.mxu0 0.0
        %2249 = vmatpush1.msra.mxu0 0.0
        %2250 = vmatprep.subr.mxu0 0.0
        %2251 = vmatpush1.msra.mxu0 0.0
        %2252 = vmatprep.subr.mxu0 0.0
        %2253 = vmatpush1.msra.mxu0 0.0
        %2254 = vmatprep.subr.mxu0 0.0
        %2255 = vmatpush1.msra.mxu0 0.0
        %2256 = vmatprep.subr.mxu0 0.0
        %2257 = vmatpush1.msra.mxu0 0.0
        %2258 = vmatprep.subr.mxu0 0.0
        %2259 = vmatpush1.msra.mxu0 0.0
        %2260 = vmatprep.subr.mxu0 0.0
        %2261 = vmatpush1.msra.mxu0 0.0
        %2262 = vmatprep.mubr.f32.mxu0 0.0
        %2263 = vmatmul.mubr.f32.gmra.mrb[0].mxu0 %v2012
        %v2264 = vpop.f32.mrb[0].mxu0
        %v2265 = vadd.f32 %v2196, %v2264
        %v2266 = vpop.f32.mrb[0].mxu0
        %2267 = vdwg.mxu0
        %v2269 = vsel %vm1212, %v2081, 0
        %v2272 = vsel %vm1212, %v2168, 0
        %v2275 = vsel %vm1212, %v2173, 0
        %2277 = vmatprep.subr.mxu0 0.0
        %2278 = vmatpush1.xpose.msra.mxu0 %v2272
        %2279 = vmatprep.subr.mxu0 0.0
        %2280 = vmatpush1.xpose.msra.mxu0 %v2275
        %2281 = vmatprep.subr.mxu0 0.0
        %2282 = vmatpush1.xpose.msra.mxu0 0.0
        %2283 = vmatprep.subr.mxu0 0.0
        %2284 = vmatpush1.xpose.msra.mxu0 0.0
        %2285 = vmatprep.subr.mxu0 0.0
        %2286 = vmatpush1.xpose.msra.mxu0 0.0
        %2287 = vmatprep.subr.mxu0 0.0
        %2288 = vmatpush1.xpose.msra.mxu0 0.0
        %2289 = vmatprep.subr.mxu0 0.0
        %2290 = vmatpush1.xpose.msra.mxu0 0.0
        %2291 = vmatprep.subr.mxu0 0.0
        %2292 = vmatpush1.xpose.msra.mxu0 0.0
        %2293 = vmatprep.subr.mxu0 0.0
        %2294 = vmatpush1.xpose.msra.mxu0 0.0
        %2295 = vmatprep.subr.mxu0 0.0
        %2296 = vmatpush1.xpose.msra.mxu0 0.0
        %2297 = vmatprep.subr.mxu0 0.0
        %2298 = vmatpush1.xpose.msra.mxu0 0.0
        %2299 = vmatprep.subr.mxu0 0.0
        %2300 = vmatpush1.xpose.msra.mxu0 0.0
        %2301 = vmatprep.subr.mxu0 0.0
        %2302 = vmatpush1.xpose.msra.mxu0 0.0
        %2303 = vmatprep.subr.mxu0 0.0
        %2304 = vmatpush1.xpose.msra.mxu0 0.0
        %2305 = vmatprep.subr.mxu0 0.0
        %2306 = vmatpush1.xpose.msra.mxu0 0.0
        %2307 = vmatprep.subr.mxu0 0.0
        %2308 = vmatpush1.xpose.msra.mxu0 0.0
        %2309 = vmatprep.subr.mxu0 0.0
        %2310 = vmatpush1.xpose.msra.mxu0 0.0
        %2311 = vmatprep.subr.mxu0 0.0
        %2312 = vmatpush1.xpose.msra.mxu0 0.0
        %2313 = vmatprep.subr.mxu0 0.0
        %2314 = vmatpush1.xpose.msra.mxu0 0.0
        %2315 = vmatprep.subr.mxu0 0.0
        %2316 = vmatpush1.xpose.msra.mxu0 0.0
        %2317 = vmatprep.subr.mxu0 0.0
        %2318 = vmatpush1.xpose.msra.mxu0 0.0
        %2319 = vmatprep.subr.mxu0 0.0
        %2320 = vmatpush1.xpose.msra.mxu0 0.0
        %2321 = vmatprep.subr.mxu0 0.0
        %2322 = vmatpush1.xpose.msra.mxu0 0.0
        %2323 = vmatprep.subr.mxu0 0.0
        %2324 = vmatpush1.xpose.msra.mxu0 0.0
        %2325 = vmatprep.subr.mxu0 0.0
        %2326 = vmatpush1.xpose.msra.mxu0 0.0
        %2327 = vmatprep.subr.mxu0 0.0
        %2328 = vmatpush1.xpose.msra.mxu0 0.0
        %2329 = vmatprep.subr.mxu0 0.0
        %2330 = vmatpush1.xpose.msra.mxu0 0.0
        %2331 = vmatprep.subr.mxu0 0.0
        %2332 = vmatpush1.xpose.msra.mxu0 0.0
        %2333 = vmatprep.subr.mxu0 0.0
        %2334 = vmatpush1.xpose.msra.mxu0 0.0
        %2335 = vmatprep.subr.mxu0 0.0
        %2336 = vmatpush1.xpose.msra.mxu0 0.0
        %2337 = vmatprep.subr.mxu0 0.0
        %2338 = vmatpush1.xpose.msra.mxu0 0.0
        %2339 = vmatprep.subr.mxu0 0.0
        %2340 = vmatpush1.xpose.msra.mxu0 0.0
        %2341 = vmatprep.mubr.f32.mxu0 0.0
        %2342 = vmatmul.mubr.f32.gmra.mrb[0].mxu0 %v2269
        %v2343 = vpop.f32.mrb[0].mxu0
        %v2344 = vadd.f32 0.0, %v2343
        %v2345 = vpop.f32.mrb[0].mxu0
        %2346 = vdwg.mxu0
        %v2347 = vmul.f32 %v2344, 0.35355338
        %v2348 = vadd.f32 %v2347, %v2191
        %vm2349 = vcmask 130048
        %v2350 = vsel %vm2349, %v2348, -inf
        %2351 = vmax.xlane.f32.xlu0 %v2350
        %v2352 = vpop.xlane.xlu0 %2351
        %v2353 = vsub.f32 %v2348, %v2352
        %v2354 = vmul.f32 %v2353, 1.442695
        %v2355 = vpow.pop %v2354
        %v2356 = vsel %vm2349, %v2355, 0.0
        %2357 = vadd.xlane.f32.xlu0 %v2356
        %v2358 = vpop.xlane.xlu0 %2357
        %v2359 = vrcp.pop %v2358
        %v2360 = vmul.f32 %v2355, %v2359
        %2361 = vrot.lane.b32.xlu0 %v2168, 96
        %v2362 = vpop.permute.xlu0 %2361
        %2363 = vrot.lane.b32.xlu0 %v2173, 96
        %v2364 = vpop.permute.xlu0 %2363
        %v2368 = vsel %vm2349, %v2360, 0
        %2370 = vmatprep.subr.mxu0 0.0
        %2371 = vmatpush1.msra.mxu0 %v2362
        %2372 = vmatprep.subr.mxu0 0.0
        %2373 = vmatpush1.msra.mxu0 %v2364
        %2374 = vmatprep.subr.mxu0 0.0
        %2375 = vmatpush1.msra.mxu0 0.0
        %2376 = vmatprep.subr.mxu0 0.0
        %2377 = vmatpush1.msra.mxu0 0.0
        %2378 = vmatprep.subr.mxu0 0.0
        %2379 = vmatpush1.msra.mxu0 0.0
        %2380 = vmatprep.subr.mxu0 0.0
        %2381 = vmatpush1.msra.mxu0 0.0
        %2382 = vmatprep.subr.mxu0 0.0
        %2383 = vmatpush1.msra.mxu0 0.0
        %2384 = vmatprep.subr.mxu0 0.0
        %2385 = vmatpush1.msra.mxu0 0.0
        %2386 = vmatprep.subr.mxu0 0.0
        %2387 = vmatpush1.msra.mxu0 0.0
        %2388 = vmatprep.subr.mxu0 0.0
        %2389 = vmatpush1.msra.mxu0 0.0
        %2390 = vmatprep.subr.mxu0 0.0
        %2391 = vmatpush1.msra.mxu0 0.0
        %2392 = vmatprep.subr.mxu0 0.0
        %2393 = vmatpush1.msra.mxu0 0.0
        %2394 = vmatprep.subr.mxu0 0.0
        %2395 = vmatpush1.msra.mxu0 0.0
        %2396 = vmatprep.subr.mxu0 0.0
        %2397 = vmatpush1.msra.mxu0 0.0
        %2398 = vmatprep.subr.mxu0 0.0
        %2399 = vmatpush1.msra.mxu0 0.0
        %2400 = vmatprep.subr.mxu0 0.0
        %2401 = vmatpush1.msra.mxu0 0.0
        %2402 = vmatprep.subr.mxu0 0.0
        %2403 = vmatpush1.msra.mxu0 0.0
        %2404 = vmatprep.subr.mxu0 0.0
        %2405 = vmatpush1.msra.mxu0 0.0
        %2406 = vmatprep.subr.mxu0 0.0
        %2407 = vmatpush1.msra.mxu0 0.0
        %2408 = vmatprep.subr.mxu0 0.0
        %2409 = vmatpush1.msra.mxu0 0.0
        %2410 = vmatprep.subr.mxu0 0.0
        %2411 = vmatpush1.msra.mxu0 0.0
        %2412 = vmatprep.subr.mxu0 0.0
        %2413 = vmatpush1.msra.mxu0 0.0
        %2414 = vmatprep.subr.mxu0 0.0
        %2415 = vmatpush1.msra.mxu0 0.0
        %2416 = vmatprep.subr.mxu0 0.0
        %2417 = vmatpush1.msra.mxu0 0.0
        %2418 = vmatprep.subr.mxu0 0.0
        %2419 = vmatpush1.msra.mxu0 0.0
        %2420 = vmatprep.subr.mxu0 0.0
        %2421 = vmatpush1.msra.mxu0 0.0
        %2422 = vmatprep.subr.mxu0 0.0
        %2423 = vmatpush1.msra.mxu0 0.0
        %2424 = vmatprep.subr.mxu0 0.0
        %2425 = vmatpush1.msra.mxu0 0.0
        %2426 = vmatprep.subr.mxu0 0.0
        %2427 = vmatpush1.msra.mxu0 0.0
        %2428 = vmatprep.subr.mxu0 0.0
        %2429 = vmatpush1.msra.mxu0 0.0
        %2430 = vmatprep.subr.mxu0 0.0
        %2431 = vmatpush1.msra.mxu0 0.0
        %2432 = vmatprep.subr.mxu0 0.0
        %2433 = vmatpush1.msra.mxu0 0.0
        %2434 = vmatprep.mubr.f32.mxu0 0.0
        %2435 = vmatmul.mubr.f32.gmra.mrb[0].mxu0 %v2368
        %v2436 = vpop.f32.mrb[0].mxu0
        %v2437 = vadd.f32 0.0, %v2436
        %v2438 = vpop.f32.mrb[0].mxu0
        %2439 = vdwg.mxu0
        %2440 = vst.msk [vmem:[#allocation2] sm:$0xff] %vm1212, %v2437
        %2441 = vrot.lane.b32.xlu0 %v2081, 120
        %v2442 = vpop.permute.xlu0 %2441
        %2443 = vrot.lane.b32.xlu0 %v2168, 120
        %v2444 = vpop.permute.xlu0 %2443
        %2445 = vrot.lane.b32.xlu0 %v2173, 120
        %v2446 = vpop.permute.xlu0 %2445
        %v2447 = vsel %vm1212, %v2442, 0
        %v2449 = vsel %vm1212, %v2444, 0
        %v2451 = vsel %vm1212, %v2446, 0
        %2453 = vmatprep.subr.mxu0 0.0
        %2454 = vmatpush1.xpose.msra.mxu0 %v2449
        %2455 = vmatprep.subr.mxu0 0.0
        %2456 = vmatpush1.xpose.msra.mxu0 %v2451
        %2457 = vmatprep.subr.mxu0 0.0
        %2458 = vmatpush1.xpose.msra.mxu0 0.0
        %2459 = vmatprep.subr.mxu0 0.0
        %2460 = vmatpush1.xpose.msra.mxu0 0.0
        %2461 = vmatprep.subr.mxu0 0.0
        %2462 = vmatpush1.xpose.msra.mxu0 0.0
        %2463 = vmatprep.subr.mxu0 0.0
        %2464 = vmatpush1.xpose.msra.mxu0 0.0
        %2465 = vmatprep.subr.mxu0 0.0
        %2466 = vmatpush1.xpose.msra.mxu0 0.0
        %2467 = vmatprep.subr.mxu0 0.0
        %2468 = vmatpush1.xpose.msra.mxu0 0.0
        %2469 = vmatprep.subr.mxu0 0.0
        %2470 = vmatpush1.xpose.msra.mxu0 0.0
        %2471 = vmatprep.subr.mxu0 0.0
        %2472 = vmatpush1.xpose.msra.mxu0 0.0
        %2473 = vmatprep.subr.mxu0 0.0
        %2474 = vmatpush1.xpose.msra.mxu0 0.0
        %2475 = vmatprep.subr.mxu0 0.0
        %2476 = vmatpush1.xpose.msra.mxu0 0.0
        %2477 = vmatprep.subr.mxu0 0.0
        %2478 = vmatpush1.xpose.msra.mxu0 0.0
        %2479 = vmatprep.subr.mxu0 0.0
        %2480 = vmatpush1.xpose.msra.mxu0 0.0
        %2481 = vmatprep.subr.mxu0 0.0
        %2482 = vmatpush1.xpose.msra.mxu0 0.0
        %2483 = vmatprep.subr.mxu0 0.0
        %2484 = vmatpush1.xpose.msra.mxu0 0.0
        %2485 = vmatprep.subr.mxu0 0.0
        %2486 = vmatpush1.xpose.msra.mxu0 0.0
        %2487 = vmatprep.subr.mxu0 0.0
        %2488 = vmatpush1.xpose.msra.mxu0 0.0
        %2489 = vmatprep.subr.mxu0 0.0
        %2490 = vmatpush1.xpose.msra.mxu0 0.0
        %2491 = vmatprep.subr.mxu0 0.0
        %2492 = vmatpush1.xpose.msra.mxu0 0.0
        %2493 = vmatprep.subr.mxu0 0.0
        %2494 = vmatpush1.xpose.msra.mxu0 0.0
        %2495 = vmatprep.subr.mxu0 0.0
        %2496 = vmatpush1.xpose.msra.mxu0 0.0
        %2497 = vmatprep.subr.mxu0 0.0
        %2498 = vmatpush1.xpose.msra.mxu0 0.0
        %2499 = vmatprep.subr.mxu0 0.0
        %2500 = vmatpush1.xpose.msra.mxu0 0.0
        %2501 = vmatprep.subr.mxu0 0.0
        %2502 = vmatpush1.xpose.msra.mxu0 0.0
        %2503 = vmatprep.subr.mxu0 0.0
        %2504 = vmatpush1.xpose.msra.mxu0 0.0
        %2505 = vmatprep.subr.mxu0 0.0
        %2506 = vmatpush1.xpose.msra.mxu0 0.0
        %2507 = vmatprep.subr.mxu0 0.0
        %2508 = vmatpush1.xpose.msra.mxu0 0.0
        %2509 = vmatprep.subr.mxu0 0.0
        %2510 = vmatpush1.xpose.msra.mxu0 0.0
        %2511 = vmatprep.subr.mxu0 0.0
        %2512 = vmatpush1.xpose.msra.mxu0 0.0
        %2513 = vmatprep.subr.mxu0 0.0
        %2514 = vmatpush1.xpose.msra.mxu0 0.0
        %2515 = vmatprep.subr.mxu0 0.0
        %2516 = vmatpush1.xpose.msra.mxu0 0.0
        %2517 = vmatprep.mubr.f32.mxu0 0.0
        %2518 = vmatmul.mubr.f32.gmra.mrb[0].mxu0 %v2447
        %v2519 = vpop.f32.mrb[0].mxu0
        %v2520 = vadd.f32 0.0, %v2519
        %v2521 = vpop.f32.mrb[0].mxu0
        %2522 = vdwg.mxu0
        %v2523 = vmul.f32 %v2520, 0.35355338
        %v2524 = vadd.f32 %v2523, %v2191
        %v2525 = vsel %vm2349, %v2524, -inf
        %2526 = vmax.xlane.f32.xlu0 %v2525
        %v2527 = vpop.xlane.xlu0 %2526
        %v2528 = vsub.f32 %v2524, %v2527
        %v2529 = vmul.f32 %v2528, 1.442695
        %v2530 = vpow.pop %v2529
        %v2531 = vsel %vm2349, %v2530, 0.0
        %2532 = vadd.xlane.f32.xlu0 %v2531
        %v2533 = vpop.xlane.xlu0 %2532
        %v2534 = vrcp.pop %v2533
        %v2535 = vmul.f32 %v2530, %v2534
        %2536 = vrot.lane.b32.xlu0 %v2168, 88
        %v2537 = vpop.permute.xlu0 %2536
        %2538 = vrot.lane.b32.xlu0 %v2173, 88
        %v2539 = vpop.permute.xlu0 %2538
        %v2543 = vsel %vm2349, %v2535, 0
        %2545 = vmatprep.subr.mxu0 0.0
        %2546 = vmatpush1.msra.mxu0 %v2537
        %2547 = vmatprep.subr.mxu0 0.0
        %2548 = vmatpush1.msra.mxu0 %v2539
        %2549 = vmatprep.subr.mxu0 0.0
        %2550 = vmatpush1.msra.mxu0 0.0
        %2551 = vmatprep.subr.mxu0 0.0
        %2552 = vmatpush1.msra.mxu0 0.0
        %2553 = vmatprep.subr.mxu0 0.0
        %2554 = vmatpush1.msra.mxu0 0.0
        %2555 = vmatprep.subr.mxu0 0.0
        %2556 = vmatpush1.msra.mxu0 0.0
        %2557 = vmatprep.subr.mxu0 0.0
        %2558 = vmatpush1.msra.mxu0 0.0
        %2559 = vmatprep.subr.mxu0 0.0
        %2560 = vmatpush1.msra.mxu0 0.0
        %2561 = vmatprep.subr.mxu0 0.0
        %2562 = vmatpush1.msra.mxu0 0.0
        %2563 = vmatprep.subr.mxu0 0.0
        %2564 = vmatpush1.msra.mxu0 0.0
        %2565 = vmatprep.subr.mxu0 0.0
        %2566 = vmatpush1.msra.mxu0 0.0
        %2567 = vmatprep.subr.mxu0 0.0
        %2568 = vmatpush1.msra.mxu0 0.0
        %2569 = vmatprep.subr.mxu0 0.0
        %2570 = vmatpush1.msra.mxu0 0.0
        %2571 = vmatprep.subr.mxu0 0.0
        %2572 = vmatpush1.msra.mxu0 0.0
        %2573 = vmatprep.subr.mxu0 0.0
        %2574 = vmatpush1.msra.mxu0 0.0
        %2575 = vmatprep.subr.mxu0 0.0
        %2576 = vmatpush1.msra.mxu0 0.0
        %2577 = vmatprep.subr.mxu0 0.0
        %2578 = vmatpush1.msra.mxu0 0.0
        %2579 = vmatprep.subr.mxu0 0.0
        %2580 = vmatpush1.msra.mxu0 0.0
        %2581 = vmatprep.subr.mxu0 0.0
        %2582 = vmatpush1.msra.mxu0 0.0
        %2583 = vmatprep.subr.mxu0 0.0
        %2584 = vmatpush1.msra.mxu0 0.0
        %2585 = vmatprep.subr.mxu0 0.0
        %2586 = vmatpush1.msra.mxu0 0.0
        %2587 = vmatprep.subr.mxu0 0.0
        %2588 = vmatpush1.msra.mxu0 0.0
        %2589 = vmatprep.subr.mxu0 0.0
        %2590 = vmatpush1.msra.mxu0 0.0
        %2591 = vmatprep.subr.mxu0 0.0
        %2592 = vmatpush1.msra.mxu0 0.0
        %2593 = vmatprep.subr.mxu0 0.0
        %2594 = vmatpush1.msra.mxu0 0.0
        %2595 = vmatprep.subr.mxu0 0.0
        %2596 = vmatpush1.msra.mxu0 0.0
        %2597 = vmatprep.subr.mxu0 0.0
        %2598 = vmatpush1.msra.mxu0 0.0
        %2599 = vmatprep.subr.mxu0 0.0
        %2600 = vmatpush1.msra.mxu0 0.0
        %2601 = vmatprep.subr.mxu0 0.0
        %2602 = vmatpush1.msra.mxu0 0.0
        %2603 = vmatprep.subr.mxu0 0.0
        %2604 = vmatpush1.msra.mxu0 0.0
        %2605 = vmatprep.subr.mxu0 0.0
        %2606 = vmatpush1.msra.mxu0 0.0
        %2607 = vmatprep.subr.mxu0 0.0
        %2608 = vmatpush1.msra.mxu0 0.0
        %2609 = vmatprep.mubr.f32.mxu0 0.0
        %2610 = vmatmul.mubr.f32.gmra.mrb[0].mxu0 %v2543
        %v2611 = vpop.f32.mrb[0].mxu0
        %v2612 = vadd.f32 0.0, %v2611
        %v2613 = vpop.f32.mrb[0].mxu0
        %2614 = vdwg.mxu0
        %2616 = vrot.lane.b32.xlu0 %v2612, 8
        %v2617 = vpop.permute.xlu0 %2616
        %2619 = vst.msk [vmem:[#allocation2] sm:$0xff] %vm1548, %v2617
        %2620 = vrot.lane.b32.xlu0 %v2081, 112
        %v2621 = vpop.permute.xlu0 %2620
        %2622 = vrot.lane.b32.xlu0 %v2168, 112
        %v2623 = vpop.permute.xlu0 %2622
        %2624 = vrot.lane.b32.xlu0 %v2173, 112
        %v2625 = vpop.permute.xlu0 %2624
        %v2626 = vsel %vm1212, %v2621, 0
        %v2628 = vsel %vm1212, %v2623, 0
        %v2630 = vsel %vm1212, %v2625, 0
        %2632 = vmatprep.subr.mxu0 0.0
        %2633 = vmatpush1.xpose.msra.mxu0 %v2628
        %2634 = vmatprep.subr.mxu0 0.0
        %2635 = vmatpush1.xpose.msra.mxu0 %v2630
        %2636 = vmatprep.subr.mxu0 0.0
        %2637 = vmatpush1.xpose.msra.mxu0 0.0
        %2638 = vmatprep.subr.mxu0 0.0
        %2639 = vmatpush1.xpose.msra.mxu0 0.0
        %2640 = vmatprep.subr.mxu0 0.0
        %2641 = vmatpush1.xpose.msra.mxu0 0.0
        %2642 = vmatprep.subr.mxu0 0.0
        %2643 = vmatpush1.xpose.msra.mxu0 0.0
        %2644 = vmatprep.subr.mxu0 0.0
        %2645 = vmatpush1.xpose.msra.mxu0 0.0
        %2646 = vmatprep.subr.mxu0 0.0
        %2647 = vmatpush1.xpose.msra.mxu0 0.0
        %2648 = vmatprep.subr.mxu0 0.0
        %2649 = vmatpush1.xpose.msra.mxu0 0.0
        %2650 = vmatprep.subr.mxu0 0.0
        %2651 = vmatpush1.xpose.msra.mxu0 0.0
        %2652 = vmatprep.subr.mxu0 0.0
        %2653 = vmatpush1.xpose.msra.mxu0 0.0
        %2654 = vmatprep.subr.mxu0 0.0
        %2655 = vmatpush1.xpose.msra.mxu0 0.0
        %2656 = vmatprep.subr.mxu0 0.0
        %2657 = vmatpush1.xpose.msra.mxu0 0.0
        %2658 = vmatprep.subr.mxu0 0.0
        %2659 = vmatpush1.xpose.msra.mxu0 0.0
        %2660 = vmatprep.subr.mxu0 0.0
        %2661 = vmatpush1.xpose.msra.mxu0 0.0
        %2662 = vmatprep.subr.mxu0 0.0
        %2663 = vmatpush1.xpose.msra.mxu0 0.0
        %2664 = vmatprep.subr.mxu0 0.0
        %2665 = vmatpush1.xpose.msra.mxu0 0.0
        %2666 = vmatprep.subr.mxu0 0.0
        %2667 = vmatpush1.xpose.msra.mxu0 0.0
        %2668 = vmatprep.subr.mxu0 0.0
        %2669 = vmatpush1.xpose.msra.mxu0 0.0
        %2670 = vmatprep.subr.mxu0 0.0
        %2671 = vmatpush1.xpose.msra.mxu0 0.0
        %2672 = vmatprep.subr.mxu0 0.0
        %2673 = vmatpush1.xpose.msra.mxu0 0.0
        %2674 = vmatprep.subr.mxu0 0.0
        %2675 = vmatpush1.xpose.msra.mxu0 0.0
        %2676 = vmatprep.subr.mxu0 0.0
        %2677 = vmatpush1.xpose.msra.mxu0 0.0
        %2678 = vmatprep.subr.mxu0 0.0
        %2679 = vmatpush1.xpose.msra.mxu0 0.0
        %2680 = vmatprep.subr.mxu0 0.0
        %2681 = vmatpush1.xpose.msra.mxu0 0.0
        %2682 = vmatprep.subr.mxu0 0.0
        %2683 = vmatpush1.xpose.msra.mxu0 0.0
        %2684 = vmatprep.subr.mxu0 0.0
        %2685 = vmatpush1.xpose.msra.mxu0 0.0
        %2686 = vmatprep.subr.mxu0 0.0
        %2687 = vmatpush1.xpose.msra.mxu0 0.0
        %2688 = vmatprep.subr.mxu0 0.0
        %2689 = vmatpush1.xpose.msra.mxu0 0.0
        %2690 = vmatprep.subr.mxu0 0.0
        %2691 = vmatpush1.xpose.msra.mxu0 0.0
        %2692 = vmatprep.subr.mxu0 0.0
        %2693 = vmatpush1.xpose.msra.mxu0 0.0
        %2694 = vmatprep.subr.mxu0 0.0
        %2695 = vmatpush1.xpose.msra.mxu0 0.0
        %2696 = vmatprep.mubr.f32.mxu0 0.0
        %2697 = vmatmul.mubr.f32.gmra.mrb[0].mxu0 %v2626
        %v2698 = vpop.f32.mrb[0].mxu0
        %v2699 = vadd.f32 0.0, %v2698
        %v2700 = vpop.f32.mrb[0].mxu0
        %2701 = vdwg.mxu0
        %v2702 = vmul.f32 %v2699, 0.35355338
        %v2703 = vadd.f32 %v2702, %v2191
        %v2704 = vsel %vm2349, %v2703, -inf
        %2705 = vmax.xlane.f32.xlu0 %v2704
        %v2706 = vpop.xlane.xlu0 %2705
        %v2707 = vsub.f32 %v2703, %v2706
        %v2708 = vmul.f32 %v2707, 1.442695
        %v2709 = vpow.pop %v2708
        %v2710 = vsel %vm2349, %v2709, 0.0
        %2711 = vadd.xlane.f32.xlu0 %v2710
        %v2712 = vpop.xlane.xlu0 %2711
        %v2713 = vrcp.pop %v2712
        %v2714 = vmul.f32 %v2709, %v2713
        %2715 = vrot.lane.b32.xlu0 %v2168, 80
        %v2716 = vpop.permute.xlu0 %2715
        %2717 = vrot.lane.b32.xlu0 %v2173, 80
        %v2718 = vpop.permute.xlu0 %2717
        %v2722 = vsel %vm2349, %v2714, 0
        %2724 = vmatprep.subr.mxu0 0.0
        %2725 = vmatpush1.msra.mxu0 %v2716
        %2726 = vmatprep.subr.mxu0 0.0
        %2727 = vmatpush1.msra.mxu0 %v2718
        %2728 = vmatprep.subr.mxu0 0.0
        %2729 = vmatpush1.msra.mxu0 0.0
        %2730 = vmatprep.subr.mxu0 0.0
        %2731 = vmatpush1.msra.mxu0 0.0
        %2732 = vmatprep.subr.mxu0 0.0
        %2733 = vmatpush1.msra.mxu0 0.0
        %2734 = vmatprep.subr.mxu0 0.0
        %2735 = vmatpush1.msra.mxu0 0.0
        %2736 = vmatprep.subr.mxu0 0.0
        %2737 = vmatpush1.msra.mxu0 0.0
        %2738 = vmatprep.subr.mxu0 0.0
        %2739 = vmatpush1.msra.mxu0 0.0
        %2740 = vmatprep.subr.mxu0 0.0
        %2741 = vmatpush1.msra.mxu0 0.0
        %2742 = vmatprep.subr.mxu0 0.0
        %2743 = vmatpush1.msra.mxu0 0.0
        %2744 = vmatprep.subr.mxu0 0.0
        %2745 = vmatpush1.msra.mxu0 0.0
        %2746 = vmatprep.subr.mxu0 0.0
        %2747 = vmatpush1.msra.mxu0 0.0
        %2748 = vmatprep.subr.mxu0 0.0
        %2749 = vmatpush1.msra.mxu0 0.0
        %2750 = vmatprep.subr.mxu0 0.0
        %2751 = vmatpush1.msra.mxu0 0.0
        %2752 = vmatprep.subr.mxu0 0.0
        %2753 = vmatpush1.msra.mxu0 0.0
        %2754 = vmatprep.subr.mxu0 0.0
        %2755 = vmatpush1.msra.mxu0 0.0
        %2756 = vmatprep.subr.mxu0 0.0
        %2757 = vmatpush1.msra.mxu0 0.0
        %2758 = vmatprep.subr.mxu0 0.0
        %2759 = vmatpush1.msra.mxu0 0.0
        %2760 = vmatprep.subr.mxu0 0.0
        %2761 = vmatpush1.msra.mxu0 0.0
        %2762 = vmatprep.subr.mxu0 0.0
        %2763 = vmatpush1.msra.mxu0 0.0
        %2764 = vmatprep.subr.mxu0 0.0
        %2765 = vmatpush1.msra.mxu0 0.0
        %2766 = vmatprep.subr.mxu0 0.0
        %2767 = vmatpush1.msra.mxu0 0.0
        %2768 = vmatprep.subr.mxu0 0.0
        %2769 = vmatpush1.msra.mxu0 0.0
        %2770 = vmatprep.subr.mxu0 0.0
        %2771 = vmatpush1.msra.mxu0 0.0
        %2772 = vmatprep.subr.mxu0 0.0
        %2773 = vmatpush1.msra.mxu0 0.0
        %2774 = vmatprep.subr.mxu0 0.0
        %2775 = vmatpush1.msra.mxu0 0.0
        %2776 = vmatprep.subr.mxu0 0.0
        %2777 = vmatpush1.msra.mxu0 0.0
        %2778 = vmatprep.subr.mxu0 0.0
        %2779 = vmatpush1.msra.mxu0 0.0
        %2780 = vmatprep.subr.mxu0 0.0
        %2781 = vmatpush1.msra.mxu0 0.0
        %2782 = vmatprep.subr.mxu0 0.0
        %2783 = vmatpush1.msra.mxu0 0.0
        %2784 = vmatprep.subr.mxu0 0.0
        %2785 = vmatpush1.msra.mxu0 0.0
        %2786 = vmatprep.subr.mxu0 0.0
        %2787 = vmatpush1.msra.mxu0 0.0
        %2788 = vmatprep.mubr.f32.mxu0 0.0
        %2789 = vmatmul.mubr.f32.gmra.mrb[0].mxu0 %v2722
        %v2790 = vpop.f32.mrb[0].mxu0
        %v2791 = vadd.f32 0.0, %v2790
        %v2792 = vpop.f32.mrb[0].mxu0
        %2793 = vdwg.mxu0
        %2795 = vrot.lane.b32.xlu0 %v2791, 16
        %v2796 = vpop.permute.xlu0 %2795
        %2798 = vst.msk [vmem:[#allocation2] sm:$0xff] %vm1721, %v2796
        %2799 = vrot.lane.b32.xlu0 %v2081, 104
        %v2800 = vpop.permute.xlu0 %2799
        %2801 = vrot.lane.b32.xlu0 %v2168, 104
        %v2802 = vpop.permute.xlu0 %2801
        %2803 = vrot.lane.b32.xlu0 %v2173, 104
        %v2804 = vpop.permute.xlu0 %2803
        %v2805 = vsel %vm1212, %v2800, 0
        %v2807 = vsel %vm1212, %v2802, 0
        %v2809 = vsel %vm1212, %v2804, 0
        %2811 = vmatprep.subr.mxu0 0.0
        %2812 = vmatpush1.xpose.msra.mxu0 %v2807
        %2813 = vmatprep.subr.mxu0 0.0
        %2814 = vmatpush1.xpose.msra.mxu0 %v2809
        %2815 = vmatprep.subr.mxu0 0.0
        %2816 = vmatpush1.xpose.msra.mxu0 0.0
        %2817 = vmatprep.subr.mxu0 0.0
        %2818 = vmatpush1.xpose.msra.mxu0 0.0
        %2819 = vmatprep.subr.mxu0 0.0
        %2820 = vmatpush1.xpose.msra.mxu0 0.0
        %2821 = vmatprep.subr.mxu0 0.0
        %2822 = vmatpush1.xpose.msra.mxu0 0.0
        %2823 = vmatprep.subr.mxu0 0.0
        %2824 = vmatpush1.xpose.msra.mxu0 0.0
        %2825 = vmatprep.subr.mxu0 0.0
        %2826 = vmatpush1.xpose.msra.mxu0 0.0
        %2827 = vmatprep.subr.mxu0 0.0
        %2828 = vmatpush1.xpose.msra.mxu0 0.0
        %2829 = vmatprep.subr.mxu0 0.0
        %2830 = vmatpush1.xpose.msra.mxu0 0.0
        %2831 = vmatprep.subr.mxu0 0.0
        %2832 = vmatpush1.xpose.msra.mxu0 0.0
        %2833 = vmatprep.subr.mxu0 0.0
        %2834 = vmatpush1.xpose.msra.mxu0 0.0
        %2835 = vmatprep.subr.mxu0 0.0
        %2836 = vmatpush1.xpose.msra.mxu0 0.0
        %2837 = vmatprep.subr.mxu0 0.0
        %2838 = vmatpush1.xpose.msra.mxu0 0.0
        %2839 = vmatprep.subr.mxu0 0.0
        %2840 = vmatpush1.xpose.msra.mxu0 0.0
        %2841 = vmatprep.subr.mxu0 0.0
        %2842 = vmatpush1.xpose.msra.mxu0 0.0
        %2843 = vmatprep.subr.mxu0 0.0
        %2844 = vmatpush1.xpose.msra.mxu0 0.0
        %2845 = vmatprep.subr.mxu0 0.0
        %2846 = vmatpush1.xpose.msra.mxu0 0.0
        %2847 = vmatprep.subr.mxu0 0.0
        %2848 = vmatpush1.xpose.msra.mxu0 0.0
        %2849 = vmatprep.subr.mxu0 0.0
        %2850 = vmatpush1.xpose.msra.mxu0 0.0
        %2851 = vmatprep.subr.mxu0 0.0
        %2852 = vmatpush1.xpose.msra.mxu0 0.0
        %2853 = vmatprep.subr.mxu0 0.0
        %2854 = vmatpush1.xpose.msra.mxu0 0.0
        %2855 = vmatprep.subr.mxu0 0.0
        %2856 = vmatpush1.xpose.msra.mxu0 0.0
        %2857 = vmatprep.subr.mxu0 0.0
        %2858 = vmatpush1.xpose.msra.mxu0 0.0
        %2859 = vmatprep.subr.mxu0 0.0
        %2860 = vmatpush1.xpose.msra.mxu0 0.0
        %2861 = vmatprep.subr.mxu0 0.0
        %2862 = vmatpush1.xpose.msra.mxu0 0.0
        %2863 = vmatprep.subr.mxu0 0.0
        %2864 = vmatpush1.xpose.msra.mxu0 0.0
        %2865 = vmatprep.subr.mxu0 0.0
        %2866 = vmatpush1.xpose.msra.mxu0 0.0
        %2867 = vmatprep.subr.mxu0 0.0
        %2868 = vmatpush1.xpose.msra.mxu0 0.0
        %2869 = vmatprep.subr.mxu0 0.0
        %2870 = vmatpush1.xpose.msra.mxu0 0.0
        %2871 = vmatprep.subr.mxu0 0.0
        %2872 = vmatpush1.xpose.msra.mxu0 0.0
        %2873 = vmatprep.subr.mxu0 0.0
        %2874 = vmatpush1.xpose.msra.mxu0 0.0
        %2875 = vmatprep.mubr.f32.mxu0 0.0
        %2876 = vmatmul.mubr.f32.gmra.mrb[0].mxu0 %v2805
        %v2877 = vpop.f32.mrb[0].mxu0
        %v2878 = vadd.f32 0.0, %v2877
        %v2879 = vpop.f32.mrb[0].mxu0
        %2880 = vdwg.mxu0
        %v2881 = vmul.f32 %v2878, 0.35355338
        %v2882 = vadd.f32 %v2881, %v2191
        %v2883 = vsel %vm2349, %v2882, -inf
        %2884 = vmax.xlane.f32.xlu0 %v2883
        %v2885 = vpop.xlane.xlu0 %2884
        %v2886 = vsub.f32 %v2882, %v2885
        %v2887 = vmul.f32 %v2886, 1.442695
        %v2888 = vpow.pop %v2887
        %v2889 = vsel %vm2349, %v2888, 0.0
        %2890 = vadd.xlane.f32.xlu0 %v2889
        %v2891 = vpop.xlane.xlu0 %2890
        %v2892 = vrcp.pop %v2891
        %v2893 = vmul.f32 %v2888, %v2892
        %2894 = vrot.lane.b32.xlu0 %v2168, 72
        %v2895 = vpop.permute.xlu0 %2894
        %2896 = vrot.lane.b32.xlu0 %v2173, 72
        %v2897 = vpop.permute.xlu0 %2896
        %v2901 = vsel %vm2349, %v2893, 0
        %2903 = vmatprep.subr.mxu0 0.0
        %2904 = vmatpush1.msra.mxu0 %v2895
        %2905 = vmatprep.subr.mxu0 0.0
        %2906 = vmatpush1.msra.mxu0 %v2897
        %2907 = vmatprep.subr.mxu0 0.0
        %2908 = vmatpush1.msra.mxu0 0.0
        %2909 = vmatprep.subr.mxu0 0.0
        %2910 = vmatpush1.msra.mxu0 0.0
        %2911 = vmatprep.subr.mxu0 0.0
        %2912 = vmatpush1.msra.mxu0 0.0
        %2913 = vmatprep.subr.mxu0 0.0
        %2914 = vmatpush1.msra.mxu0 0.0
        %2915 = vmatprep.subr.mxu0 0.0
        %2916 = vmatpush1.msra.mxu0 0.0
        %2917 = vmatprep.subr.mxu0 0.0
        %2918 = vmatpush1.msra.mxu0 0.0
        %2919 = vmatprep.subr.mxu0 0.0
        %2920 = vmatpush1.msra.mxu0 0.0
        %2921 = vmatprep.subr.mxu0 0.0
        %2922 = vmatpush1.msra.mxu0 0.0
        %2923 = vmatprep.subr.mxu0 0.0
        %2924 = vmatpush1.msra.mxu0 0.0
        %2925 = vmatprep.subr.mxu0 0.0
        %2926 = vmatpush1.msra.mxu0 0.0
        %2927 = vmatprep.subr.mxu0 0.0
        %2928 = vmatpush1.msra.mxu0 0.0
        %2929 = vmatprep.subr.mxu0 0.0
        %2930 = vmatpush1.msra.mxu0 0.0
        %2931 = vmatprep.subr.mxu0 0.0
        %2932 = vmatpush1.msra.mxu0 0.0
        %2933 = vmatprep.subr.mxu0 0.0
        %2934 = vmatpush1.msra.mxu0 0.0
        %2935 = vmatprep.subr.mxu0 0.0
        %2936 = vmatpush1.msra.mxu0 0.0
        %2937 = vmatprep.subr.mxu0 0.0
        %2938 = vmatpush1.msra.mxu0 0.0
        %2939 = vmatprep.subr.mxu0 0.0
        %2940 = vmatpush1.msra.mxu0 0.0
        %2941 = vmatprep.subr.mxu0 0.0
        %2942 = vmatpush1.msra.mxu0 0.0
        %2943 = vmatprep.subr.mxu0 0.0
        %2944 = vmatpush1.msra.mxu0 0.0
        %2945 = vmatprep.subr.mxu0 0.0
        %2946 = vmatpush1.msra.mxu0 0.0
        %2947 = vmatprep.subr.mxu0 0.0
        %2948 = vmatpush1.msra.mxu0 0.0
        %2949 = vmatprep.subr.mxu0 0.0
        %2950 = vmatpush1.msra.mxu0 0.0
        %2951 = vmatprep.subr.mxu0 0.0
        %2952 = vmatpush1.msra.mxu0 0.0
        %2953 = vmatprep.subr.mxu0 0.0
        %2954 = vmatpush1.msra.mxu0 0.0
        %2955 = vmatprep.subr.mxu0 0.0
        %2956 = vmatpush1.msra.mxu0 0.0
        %2957 = vmatprep.subr.mxu0 0.0
        %2958 = vmatpush1.msra.mxu0 0.0
        %2959 = vmatprep.subr.mxu0 0.0
        %2960 = vmatpush1.msra.mxu0 0.0
        %2961 = vmatprep.subr.mxu0 0.0
        %2962 = vmatpush1.msra.mxu0 0.0
        %2963 = vmatprep.subr.mxu0 0.0
        %2964 = vmatpush1.msra.mxu0 0.0
        %2965 = vmatprep.subr.mxu0 0.0
        %2966 = vmatpush1.msra.mxu0 0.0
        %2967 = vmatprep.mubr.f32.mxu0 0.0
        %2968 = vmatmul.mubr.f32.gmra.mrb[0].mxu0 %v2901
        %v2969 = vpop.f32.mrb[0].mxu0
        %v2970 = vadd.f32 0.0, %v2969
        %v2971 = vpop.f32.mrb[0].mxu0
        %2972 = vdwg.mxu0
        %2974 = vrot.lane.b32.xlu0 %v2970, 24
        %v2975 = vpop.permute.xlu0 %2974
        %2977 = vst.msk [vmem:[#allocation2] sm:$0xff] %vm1894, %v2975
        %v2978 = vld [vmem:[#allocation2] sm:$0xff]
        %v2980 = vsel %vm1043, %v2978, 0
        %2982 = vmatprep.subr.mxu0 0.0
        %2983 = vmatpush1.msra.mxu0 %v2181
        %2984 = vmatprep.subr.mxu0 0.0
        %2985 = vmatpush1.msra.mxu0 %v2182
        %2986 = vmatprep.subr.mxu0 0.0
        %2987 = vmatpush1.msra.mxu0 %v2183
        %2988 = vmatprep.subr.mxu0 0.0
        %2989 = vmatpush1.msra.mxu0 %v2184
        %2990 = vmatprep.subr.mxu0 0.0
        %2991 = vmatpush1.msra.mxu0 0.0
        %2992 = vmatprep.subr.mxu0 0.0
        %2993 = vmatpush1.msra.mxu0 0.0
        %2994 = vmatprep.subr.mxu0 0.0
        %2995 = vmatpush1.msra.mxu0 0.0
        %2996 = vmatprep.subr.mxu0 0.0
        %2997 = vmatpush1.msra.mxu0 0.0
        %2998 = vmatprep.subr.mxu0 0.0
        %2999 = vmatpush1.msra.mxu0 0.0
        %3000 = vmatprep.subr.mxu0 0.0
        %3001 = vmatpush1.msra.mxu0 0.0
        %3002 = vmatprep.subr.mxu0 0.0
        %3003 = vmatpush1.msra.mxu0 0.0
        %3004 = vmatprep.subr.mxu0 0.0
        %3005 = vmatpush1.msra.mxu0 0.0
        %3006 = vmatprep.subr.mxu0 0.0
        %3007 = vmatpush1.msra.mxu0 0.0
        %3008 = vmatprep.subr.mxu0 0.0
        %3009 = vmatpush1.msra.mxu0 0.0
        %3010 = vmatprep.subr.mxu0 0.0
        %3011 = vmatpush1.msra.mxu0 0.0
        %3012 = vmatprep.subr.mxu0 0.0
        %3013 = vmatpush1.msra.mxu0 0.0
        %3014 = vmatprep.subr.mxu0 0.0
        %3015 = vmatpush1.msra.mxu0 0.0
        %3016 = vmatprep.subr.mxu0 0.0
        %3017 = vmatpush1.msra.mxu0 0.0
        %3018 = vmatprep.subr.mxu0 0.0
        %3019 = vmatpush1.msra.mxu0 0.0
        %3020 = vmatprep.subr.mxu0 0.0
        %3021 = vmatpush1.msra.mxu0 0.0
        %3022 = vmatprep.subr.mxu0 0.0
        %3023 = vmatpush1.msra.mxu0 0.0
        %3024 = vmatprep.subr.mxu0 0.0
        %3025 = vmatpush1.msra.mxu0 0.0
        %3026 = vmatprep.subr.mxu0 0.0
        %3027 = vmatpush1.msra.mxu0 0.0
        %3028 = vmatprep.subr.mxu0 0.0
        %3029 = vmatpush1.msra.mxu0 0.0
        %3030 = vmatprep.subr.mxu0 0.0
        %3031 = vmatpush1.msra.mxu0 0.0
        %3032 = vmatprep.subr.mxu0 0.0
        %3033 = vmatpush1.msra.mxu0 0.0
        %3034 = vmatprep.subr.mxu0 0.0
        %3035 = vmatpush1.msra.mxu0 0.0
        %3036 = vmatprep.subr.mxu0 0.0
        %3037 = vmatpush1.msra.mxu0 0.0
        %3038 = vmatprep.subr.mxu0 0.0
        %3039 = vmatpush1.msra.mxu0 0.0
        %3040 = vmatprep.subr.mxu0 0.0
        %3041 = vmatpush1.msra.mxu0 0.0
        %3042 = vmatprep.subr.mxu0 0.0
        %3043 = vmatpush1.msra.mxu0 0.0
        %3044 = vmatprep.subr.mxu0 0.0
        %3045 = vmatpush1.msra.mxu0 0.0
        %3046 = vmatprep.mubr.f32.mxu0 0.0
        %3047 = vmatmul.mubr.f32.gmra.mrb[0].mxu0 %v2980
        %v3048 = vpop.f32.mrb[0].mxu0
        %v3049 = vadd.f32 0.0, %v3048
        %v3050 = vpop.f32.mrb[0].mxu0
        %3051 = vdwg.mxu0
        %v3052 = vadd.f32 %v2265, %v3049
        %v3053 = vadd.f32 %v3052, %v1999
        %v3054 = vsel %vm1043, %v3053, 0.0
        %3055 = vadd.xlane.f32.xlu0 %v3054
        %v3056 = vpop.xlane.xlu0 %3055
        %v3057 = vmul.f32 %v3056, %v1975
        %v3058 = vsub.f32 %v3053, %v3057
        %v3059 = vmul.f32 %v3058, %v3058
        %v3060 = vsel %vm1043, %v3059, 0.0
        %3061 = vadd.xlane.f32.xlu0 %v3060
        %v3062 = vpop.xlane.xlu0 %3061
        %v3063 = vmul.f32 %v3062, %v1975
        %v3064 = vadd.f32 %v3063, 1e-05
        %v3065 = vrsqrt.pop %v3064
        %v3066 = vmul.f32 %v3058, %v3065
        %v3068 = vlaneseq
        %v3069 = vshrl.u32 %v3068, 7
        %v3070 = vsub.s32 0, %v3069
        %v3071 = vrot.slane %v2186, %v3070
        %v3073 = vmul.f32 %v3066, %v3071
        %v3075 = vlaneseq
        %v3076 = vshrl.u32 %v3075, 7
        %v3077 = vsub.s32 0, %v3076
        %v3078 = vrot.slane %v2187, %v3077
        %v3080 = vadd.f32 %v3073, %v3078
        %v3081 = vld [vmem:[#allocation23] sm:$0xff]
        %v3082 = vld [vmem:[#allocation23 + $0x8] sm:$0xff]
        %v3083 = vld [vmem:[#allocation23 + $0x10] sm:$0xff]
        %v3084 = vld [vmem:[#allocation23 + $0x18] sm:$0xff]
        %v3085 = vld [vmem:[%s21] sm:$0x1]
        %v3087 = vlaneseq
        %v3088 = vshrl.u32 %v3087, 7
        %v3089 = vsub.s32 0, %v3088
        %v3090 = vrot.slane %v3085, %v3089
        %v3093 = vsel %vm1043, %v3080, 0
        %3095 = vmatprep.subr.mxu0 0.0
        %3096 = vmatpush1.msra.mxu0 %v3081
        %3097 = vmatprep.subr.mxu0 0.0
        %3098 = vmatpush1.msra.mxu0 %v3082
        %3099 = vmatprep.subr.mxu0 0.0
        %3100 = vmatpush1.msra.mxu0 %v3083
        %3101 = vmatprep.subr.mxu0 0.0
        %3102 = vmatpush1.msra.mxu0 %v3084
        %3103 = vmatprep.subr.mxu0 0.0
        %3104 = vmatpush1.msra.mxu0 0.0
        %3105 = vmatprep.subr.mxu0 0.0
        %3106 = vmatpush1.msra.mxu0 0.0
        %3107 = vmatprep.subr.mxu0 0.0
        %3108 = vmatpush1.msra.mxu0 0.0
        %3109 = vmatprep.subr.mxu0 0.0
        %3110 = vmatpush1.msra.mxu0 0.0
        %3111 = vmatprep.subr.mxu0 0.0
        %3112 = vmatpush1.msra.mxu0 0.0
        %3113 = vmatprep.subr.mxu0 0.0
        %3114 = vmatpush1.msra.mxu0 0.0
        %3115 = vmatprep.subr.mxu0 0.0
        %3116 = vmatpush1.msra.mxu0 0.0
        %3117 = vmatprep.subr.mxu0 0.0
        %3118 = vmatpush1.msra.mxu0 0.0
        %3119 = vmatprep.subr.mxu0 0.0
        %3120 = vmatpush1.msra.mxu0 0.0
        %3121 = vmatprep.subr.mxu0 0.0
        %3122 = vmatpush1.msra.mxu0 0.0
        %3123 = vmatprep.subr.mxu0 0.0
        %3124 = vmatpush1.msra.mxu0 0.0
        %3125 = vmatprep.subr.mxu0 0.0
        %3126 = vmatpush1.msra.mxu0 0.0
        %3127 = vmatprep.subr.mxu0 0.0
        %3128 = vmatpush1.msra.mxu0 0.0
        %3129 = vmatprep.subr.mxu0 0.0
        %3130 = vmatpush1.msra.mxu0 0.0
        %3131 = vmatprep.subr.mxu0 0.0
        %3132 = vmatpush1.msra.mxu0 0.0
        %3133 = vmatprep.subr.mxu0 0.0
        %3134 = vmatpush1.msra.mxu0 0.0
        %3135 = vmatprep.subr.mxu0 0.0
        %3136 = vmatpush1.msra.mxu0 0.0
        %3137 = vmatprep.subr.mxu0 0.0
        %3138 = vmatpush1.msra.mxu0 0.0
        %3139 = vmatprep.subr.mxu0 0.0
        %3140 = vmatpush1.msra.mxu0 0.0
        %3141 = vmatprep.subr.mxu0 0.0
        %3142 = vmatpush1.msra.mxu0 0.0
        %3143 = vmatprep.subr.mxu0 0.0
        %3144 = vmatpush1.msra.mxu0 0.0
        %3145 = vmatprep.subr.mxu0 0.0
        %3146 = vmatpush1.msra.mxu0 0.0
        %3147 = vmatprep.subr.mxu0 0.0
        %3148 = vmatpush1.msra.mxu0 0.0
        %3149 = vmatprep.subr.mxu0 0.0
        %3150 = vmatpush1.msra.mxu0 0.0
        %3151 = vmatprep.subr.mxu0 0.0
        %3152 = vmatpush1.msra.mxu0 0.0
        %3153 = vmatprep.subr.mxu0 0.0
        %3154 = vmatpush1.msra.mxu0 0.0
        %3155 = vmatprep.subr.mxu0 0.0
        %3156 = vmatpush1.msra.mxu0 0.0
        %3157 = vmatprep.subr.mxu0 0.0
        %3158 = vmatpush1.msra.mxu0 0.0
        %3159 = vmatprep.mubr.f32.mxu0 0.0
        %3160 = vmatmul.mubr.f32.gmra.mrb[0].mxu0 %v3093
        %v3161 = vpop.f32.mrb[0].mxu0
        %v3162 = vadd.f32 %v3090, %v3161
        %v3163 = vpop.f32.mrb[0].mxu0
        %3164 = vdwg.mxu0
        %vm3165 = vcmp.ge.f32.partialorder %v3162, 0.0
        %v3166 = vmul.f32 %v3162, 0.2
        %v3167 = vsel %vm3165, %v3162, %v3166
        %v3168 = vld [vmem:[%s22] sm:$0xff]
        %v3169 = vld [vmem:[%s22 + $0x8] sm:$0xff]
        %v3170 = vld [vmem:[%s22 + $0x10] sm:$0xff]
        %v3171 = vld [vmem:[%s22 + $0x18] sm:$0xff]
        %v3172 = vld [vmem:[%s22 + $0x20] sm:$0xff]
        %v3173 = vld [vmem:[%s22 + $0x28] sm:$0xff]
        %v3174 = vld [vmem:[%s22 + $0x30] sm:$0xff]
        %v3175 = vld [vmem:[%s22 + $0x38] sm:$0xff]
        %v3176 = vld [vmem:[%s22 + $0x40] sm:$0xff]
        %v3177 = vld [vmem:[%s22 + $0x48] sm:$0xff]
        %v3178 = vld [vmem:[%s22 + $0x50] sm:$0xff]
        %v3179 = vld [vmem:[%s22 + $0x58] sm:$0xff]
        %v3180 = vld [vmem:[%s22 + $0x60] sm:$0xff]
        %v3181 = vld [vmem:[%s22 + $0x68] sm:$0xff]
        %v3182 = vld [vmem:[%s22 + $0x70] sm:$0xff]
        %v3183 = vld [vmem:[%s22 + $0x78] sm:$0xff]
        %v3184 = vld [vmem:[%s23] sm:$0x1]
        %v3186 = vlaneseq
        %v3187 = vshrl.u32 %v3186, 7
        %v3188 = vsub.s32 0, %v3187
        %v3189 = vrot.slane %v3184, %v3188
        %3191 = vmatprep.subr.mxu0 0.0
        %3192 = vmatpush1.msra.mxu0 %v3168
        %3193 = vmatprep.subr.mxu0 0.0
        %3194 = vmatpush1.msra.mxu0 %v3169
        %3195 = vmatprep.subr.mxu0 0.0
        %3196 = vmatpush1.msra.mxu0 %v3170
        %3197 = vmatprep.subr.mxu0 0.0
        %3198 = vmatpush1.msra.mxu0 %v3171
        %3199 = vmatprep.subr.mxu0 0.0
        %3200 = vmatpush1.msra.mxu0 %v3172
        %3201 = vmatprep.subr.mxu0 0.0
        %3202 = vmatpush1.msra.mxu0 %v3173
        %3203 = vmatprep.subr.mxu0 0.0
        %3204 = vmatpush1.msra.mxu0 %v3174
        %3205 = vmatprep.subr.mxu0 0.0
        %3206 = vmatpush1.msra.mxu0 %v3175
        %3207 = vmatprep.subr.mxu0 0.0
        %3208 = vmatpush1.msra.mxu0 %v3176
        %3209 = vmatprep.subr.mxu0 0.0
        %3210 = vmatpush1.msra.mxu0 %v3177
        %3211 = vmatprep.subr.mxu0 0.0
        %3212 = vmatpush1.msra.mxu0 %v3178
        %3213 = vmatprep.subr.mxu0 0.0
        %3214 = vmatpush1.msra.mxu0 %v3179
        %3215 = vmatprep.subr.mxu0 0.0
        %3216 = vmatpush1.msra.mxu0 %v3180
        %3217 = vmatprep.subr.mxu0 0.0
        %3218 = vmatpush1.msra.mxu0 %v3181
        %3219 = vmatprep.subr.mxu0 0.0
        %3220 = vmatpush1.msra.mxu0 %v3182
        %3221 = vmatprep.subr.mxu0 0.0
        %3222 = vmatpush1.msra.mxu0 %v3183
        %3223 = vmatprep.subr.mxu0 0.0
        %3224 = vmatpush1.msra.mxu0 0.0
        %3225 = vmatprep.subr.mxu0 0.0
        %3226 = vmatpush1.msra.mxu0 0.0
        %3227 = vmatprep.subr.mxu0 0.0
        %3228 = vmatpush1.msra.mxu0 0.0
        %3229 = vmatprep.subr.mxu0 0.0
        %3230 = vmatpush1.msra.mxu0 0.0
        %3231 = vmatprep.subr.mxu0 0.0
        %3232 = vmatpush1.msra.mxu0 0.0
        %3233 = vmatprep.subr.mxu0 0.0
        %3234 = vmatpush1.msra.mxu0 0.0
        %3235 = vmatprep.subr.mxu0 0.0
        %3236 = vmatpush1.msra.mxu0 0.0
        %3237 = vmatprep.subr.mxu0 0.0
        %3238 = vmatpush1.msra.mxu0 0.0
        %3239 = vmatprep.subr.mxu0 0.0
        %3240 = vmatpush1.msra.mxu0 0.0
        %3241 = vmatprep.subr.mxu0 0.0
        %3242 = vmatpush1.msra.mxu0 0.0
        %3243 = vmatprep.subr.mxu0 0.0
        %3244 = vmatpush1.msra.mxu0 0.0
        %3245 = vmatprep.subr.mxu0 0.0
        %3246 = vmatpush1.msra.mxu0 0.0
        %3247 = vmatprep.subr.mxu0 0.0
        %3248 = vmatpush1.msra.mxu0 0.0
        %3249 = vmatprep.subr.mxu0 0.0
        %3250 = vmatpush1.msra.mxu0 0.0
        %3251 = vmatprep.subr.mxu0 0.0
        %3252 = vmatpush1.msra.mxu0 0.0
        %3253 = vmatprep.subr.mxu0 0.0
        %3254 = vmatpush1.msra.mxu0 0.0
        %3255 = vmatprep.mubr.f32.mxu0 0.0
        %3256 = vmatmul.mubr.f32.gmra.mrb[0].mxu0 %v3167
        %v3257 = vpop.f32.mrb[0].mxu0
        %v3258 = vadd.f32 %v3189, %v3257
        %v3259 = vpop.f32.mrb[0].mxu0
        %3260 = vdwg.mxu0
        %v3261 = vadd.f32 %v3258, %v3080
        %v3262 = vld [vmem:[%s24] sm:$0x1]
        %v3263 = vld [vmem:[%s25] sm:$0x1]
        %v3264 = vsel %vm1043, %v3261, 0.0
        %3265 = vadd.xlane.f32.xlu0 %v3264
        %v3266 = vpop.xlane.xlu0 %3265
        %v3267 = vmul.f32 %v3266, %v1975
        %v3268 = vsub.f32 %v3261, %v3267
        %v3269 = vmul.f32 %v3268, %v3268
        %v3270 = vsel %vm1043, %v3269, 0.0
        %3271 = vadd.xlane.f32.xlu0 %v3270
        %v3272 = vpop.xlane.xlu0 %3271
        %v3273 = vmul.f32 %v3272, %v1975
        %v3274 = vadd.f32 %v3273, 1e-05
        %v3275 = vrsqrt.pop %v3274
        %v3276 = vmul.f32 %v3268, %v3275
        %v3278 = vlaneseq
        %v3279 = vshrl.u32 %v3278, 7
        %v3280 = vsub.s32 0, %v3279
        %v3281 = vrot.slane %v3262, %v3280
        %v3283 = vmul.f32 %v3276, %v3281
        %v3285 = vlaneseq
        %v3286 = vshrl.u32 %v3285, 7
        %v3287 = vsub.s32 0, %v3286
        %v3288 = vrot.slane %v3263, %v3287
        %v3290 = vadd.f32 %v3283, %v3288
        %3291 = vst.msk [vmem:[%s1023] sm:$0xff] %vm1043, %v3290
        %s3292 = sand.u32 %s625, 1
        %s3293 = scalar_lea.sflag [#allocation5], %s3292
        %s3294 = sand.u32 %s625, 1
        %s3295 = smul.addr %s3294, 8
        %s3296 = scalar_lea.vmem [#allocation24], %s3295
        // Predicated region
        $region177: #{tpu_custom_call.1} parent=123 // pred_check
          %p3297 = pneg %p635
        $region178: #{tpu_custom_call.1} parent=123 // pred_check_branch
          %3299 = sbr.rel (%p3297) target = $region180
        $region179: #{tpu_custom_call.1} parent=123 // pred_region
          %s3301 = ssub.s32 128, 128
          %3302 = vsyncadd %s3293, %s3301
          %s3303 = smul.addr %s51, 128
          %s3304 = scalar_lea.hbm %s26, %s3303
          %s3306 = sshll.u32 %s3296, 4
          %s3307 = int_to_ptr.vmem [resolvable:$true] %s3306
          %3309 = dma.vmem_to_hbm [thread:$0]  %s3307, 128, %s3304, %s3293
        $region180: #{tpu_custom_call.1} parent=123 // pred_fallthru
          _
      $region124: #{tpu_custom_call.1} parent=5 // pred_fallthru
        _
      %p3310 = scmp.le.s32.totalorder 2, %s46
      // Predicated region
      $region181: #{tpu_custom_call.1} parent=5 // pred_check
        %p3311 = pneg %p3310
      $region182: #{tpu_custom_call.1} parent=5 // pred_check_branch
        %3313 = sbr.rel (%p3311) target = $region184
      $region183: #{tpu_custom_call.1} parent=5 // pred_region
        %s3314 = ssub.s32 %s46, 2
        // Predicated region
        $region185: #{tpu_custom_call.1} parent=183 // pred_check
          %p3315 = pneg %p641
        $region186: #{tpu_custom_call.1} parent=183 // pred_check_branch
          %3317 = sbr.rel (%p3315) target = $region188
        $region187: #{tpu_custom_call.1} parent=183 // pred_region
          %s3318 = sand.u32 %s626, 1
          %s3319 = scalar_lea.sflag [#allocation5], %s3318
          %s3320 = sand.u32 %s626, 1
          %s3321 = smul.addr %s3320, 8
          %s3322 = scalar_lea.vmem [#allocation24], %s3321
          %3323 = dma.done %s3319, 128
        $region188: #{tpu_custom_call.1} parent=183 // pred_fallthru
          _
      $region184: #{tpu_custom_call.1} parent=5 // pred_fallthru
        _
    $region6: #{tpu_custom_call.1} parent=1 // loop_footer
      %s50 = sadd.s32 1, %s46
    $region7: #{tpu_custom_call.1} parent=1 // loop_footer_branch
      %45 = sbr.rel target = $region3
    $region8: #{tpu_custom_call.1} parent=1 // loop_exit
      _
    %3324 = vsyncpa [#allocation4], 1
    %s3325 = scalar_lea.sflag [#allocation4], 1
    %3326 = vsyncpa %s3325, 1
    %3327 = vsyncpa [#allocation7], 1
    %s3328 = scalar_lea.sflag [#allocation7], 1
    %3329 = vsyncpa %s3328, 1
    %3330 = vsyncpa [#allocation10], 1
    %3331 = vsyncpa [#allocation13], 1
    %3332 = vsyncpa [#allocation16], 1
    %3333 = vsyncpa [#allocation19], 1
    %3334 = vsyncpa [#allocation22], 1
    %3335 = vsyncpa [#allocation5], 1
    %s3336 = scalar_lea.sflag [#allocation5], 1
    %3337 = vsyncpa %s3336, 1

</llo_original>
